<compile_context>
chip_gen: v7x
topology: tpu7x:2x2x1
jax: 0.10.0
libtpu: 0.0.40
codegen_flags: <defaults>
</compile_context>

<pallas_src>
import jax
import jax.numpy as jnp
from jax.experimental import pallas as pl
from jax.experimental.pallas import tpu as pltpu


# ---------------------------------------------------------------------------
# Fused kernel: whole Drug_graph forward, grid over node chunks (reduction)
# ---------------------------------------------------------------------------
def drug_graph_kernel(x_ref, w_init_ref, b_init_ref, a_ref,
                      w_l_ref, w_r_ref, b_l_ref,
                      pool_ref, invcnt_ref, sel1_ref, sel2_ref,
                      m_top_ref, m_bot_ref, bias_row_ref,
                      w1_ref, b1_ref, w2_ref, b2_ref,
                      nodes_ref, ddi_ref,
                      h_scr, aggr_scr):
    f32 = jnp.float32
    bf16 = jnp.bfloat16
    k = pl.program_id(0)
    nk = pl.num_programs(0)
    tk = x_ref.shape[0]

    @pl.when(k == 0)
    def _init():
        aggr_scr[...] = jnp.zeros_like(aggr_scr)

    # init_transform on this node chunk (bf16 inputs, f32 MXU accumulation)
    h_blk = (jnp.dot(x_ref[...], w_init_ref[...], preferred_element_type=f32)
             + b_init_ref[...])
    row0 = pl.multiple_of(k * tk, tk)
    h_scr[pl.ds(row0, tk), :] = h_blk
    # SAGE 'sum' aggregation accumulated over node chunks: aggr += A[:, blk] @ h_blk
    aggr_scr[...] += jnp.dot(a_ref[...], h_blk.astype(bf16),
                             preferred_element_type=f32)

    @pl.when(k == nk - 1)
    def _finalize():
        # SAGEConv: h2 = aggr @ W_l + h @ W_r + b_l   (no lane-concat relayout)
        h2 = (jnp.dot(aggr_scr[...].astype(bf16), w_l_ref[...],
                      preferred_element_type=f32)
              + jnp.dot(h_scr[...].astype(bf16), w_r_ref[...],
                        preferred_element_type=f32)
              + b_l_ref[...])

        # global_mean_pool: bf16 one-hot matmul, exact 1/count scaling in f32
        pooled = jnp.dot(pool_ref[...], h2.astype(bf16),
                         preferred_element_type=f32) * invcnt_ref[...]
        nodes_ref[...] = pooled                                 # output 1

        # graph_pre_decoder ---------------------------------------------------
        # DDI pair gather as one-hot matmuls (pooled never leaves VMEM)
        pooled_bf = pooled.astype(bf16)
        x1 = jnp.dot(sel1_ref[...], pooled_bf, preferred_element_type=f32)
        x2 = jnp.dot(sel2_ref[...], pooled_bf, preferred_element_type=f32)

        # Conv1d(1->4,k=3,pad=1) + MaxPool1d(2,2) + flatten(1,2) folded into
        # two matmuls:  p = x1 @ [Me_top|Mo_top] + x2 @ [Me_bot|Mo_bot]
        #               flat = max(p_even, p_odd) + conv_bias (channel-major cols)
        p = (jnp.dot(x1.astype(bf16), m_top_ref[...], preferred_element_type=f32)
             + jnp.dot(x2.astype(bf16), m_bot_ref[...], preferred_element_type=f32))
        four_h = bias_row_ref.shape[1]
        flat = jnp.maximum(p[:, :four_h], p[:, four_h:]) + bias_row_ref[...]

        # TODO(synk): F.dropout(x, 0.1) (training-mode default in the reference)
        # is omitted; the kernel implements deterministic / inference semantics.
        hdec = jnp.maximum(
            jnp.dot(flat.astype(bf16), w1_ref[...], preferred_element_type=f32)
            + b1_ref[...], 0.0)

        # Linear(64, 1): VPU multiply + lane reduction (avoids an N=1 MXU matmul)
        logits = jnp.sum(hdec * w2_ref[...], axis=-1, keepdims=True) + b2_ref[...]
        ddi_ref[...] = jax.nn.sigmoid(logits)                   # output 2


# ---------------------------------------------------------------------------
# Wrapper glue
# ---------------------------------------------------------------------------
def _round_up(x, m):
    return (x + m - 1) // m * m


def _build_fused_conv_pool(conv_w, conv_b, hidden):
    """Fold Conv1d(1->4,k=3,pad=1) + MaxPool1d(2,2) + flatten(1,2) into matmuls.

    Returns M_top, M_bot of shape [hidden, 8*hidden] such that
        p    = x1 @ M_top + x2 @ M_bot            # (E, 8H) = [p_even | p_odd]
        flat = max(p[:, :4H], p[:, 4H:]) + bias   # column order c*(L/2)+l
    matches torch.flatten(conv+maxpool, 1, 2).
    """
    L = 2 * hidden
    half = L // 2                                    # == hidden
    cols = jnp.arange(4 * half)
    ch = cols // half                                # output channel per column
    ll = cols % half                                 # pooled position per column
    j = jnp.arange(L)[:, None]                       # input position [L, 1]

    w0 = conv_w[ch, 0][None, :]
    w1 = conv_w[ch, 1][None, :]
    w2 = conv_w[ch, 2][None, :]

    pos_e = (2 * ll)[None, :]                        # even pooled element: y[2l]
    pos_o = (2 * ll + 1)[None, :]                    # odd pooled element:  y[2l+1]
    me = (w0 * (j == pos_e - 1) + w1 * (j == pos_e) + w2 * (j == pos_e + 1)).astype(jnp.float32)
    mo = (w0 * (j == pos_o - 1) + w1 * (j == pos_o) + w2 * (j == pos_o + 1)).astype(jnp.float32)
    m_top = jnp.concatenate([me[:hidden], mo[:hidden]], axis=1)    # [H, 8H]
    m_bot = jnp.concatenate([me[hidden:], mo[hidden:]], axis=1)    # [H, 8H]
    bias_row = conv_b[ch][None, :].astype(jnp.float32)             # [1, 4H]
    return m_top, m_bot, bias_row


def drug_graph_forward(drug_x, drug_edge, batch, target_ddi_index, params, num_graphs,
                       *, node_block=128):
    f32, bf16 = jnp.float32, jnp.bfloat16
    n_nodes, in_dim = drug_x.shape
    hidden = params["w_init"].shape[1]
    n_pairs = target_ddi_index.shape[1]

    k_pad = _round_up(in_dim, 128)                       # lane-align first contraction
    n_pad = _round_up(max(n_nodes, node_block), node_block)
    e_pad = _round_up(n_pairs, 8)
    tk = node_block
    nk = n_pad // tk

    # node features: pad feature dim to 128 lanes, node rows to the block grid
    x_pad = jnp.zeros((n_pad, k_pad), f32).at[:n_nodes, :in_dim].set(
        drug_x.astype(f32)).astype(bf16)
    w_init = jnp.pad(params["w_init"], ((0, k_pad - in_dim), (0, 0))).astype(bf16)

    # dense adjacency for 'sum' aggregation: A[dst, src] += 1 per edge
    # (0/1/2-valued -> exact in bf16).  TODO(synk): CSR + scalar prefetch at scale.
    adj = jnp.zeros((n_pad, n_pad), f32).at[
        drug_edge[1], drug_edge[0]].add(1.0).astype(bf16)

    # global_mean_pool: bf16 one-hot, exact f32 1/count applied after the matmul
    onehot = (batch[None, :] == jnp.arange(num_graphs)[:, None]).astype(f32)
    counts = jnp.maximum(onehot.sum(axis=1, keepdims=True), 1.0)
    pool1h = jnp.zeros((num_graphs, n_pad), f32).at[:, :n_nodes].set(onehot).astype(bf16)
    invcnt = (1.0 / counts).astype(f32)

    # DDI-pair one-hot gather matrices
    gid = jnp.arange(num_graphs)[None, :]
    sel1 = jnp.zeros((e_pad, num_graphs), f32).at[:n_pairs].set(
        (target_ddi_index[0][:, None] == gid).astype(f32)).astype(bf16)
    sel2 = jnp.zeros((e_pad, num_graphs), f32).at[:n_pairs].set(
        (target_ddi_index[1][:, None] == gid).astype(f32)).astype(bf16)

    # fused conv + maxpool + flatten matrices
    m_top, m_bot, bias_row = _build_fused_conv_pool(
        params["conv_w"], params["conv_b"], hidden)

    operands = (
        x_pad, w_init, params["b_init"].astype(f32),
        adj, params["w_l"].astype(bf16), params["w_r"].astype(bf16),
        params["b_l"].astype(f32),
        pool1h, invcnt, sel1, sel2,
        m_top.astype(bf16), m_bot.astype(bf16), bias_row,
        params["w1"].astype(bf16), params["b1"].astype(f32),
        params["w2"].reshape(1, -1).astype(f32), params["b2"].astype(f32),
    )

    in_specs = [
        pl.BlockSpec((tk, k_pad), lambda k: (k, 0)),               # x (node chunk)
        pl.BlockSpec((k_pad, hidden), lambda k: (0, 0)),           # w_init
        pl.BlockSpec((1, hidden), lambda k: (0, 0)),               # b_init
        pl.BlockSpec((n_pad, tk), lambda k: (0, k)),               # adj column block
        pl.BlockSpec((hidden, hidden), lambda k: (0, 0)),          # w_l
        pl.BlockSpec((hidden, hidden), lambda k: (0, 0)),          # w_r
        pl.BlockSpec((1, hidden), lambda k: (0, 0)),               # b_l
        pl.BlockSpec((num_graphs, n_pad), lambda k: (0, 0)),       # pool one-hot
        pl.BlockSpec((num_graphs, 1), lambda k: (0, 0)),           # 1 / count
        pl.BlockSpec((e_pad, num_graphs), lambda k: (0, 0)),       # sel1
        pl.BlockSpec((e_pad, num_graphs), lambda k: (0, 0)),       # sel2
        pl.BlockSpec((hidden, 8 * hidden), lambda k: (0, 0)),      # M_top
        pl.BlockSpec((hidden, 8 * hidden), lambda k: (0, 0)),      # M_bot
        pl.BlockSpec((1, 4 * hidden), lambda k: (0, 0)),           # conv bias row
        pl.BlockSpec((4 * hidden, 64), lambda k: (0, 0)),          # w1
        pl.BlockSpec((1, 64), lambda k: (0, 0)),                   # b1
        pl.BlockSpec((1, 64), lambda k: (0, 0)),                   # w2 row
        pl.BlockSpec((1, 1), lambda k: (0, 0)),                    # b2
    ]
    out_specs = (pl.BlockSpec((num_graphs, hidden), lambda k: (0, 0)),
                 pl.BlockSpec((e_pad, 1), lambda k: (0, 0)))

    flops = 2 * (n_pad * k_pad * hidden            # x @ w_init
                 + n_pad * n_pad * hidden          # A @ h
                 + 2 * n_pad * hidden * hidden     # aggr@W_l + h@W_r
                 + num_graphs * n_pad * hidden     # pool @ h2
                 + 2 * e_pad * num_graphs * hidden  # pair gathers
                 + 2 * e_pad * hidden * 8 * hidden  # fused conv+pool matmuls
                 + e_pad * 4 * hidden * 64          # linear1
                 + e_pad * 64)                      # linear2 (VPU)
    bytes_accessed = (sum(int(a.size) * jnp.dtype(a.dtype).itemsize for a in operands)
                      + 4 * (num_graphs * hidden + e_pad))
    cost = pl.CostEstimate(flops=int(flops), transcendentals=int(e_pad),
                           bytes_accessed=int(bytes_accessed))

    nodes, ddi = pl.pallas_call(
        drug_graph_kernel,
        out_shape=(jax.ShapeDtypeStruct((num_graphs, hidden), f32),
                   jax.ShapeDtypeStruct((e_pad, 1), f32)),
        grid=(nk,),
        in_specs=in_specs,
        out_specs=out_specs,
        scratch_shapes=[pltpu.VMEM((n_pad, hidden), f32),   # h  (per-node features)
                        pltpu.VMEM((n_pad, hidden), f32)],  # aggr accumulator
        compiler_params=pltpu.CompilerParams(
            dimension_semantics=("arbitrary",),
            vmem_limit_bytes=32 * 1024 * 1024),
        cost_estimate=cost,
    )(*operands)

    return nodes, ddi.reshape(-1)[:n_pairs]


# ---------------------------------------------------------------------------
# Pure-JAX reference (PyTorch semantics, inference / no dropout)
# ---------------------------------------------------------------------------
def drug_graph_reference(drug_x, drug_edge, batch, target_ddi_index, params, num_graphs):
    x = drug_x.astype(jnp.float32)
    h = x @ params["w_init"] + params["b_init"]
    n_nodes, hidden = h.shape
    aggr = jnp.zeros_like(h).at[drug_edge[1]].add(h[drug_edge[0]])
    h2 = aggr @ params["w_l"] + params["b_l"] + h @ params["w_r"]
    sums = jnp.zeros((num_graphs, hidden), jnp.float32).at[batch].add(h2)
    counts = jnp.zeros((num_graphs,), jnp.float32).at[batch].add(1.0)
    pooled = sums / jnp.maximum(counts, 1.0)[:, None]

    x1 = pooled[target_ddi_index[0]]
    x2 = pooled[target_ddi_index[1]]
    pairs = jnp.concatenate([x1, x2], axis=-1)               # [E, L]
    E, L = pairs.shape
    xp = jnp.pad(pairs, ((0, 0), (1, 1)))
    windows = jnp.stack([xp[:, k:k + L] for k in range(3)], axis=1)  # [E, 3, L]
    y = jnp.einsum("ekl,ck->ecl", windows, params["conv_w"]) \
        + params["conv_b"][None, :, None]
    pooled_y = y.reshape(E, 4, L // 2, 2).max(axis=-1)
    flat = pooled_y.reshape(E, 4 * (L // 2))
    hdec = jax.nn.relu(flat @ params["w1"] + params["b1"])
    logits = hdec @ params["w2"] + params["b2"]
    return pooled, jax.nn.sigmoid(logits).reshape(-1)


def make_params(key, in_dim, hidden, mlp_in_dim):
    ks = jax.random.split(key, 10)
    scale = 0.05
    return {
        # init_transform: Linear(in_dim, hidden)
        "w_init": scale * jax.random.normal(ks[0], (in_dim, hidden), jnp.float32),
        "b_init": scale * jax.random.normal(ks[1], (1, hidden), jnp.float32),
        # SAGEConv lin_l (bias) / lin_r (no bias)
        "w_l": scale * jax.random.normal(ks[2], (hidden, hidden), jnp.float32),
        "b_l": scale * jax.random.normal(ks[3], (1, hidden), jnp.float32),
        "w_r": scale * jax.random.normal(ks[4], (hidden, hidden), jnp.float32),
        # graph_pre_decoder
        "conv_w": scale * jax.random.normal(ks[5], (4, 3), jnp.float32),
        "conv_b": scale * jax.random.normal(ks[6], (4,), jnp.float32),
        "w1": scale * jax.random.normal(ks[7], (mlp_in_dim * 4, 64), jnp.float32),
        "b1": scale * jax.random.normal(ks[8], (1, 64), jnp.float32),
        "w2": scale * jax.random.normal(ks[9], (64, 1), jnp.float32),
        "b2": jnp.zeros((1, 1), jnp.float32),
    }


if __name__ == "__main__":
    import numpy as np

    key = jax.random.PRNGKey(0)
    k_x, k_e, k_i, k_p = jax.random.split(key, 4)

    in_dim = 75          # node feature dim
    hidden = 64          # hidden_dim
    mlp_in_dim = hidden  # args.mlp_dim[0] == hidden (cat of 2 graphs = 2*hidden)
    n_graphs = 8
    n_nodes = 272        # 34 nodes per graph -> 3 node-chunk grid steps (TK=128)
    n_edges = 816
    n_pairs = 8

    drug_x = jax.random.normal(k_x, (n_nodes, in_dim), jnp.float32)
    drug_edge = jax.random.randint(k_e, (2, n_edges), 0, n_nodes, jnp.int32)
    batch = jnp.repeat(jnp.arange(n_graphs, dtype=jnp.int32), n_nodes // n_graphs)
    target_ddi_index = jax.random.randint(k_i, (2, n_pairs), 0, n_graphs, jnp.int32)

    params = make_params(k_p, in_dim, hidden, mlp_in_dim)

    node_feats, ddi_pre = drug_graph_forward(
        drug_x, drug_edge, batch, target_ddi_index, params, n_graphs)
    jax.block_until_ready((node_feats, ddi_pre))

    ref_nodes, ref_ddi = drug_graph_reference(
        drug_x, drug_edge, batch, target_ddi_index, params, n_graphs)

    assert node_feats.shape == (n_graphs, hidden)
    assert ddi_pre.shape == (n_pairs,)
    assert bool(jnp.all(jnp.isfinite(node_feats)))
    assert bool(jnp.all((ddi_pre >= 0.0) & (ddi_pre <= 1.0)))
    # bf16 MXU inputs with f32 accumulation -> loosened-but-meaningful tolerances
    np.testing.assert_allclose(np.asarray(node_feats), np.asarray(ref_nodes),
                               rtol=2e-2, atol=2e-2)
    np.testing.assert_allclose(np.asarray(ddi_pre), np.asarray(ref_ddi),
                               rtol=2e-2, atol=2e-2)
    print("KERNEL_OK")
</pallas_src>

<mosaic_0001>
module attributes {stable_mosaic.version = 11 : i64} {
  func.func @drug_graph_kernel(%arg0: i32, %arg1: memref<128x128xbf16, #tpu.memory_space<vmem>>, %arg2: memref<128x64xbf16, #tpu.memory_space<vmem>>, %arg3: memref<1x64xf32, #tpu.memory_space<vmem>>, %arg4: memref<384x128xbf16, #tpu.memory_space<vmem>>, %arg5: memref<64x64xbf16, #tpu.memory_space<vmem>>, %arg6: memref<64x64xbf16, #tpu.memory_space<vmem>>, %arg7: memref<1x64xf32, #tpu.memory_space<vmem>>, %arg8: memref<8x384xbf16, #tpu.memory_space<vmem>>, %arg9: memref<8x1xf32, #tpu.memory_space<vmem>>, %arg10: memref<8x8xbf16, #tpu.memory_space<vmem>>, %arg11: memref<8x8xbf16, #tpu.memory_space<vmem>>, %arg12: memref<64x512xbf16, #tpu.memory_space<vmem>>, %arg13: memref<64x512xbf16, #tpu.memory_space<vmem>>, %arg14: memref<1x256xf32, #tpu.memory_space<vmem>>, %arg15: memref<256x64xbf16, #tpu.memory_space<vmem>>, %arg16: memref<1x64xf32, #tpu.memory_space<vmem>>, %arg17: memref<1x64xf32, #tpu.memory_space<vmem>>, %arg18: memref<1x1xf32, #tpu.memory_space<vmem>>, %arg19: memref<8x64xf32, #tpu.memory_space<vmem>>, %arg20: memref<8x1xf32, #tpu.memory_space<vmem>>, %arg21: memref<384x64xf32, #tpu.memory_space<vmem>>, %arg22: memref<384x64xf32, #tpu.memory_space<vmem>>) attributes {dimension_semantics = [#tpu.dimension_semantics<arbitrary>], iteration_bounds = array<i64: 3>, scalar_prefetch = 0 : i64, scratch_operands = 2 : i64, tpu.core_type = #tpu.core_type<tc>, window_params = [{transform_indices = @transform_0, window_bounds = array<i64: 128, 128>}, {pipeline_mode = #tpu.pipeline_mode<synchronous>, transform_indices = @transform_1, window_bounds = array<i64: 128, 64>}, {pipeline_mode = #tpu.pipeline_mode<synchronous>, transform_indices = @transform_2, window_bounds = array<i64: 1, 64>}, {transform_indices = @transform_3, window_bounds = array<i64: 384, 128>}, {pipeline_mode = #tpu.pipeline_mode<synchronous>, transform_indices = @transform_4, window_bounds = array<i64: 64, 64>}, {pipeline_mode = #tpu.pipeline_mode<synchronous>, transform_indices = @transform_5, window_bounds = array<i64: 64, 64>}, {pipeline_mode = #tpu.pipeline_mode<synchronous>, transform_indices = @transform_6, window_bounds = array<i64: 1, 64>}, {pipeline_mode = #tpu.pipeline_mode<synchronous>, transform_indices = @transform_7, window_bounds = array<i64: 8, 384>}, {pipeline_mode = #tpu.pipeline_mode<synchronous>, transform_indices = @transform_8, window_bounds = array<i64: 8, 1>}, {pipeline_mode = #tpu.pipeline_mode<synchronous>, transform_indices = @transform_9, window_bounds = array<i64: 8, 8>}, {pipeline_mode = #tpu.pipeline_mode<synchronous>, transform_indices = @transform_10, window_bounds = array<i64: 8, 8>}, {pipeline_mode = #tpu.pipeline_mode<synchronous>, transform_indices = @transform_11, window_bounds = array<i64: 64, 512>}, {pipeline_mode = #tpu.pipeline_mode<synchronous>, transform_indices = @transform_12, window_bounds = array<i64: 64, 512>}, {pipeline_mode = #tpu.pipeline_mode<synchronous>, transform_indices = @transform_13, window_bounds = array<i64: 1, 256>}, {pipeline_mode = #tpu.pipeline_mode<synchronous>, transform_indices = @transform_14, window_bounds = array<i64: 256, 64>}, {pipeline_mode = #tpu.pipeline_mode<synchronous>, transform_indices = @transform_15, window_bounds = array<i64: 1, 64>}, {pipeline_mode = #tpu.pipeline_mode<synchronous>, transform_indices = @transform_16, window_bounds = array<i64: 1, 64>}, {pipeline_mode = #tpu.pipeline_mode<synchronous>, transform_indices = @transform_17, window_bounds = array<i64: 1, 1>}, {pipeline_mode = #tpu.pipeline_mode<synchronous>, transform_indices = @transform_18, window_bounds = array<i64: 8, 64>}, {pipeline_mode = #tpu.pipeline_mode<synchronous>, transform_indices = @transform_19, window_bounds = array<i64: 8, 1>}]} {
    %c0_i32 = arith.constant 0 : i32
    %0 = arith.cmpi eq, %arg0, %c0_i32 : i32
    %1 = arith.extui %0 : i1 to i32
    %c0_i32_0 = arith.constant 0 : i32
    %2 = arith.cmpi ne, %1, %c0_i32_0 : i32
    scf.if %2 {
      %cst_15 = arith.constant 0.000000e+00 : f32
      %22 = vector.broadcast %cst_15 : f32 to vector<384x64xf32>
      %c0_16 = arith.constant 0 : index
      %c0_17 = arith.constant 0 : index
      %23 = vector.load %arg22[%c0_16, %c0_17] : memref<384x64xf32, #tpu.memory_space<vmem>>, vector<384x64xf32>
      tpu.vector_store %arg22[%c0_16, %c0_17], %22 {strides = array<i32>} : memref<384x64xf32, #tpu.memory_space<vmem>>, vector<384x64xf32>,
    } else {
    }
    %c0 = arith.constant 0 : index
    %c0_1 = arith.constant 0 : index
    %3 = vector.load %arg1[%c0, %c0_1] : memref<128x128xbf16, #tpu.memory_space<vmem>>, vector<128x128xbf16>
    %c0_2 = arith.constant 0 : index
    %c0_3 = arith.constant 0 : index
    %4 = vector.load %arg2[%c0_2, %c0_3] : memref<128x64xbf16, #tpu.memory_space<vmem>>, vector<128x64xbf16>
    %cst = arith.constant dense<0.000000e+00> : vector<128x64xf32>
    %5 = tpu.matmul %3, %4, %cst {dimension_numbers = #tpu.dot_dimension_numbers<[1], [0], [0], [1], [0, 0, 1, 1], [], []>} : vector<128x128xbf16>, vector<128x64xbf16>, vector<128x64xf32> -> vector<128x64xf32>
    %c0_4 = arith.constant 0 : index
    %c0_5 = arith.constant 0 : index
    %6 = vector.load %arg3[%c0_4, %c0_5] : memref<1x64xf32, #tpu.memory_space<vmem>>, vector<1x64xf32>
    %7 = vector.broadcast %6 : vector<1x64xf32> to vector<128x64xf32>
    %8 = arith.addf %5, %7 : vector<128x64xf32>
    %c128_i32 = arith.constant 128 : i32
    %9 = arith.muli %arg0, %c128_i32 : i32
    %10 = tpu.assume_multiple %9, 128 : i32
    %11 = arith.index_cast %10 : i32 to index
    %c0_6 = arith.constant 0 : index
    %12 = vector.load %arg21[%11, %c0_6] : memref<384x64xf32, #tpu.memory_space<vmem>>, vector<128x64xf32>
    tpu.vector_store %arg21[%11, %c0_6], %8 {strides = array<i32>} : memref<384x64xf32, #tpu.memory_space<vmem>>, vector<128x64xf32>,
    %c0_7 = arith.constant 0 : index
    %c0_8 = arith.constant 0 : index
    %13 = vector.load %arg22[%c0_7, %c0_8] : memref<384x64xf32, #tpu.memory_space<vmem>>, vector<384x64xf32>
    %c0_9 = arith.constant 0 : index
    %c0_10 = arith.constant 0 : index
    %14 = vector.load %arg4[%c0_9, %c0_10] : memref<384x128xbf16, #tpu.memory_space<vmem>>, vector<384x128xbf16>
    %15 = arith.truncf %8 : vector<128x64xf32> to vector<128x64xbf16>
    %cst_11 = arith.constant dense<0.000000e+00> : vector<384x64xf32>
    %16 = tpu.matmul %14, %15, %cst_11 {dimension_numbers = #tpu.dot_dimension_numbers<[1], [0], [0], [1], [0, 0, 1, 1], [], []>} : vector<384x128xbf16>, vector<128x64xbf16>, vector<384x64xf32> -> vector<384x64xf32>
    %17 = arith.addf %13, %16 : vector<384x64xf32>
    %c0_12 = arith.constant 0 : index
    %c0_13 = arith.constant 0 : index
    %18 = vector.load %arg22[%c0_12, %c0_13] : memref<384x64xf32, #tpu.memory_space<vmem>>, vector<384x64xf32>
    tpu.vector_store %arg22[%c0_12, %c0_13], %17 {strides = array<i32>} : memref<384x64xf32, #tpu.memory_space<vmem>>, vector<384x64xf32>,
    %c2_i32 = arith.constant 2 : i32
    %19 = arith.cmpi eq, %arg0, %c2_i32 : i32
    %20 = arith.extui %19 : i1 to i32
    %c0_i32_14 = arith.constant 0 : i32
    %21 = arith.cmpi ne, %20, %c0_i32_14 : i32
    scf.if %21 {
      %c0_15 = arith.constant 0 : index
      %c0_16 = arith.constant 0 : index
      %22 = vector.load %arg22[%c0_15, %c0_16] : memref<384x64xf32, #tpu.memory_space<vmem>>, vector<384x64xf32>
      %23 = arith.truncf %22 : vector<384x64xf32> to vector<384x64xbf16>
      %c0_17 = arith.constant 0 : index
      %c0_18 = arith.constant 0 : index
      %24 = vector.load %arg5[%c0_17, %c0_18] : memref<64x64xbf16, #tpu.memory_space<vmem>>, vector<64x64xbf16>
      %cst_19 = arith.constant dense<0.000000e+00> : vector<384x64xf32>
      %25 = tpu.matmul %23, %24, %cst_19 {dimension_numbers = #tpu.dot_dimension_numbers<[1], [0], [0], [1], [0, 0, 1, 1], [], []>} : vector<384x64xbf16>, vector<64x64xbf16>, vector<384x64xf32> -> vector<384x64xf32>
      %c0_20 = arith.constant 0 : index
      %c0_21 = arith.constant 0 : index
      %26 = vector.load %arg21[%c0_20, %c0_21] : memref<384x64xf32, #tpu.memory_space<vmem>>, vector<384x64xf32>
      %27 = arith.truncf %26 : vector<384x64xf32> to vector<384x64xbf16>
      %c0_22 = arith.constant 0 : index
      %c0_23 = arith.constant 0 : index
      %28 = vector.load %arg6[%c0_22, %c0_23] : memref<64x64xbf16, #tpu.memory_space<vmem>>, vector<64x64xbf16>
      %cst_24 = arith.constant dense<0.000000e+00> : vector<384x64xf32>
      %29 = tpu.matmul %27, %28, %cst_24 {dimension_numbers = #tpu.dot_dimension_numbers<[1], [0], [0], [1], [0, 0, 1, 1], [], []>} : vector<384x64xbf16>, vector<64x64xbf16>, vector<384x64xf32> -> vector<384x64xf32>
      %30 = arith.addf %25, %29 : vector<384x64xf32>
      %c0_25 = arith.constant 0 : index
      %c0_26 = arith.constant 0 : index
      %31 = vector.load %arg7[%c0_25, %c0_26] : memref<1x64xf32, #tpu.memory_space<vmem>>, vector<1x64xf32>
      %32 = vector.broadcast %31 : vector<1x64xf32> to vector<384x64xf32>
      %33 = arith.addf %30, %32 : vector<384x64xf32>
      %c0_27 = arith.constant 0 : index
      %c0_28 = arith.constant 0 : index
      %34 = vector.load %arg8[%c0_27, %c0_28] : memref<8x384xbf16, #tpu.memory_space<vmem>>, vector<8x384xbf16>
      %35 = arith.truncf %33 : vector<384x64xf32> to vector<384x64xbf16>
      %cst_29 = arith.constant dense<0.000000e+00> : vector<8x64xf32>
      %36 = tpu.matmul %34, %35, %cst_29 {dimension_numbers = #tpu.dot_dimension_numbers<[1], [0], [0], [1], [0, 0, 1, 1], [], []>} : vector<8x384xbf16>, vector<384x64xbf16>, vector<8x64xf32> -> vector<8x64xf32>
      %c0_30 = arith.constant 0 : index
      %c0_31 = arith.constant 0 : index
      %37 = vector.load %arg9[%c0_30, %c0_31] : memref<8x1xf32, #tpu.memory_space<vmem>>, vector<8x1xf32>
      %38 = vector.broadcast %37 : vector<8x1xf32> to vector<8x64xf32>
      %39 = arith.mulf %36, %38 : vector<8x64xf32>
      %c0_32 = arith.constant 0 : index
      %c0_33 = arith.constant 0 : index
      %40 = vector.load %arg19[%c0_32, %c0_33] : memref<8x64xf32, #tpu.memory_space<vmem>>, vector<8x64xf32>
      tpu.vector_store %arg19[%c0_32, %c0_33], %39 {strides = array<i32>} : memref<8x64xf32, #tpu.memory_space<vmem>>, vector<8x64xf32>,
      %41 = arith.truncf %39 : vector<8x64xf32> to vector<8x64xbf16>
      %c0_34 = arith.constant 0 : index
      %c0_35 = arith.constant 0 : index
      %42 = vector.load %arg10[%c0_34, %c0_35] : memref<8x8xbf16, #tpu.memory_space<vmem>>, vector<8x8xbf16>
      %cst_36 = arith.constant dense<0.000000e+00> : vector<8x64xf32>
      %43 = tpu.matmul %42, %41, %cst_36 {dimension_numbers = #tpu.dot_dimension_numbers<[1], [0], [0], [1], [0, 0, 1, 1], [], []>} : vector<8x8xbf16>, vector<8x64xbf16>, vector<8x64xf32> -> vector<8x64xf32>
      %c0_37 = arith.constant 0 : index
      %c0_38 = arith.constant 0 : index
      %44 = vector.load %arg11[%c0_37, %c0_38] : memref<8x8xbf16, #tpu.memory_space<vmem>>, vector<8x8xbf16>
      %cst_39 = arith.constant dense<0.000000e+00> : vector<8x64xf32>
      %45 = tpu.matmul %44, %41, %cst_39 {dimension_numbers = #tpu.dot_dimension_numbers<[1], [0], [0], [1], [0, 0, 1, 1], [], []>} : vector<8x8xbf16>, vector<8x64xbf16>, vector<8x64xf32> -> vector<8x64xf32>
      %46 = arith.truncf %43 : vector<8x64xf32> to vector<8x64xbf16>
      %c0_40 = arith.constant 0 : index
      %c0_41 = arith.constant 0 : index
      %47 = vector.load %arg12[%c0_40, %c0_41] : memref<64x512xbf16, #tpu.memory_space<vmem>>, vector<64x512xbf16>
      %cst_42 = arith.constant dense<0.000000e+00> : vector<8x512xf32>
      %48 = tpu.matmul %46, %47, %cst_42 {dimension_numbers = #tpu.dot_dimension_numbers<[1], [0], [0], [1], [0, 0, 1, 1], [], []>} : vector<8x64xbf16>, vector<64x512xbf16>, vector<8x512xf32> -> vector<8x512xf32>
      %49 = arith.truncf %45 : vector<8x64xf32> to vector<8x64xbf16>
      %c0_43 = arith.constant 0 : index
      %c0_44 = arith.constant 0 : index
      %50 = vector.load %arg13[%c0_43, %c0_44] : memref<64x512xbf16, #tpu.memory_space<vmem>>, vector<64x512xbf16>
      %cst_45 = arith.constant dense<0.000000e+00> : vector<8x512xf32>
      %51 = tpu.matmul %49, %50, %cst_45 {dimension_numbers = #tpu.dot_dimension_numbers<[1], [0], [0], [1], [0, 0, 1, 1], [], []>} : vector<8x64xbf16>, vector<64x512xbf16>, vector<8x512xf32> -> vector<8x512xf32>
      %52 = arith.addf %48, %51 : vector<8x512xf32>
      %53 = vector.extract_strided_slice %52 {offsets = [0, 0], sizes = [8, 256], strides = [1, 1]} : vector<8x512xf32> to vector<8x256xf32>
      %54 = vector.extract_strided_slice %52 {offsets = [0, 256], sizes = [8, 256], strides = [1, 1]} : vector<8x512xf32> to vector<8x256xf32>
      %55 = arith.maximumf %53, %54 : vector<8x256xf32>
      %c0_46 = arith.constant 0 : index
      %c0_47 = arith.constant 0 : index
      %56 = vector.load %arg14[%c0_46, %c0_47] : memref<1x256xf32, #tpu.memory_space<vmem>>, vector<1x256xf32>
      %57 = vector.broadcast %56 : vector<1x256xf32> to vector<8x256xf32>
      %58 = arith.addf %55, %57 : vector<8x256xf32>
      %59 = arith.truncf %58 : vector<8x256xf32> to vector<8x256xbf16>
      %c0_48 = arith.constant 0 : index
      %c0_49 = arith.constant 0 : index
      %60 = vector.load %arg15[%c0_48, %c0_49] : memref<256x64xbf16, #tpu.memory_space<vmem>>, vector<256x64xbf16>
      %cst_50 = arith.constant dense<0.000000e+00> : vector<8x64xf32>
      %61 = tpu.matmul %59, %60, %cst_50 {dimension_numbers = #tpu.dot_dimension_numbers<[1], [0], [0], [1], [0, 0, 1, 1], [], []>} : vector<8x256xbf16>, vector<256x64xbf16>, vector<8x64xf32> -> vector<8x64xf32>
      %c0_51 = arith.constant 0 : index
      %c0_52 = arith.constant 0 : index
      %62 = vector.load %arg16[%c0_51, %c0_52] : memref<1x64xf32, #tpu.memory_space<vmem>>, vector<1x64xf32>
      %63 = vector.broadcast %62 : vector<1x64xf32> to vector<8x64xf32>
      %64 = arith.addf %61, %63 : vector<8x64xf32>
      %cst_53 = arith.constant 0.000000e+00 : f32
      %65 = vector.broadcast %cst_53 : f32 to vector<8x64xf32>
      %66 = arith.maximumf %64, %65 : vector<8x64xf32>
      %c0_54 = arith.constant 0 : index
      %c0_55 = arith.constant 0 : index
      %67 = vector.load %arg17[%c0_54, %c0_55] : memref<1x64xf32, #tpu.memory_space<vmem>>, vector<1x64xf32>
      %68 = vector.broadcast %67 : vector<1x64xf32> to vector<8x64xf32>
      %69 = arith.mulf %66, %68 : vector<8x64xf32>
      %cst_56 = arith.constant dense<0.000000e+00> : vector<8xf32>
      %70 = vector.multi_reduction <add>, %69, %cst_56 [1] : vector<8x64xf32> to vector<8xf32>
      %71 = vector.shape_cast %70 : vector<8xf32> to vector<8x1xf32>
      %c0_57 = arith.constant 0 : index
      %c0_58 = arith.constant 0 : index
      %72 = vector.load %arg18[%c0_57, %c0_58] : memref<1x1xf32, #tpu.memory_space<vmem>>, vector<1x1xf32>
      %73 = vector.broadcast %72 : vector<1x1xf32> to vector<8x1xf32>
      %74 = arith.addf %71, %73 : vector<8x1xf32>
      %75 = arith.negf %74 : vector<8x1xf32>
      %76 = math.exp %75 : vector<8x1xf32>
      %cst_59 = arith.constant 1.000000e+00 : f32
      %77 = vector.broadcast %cst_59 : f32 to vector<8x1xf32>
      %78 = arith.addf %77, %76 : vector<8x1xf32>
      %79 = arith.divf %77, %78 : vector<8x1xf32>
      %c0_60 = arith.constant 0 : index
      %c0_61 = arith.constant 0 : index
      %80 = vector.load %arg20[%c0_60, %c0_61] : memref<8x1xf32, #tpu.memory_space<vmem>>, vector<8x1xf32>
      tpu.vector_store %arg20[%c0_60, %c0_61], %79 {strides = array<i32>} : memref<8x1xf32, #tpu.memory_space<vmem>>, vector<8x1xf32>,
    } else {
    }
    return
  }
  func.func @transform_0(%arg0: i32) -> (i32, i32) {
    %c0_i32 = arith.constant 0 : i32
    %c0_i32_0 = arith.constant 0 : i32
    return %arg0, %c0_i32 : i32, i32
  }
  func.func @transform_1(%arg0: i32) -> (i32, i32) {
    %c0_i32 = arith.constant 0 : i32
    %c0_i32_0 = arith.constant 0 : i32
    %c0_i32_1 = arith.constant 0 : i32
    return %c0_i32, %c0_i32_0 : i32, i32
  }
  func.func @transform_2(%arg0: i32) -> (i32, i32) {
    %c0_i32 = arith.constant 0 : i32
    %c0_i32_0 = arith.constant 0 : i32
    %c0_i32_1 = arith.constant 0 : i32
    return %c0_i32, %c0_i32_0 : i32, i32
  }
  func.func @transform_3(%arg0: i32) -> (i32, i32) {
    %c0_i32 = arith.constant 0 : i32
    %c0_i32_0 = arith.constant 0 : i32
    return %c0_i32, %arg0 : i32, i32
  }
  func.func @transform_4(%arg0: i32) -> (i32, i32) {
    %c0_i32 = arith.constant 0 : i32
    %c0_i32_0 = arith.constant 0 : i32
    %c0_i32_1 = arith.constant 0 : i32
    return %c0_i32, %c0_i32_0 : i32, i32
  }
  func.func @transform_5(%arg0: i32) -> (i32, i32) {
    %c0_i32 = arith.constant 0 : i32
    %c0_i32_0 = arith.constant 0 : i32
    %c0_i32_1 = arith.constant 0 : i32
    return %c0_i32, %c0_i32_0 : i32, i32
  }
  func.func @transform_6(%arg0: i32) -> (i32, i32) {
    %c0_i32 = arith.constant 0 : i32
    %c0_i32_0 = arith.constant 0 : i32
    %c0_i32_1 = arith.constant 0 : i32
    return %c0_i32, %c0_i32_0 : i32, i32
  }
  func.func @transform_7(%arg0: i32) -> (i32, i32) {
    %c0_i32 = arith.constant 0 : i32
    %c0_i32_0 = arith.constant 0 : i32
    %c0_i32_1 = arith.constant 0 : i32
    return %c0_i32, %c0_i32_0 : i32, i32
  }
  func.func @transform_8(%arg0: i32) -> (i32, i32) {
    %c0_i32 = arith.constant 0 : i32
    %c0_i32_0 = arith.constant 0 : i32
    %c0_i32_1 = arith.constant 0 : i32
    return %c0_i32, %c0_i32_0 : i32, i32
  }
  func.func @transform_9(%arg0: i32) -> (i32, i32) {
    %c0_i32 = arith.constant 0 : i32
    %c0_i32_0 = arith.constant 0 : i32
    %c0_i32_1 = arith.constant 0 : i32
    return %c0_i32, %c0_i32_0 : i32, i32
  }
  func.func @transform_10(%arg0: i32) -> (i32, i32) {
    %c0_i32 = arith.constant 0 : i32
    %c0_i32_0 = arith.constant 0 : i32
    %c0_i32_1 = arith.constant 0 : i32
    return %c0_i32, %c0_i32_0 : i32, i32
  }
  func.func @transform_11(%arg0: i32) -> (i32, i32) {
    %c0_i32 = arith.constant 0 : i32
    %c0_i32_0 = arith.constant 0 : i32
    %c0_i32_1 = arith.constant 0 : i32
    return %c0_i32, %c0_i32_0 : i32, i32
  }
  func.func @transform_12(%arg0: i32) -> (i32, i32) {
    %c0_i32 = arith.constant 0 : i32
    %c0_i32_0 = arith.constant 0 : i32
    %c0_i32_1 = arith.constant 0 : i32
    return %c0_i32, %c0_i32_0 : i32, i32
  }
  func.func @transform_13(%arg0: i32) -> (i32, i32) {
    %c0_i32 = arith.constant 0 : i32
    %c0_i32_0 = arith.constant 0 : i32
    %c0_i32_1 = arith.constant 0 : i32
    return %c0_i32, %c0_i32_0 : i32, i32
  }
  func.func @transform_14(%arg0: i32) -> (i32, i32) {
    %c0_i32 = arith.constant 0 : i32
    %c0_i32_0 = arith.constant 0 : i32
    %c0_i32_1 = arith.constant 0 : i32
    return %c0_i32, %c0_i32_0 : i32, i32
  }
  func.func @transform_15(%arg0: i32) -> (i32, i32) {
    %c0_i32 = arith.constant 0 : i32
    %c0_i32_0 = arith.constant 0 : i32
    %c0_i32_1 = arith.constant 0 : i32
    return %c0_i32, %c0_i32_0 : i32, i32
  }
  func.func @transform_16(%arg0: i32) -> (i32, i32) {
    %c0_i32 = arith.constant 0 : i32
    %c0_i32_0 = arith.constant 0 : i32
    %c0_i32_1 = arith.constant 0 : i32
    return %c0_i32, %c0_i32_0 : i32, i32
  }
  func.func @transform_17(%arg0: i32) -> (i32, i32) {
    %c0_i32 = arith.constant 0 : i32
    %c0_i32_0 = arith.constant 0 : i32
    %c0_i32_1 = arith.constant 0 : i32
    return %c0_i32, %c0_i32_0 : i32, i32
  }
  func.func @transform_18(%arg0: i32) -> (i32, i32) {
    %c0_i32 = arith.constant 0 : i32
    %c0_i32_0 = arith.constant 0 : i32
    %c0_i32_1 = arith.constant 0 : i32
    return %c0_i32, %c0_i32_0 : i32, i32
  }
  func.func @transform_19(%arg0: i32) -> (i32, i32) {
    %c0_i32 = arith.constant 0 : i32
    %c0_i32_0 = arith.constant 0 : i32
    %c0_i32_1 = arith.constant 0 : i32
    return %c0_i32, %c0_i32_0 : i32, i32
  }
}

</mosaic_0001>

<llo_original>
// kernel: tpu_custom_call.1
$region0: #{tpu_custom_call.1}
  #allocation0 [shape = 'u32[]', space=smem, size = 0x4, offset = 0x4, fixed_abs, tag = 'smem constant byte address 0x4 - core index']
  #allocation1 [shape = 'u32[144,128]{1,0:T(1,128)}', space=vmem, size = 0x12000, scoped, tag = 'internal scratch']
  #allocation2 [shape = 'f32[384,64]{1,0:T(8,128)}', space=vmem, size = 0x30000, scoped, tag = 'scratch operand']
  #allocation3 [shape = 'f32[384,64]{1,0:T(8,128)}', space=vmem, size = 0x30000, scoped, tag = 'scratch operand']
  #allocation4 [shape = 'f32[1,1]{1,0:T(1,128)S(1)}', space=vmem, size = 0x200, scoped, tag = 'scoped memory for tpu_custom_call.1']
  %s0 = inlined_call_operand.vmem [shape: bf16[384,128], index: 0, kind: input, shape index: {}]
  %s1 = inlined_call_operand.vmem [shape: bf16[128,64], index: 1, kind: input, shape index: {}]
  %s2 = inlined_call_operand.vmem [shape: f32[1,64], index: 2, kind: input, shape index: {}]
  %s3 = inlined_call_operand.hbm [shape: bf16[384,384], index: 3, kind: input, shape index: {}]
  %s4 = inlined_call_operand.hbm [shape: bf16[64,64], index: 4, kind: input, shape index: {}]
  %s5 = inlined_call_operand.hbm [shape: bf16[64,64], index: 5, kind: input, shape index: {}]
  %s6 = inlined_call_operand.hbm [shape: f32[1,64], index: 6, kind: input, shape index: {}]
  %s7 = inlined_call_operand.hbm [shape: bf16[8,384], index: 7, kind: input, shape index: {}]
  %s8 = inlined_call_operand.vmem [shape: f32[8,1], index: 8, kind: input, shape index: {}]
  %s9 = inlined_call_operand.vmem [shape: bf16[8,8], index: 9, kind: input, shape index: {}]
  %s10 = inlined_call_operand.vmem [shape: bf16[8,8], index: 10, kind: input, shape index: {}]
  %s11 = inlined_call_operand.vmem [shape: bf16[64,512], index: 11, kind: input, shape index: {}]
  %s12 = inlined_call_operand.hbm [shape: bf16[64,512], index: 12, kind: input, shape index: {}]
  %s13 = inlined_call_operand.vmem [shape: f32[1,256], index: 13, kind: input, shape index: {}]
  %s14 = inlined_call_operand.vmem [shape: bf16[256,64], index: 14, kind: input, shape index: {}]
  %s15 = inlined_call_operand.vmem [shape: f32[1,64], index: 15, kind: input, shape index: {}]
  %s16 = inlined_call_operand.vmem [shape: f32[1,64], index: 16, kind: input, shape index: {}]
  %s17 = inlined_call_operand.<no memory space> [shape: f32[1,1], index: 17, kind: input, shape index: {}]
  %s18 = inlined_call_operand.hbm [shape: f32[8,64], index: 18, kind: output, shape index: {0}]
  %s19 = inlined_call_operand.vmem [shape: f32[8,1], index: 19, kind: output, shape index: {1}]
  %20 = xla_tuple %s18, %s19
  %s21 = sld [smem:[#allocation0]]
  $region145: #{tpu_custom_call.1} parent=0
    _
  %s23 = ssub.s32 1, %s21
  %s24 = scalar_select 0, %s23, %s21
  %v25 = vstv %s17
  %26 = vst [vmem:[#allocation4] sm:$0x1] %v25
  $region1: #{tpu_custom_call.1} parent=0
    #allocation5 [shape = 'u8[196608]{0}', space=vmem, size = 0x30000, scoped, tag = 'input window, operand 3']
    #allocation6 [shape = 's32[2]{0}', space=sflag, size = 0x8, scoped, tag = 'scoped memory for tpu_custom_call.1']
    #allocation7 [shape = 's32[2]{0}', space=sflag, size = 0x8, scoped, tag = 'scoped memory for tpu_custom_call.1']
    #allocation8 [shape = 'u8[16384]{0}', space=vmem, size = 0x4000, scoped, tag = 'input window, operand 4, single buffered']
    #allocation9 [shape = 's32[1]{0}', space=sflag, size = 0x4, scoped, tag = 'scoped memory for tpu_custom_call.1']
    #allocation10 [shape = 'u8[16384]{0}', space=vmem, size = 0x4000, scoped, tag = 'input window, operand 5, single buffered']
    #allocation11 [shape = 'u8[512]{0}', space=vmem, size = 0x400, scoped, tag = 'input window, operand 6, single buffered']
    #allocation12 [shape = 's32[1]{0}', space=sflag, size = 0x4, scoped, tag = 'scoped memory for tpu_custom_call.1']
    #allocation13 [shape = 'u8[6144]{0}', space=vmem, size = 0x1800, scoped, tag = 'input window, operand 7, single buffered']
    #allocation14 [shape = 'u8[65536]{0}', space=vmem, size = 0x10000, scoped, tag = 'input window, operand 12, single buffered']
    #allocation15 [shape = 's32[1]{0}', space=sflag, size = 0x4, scoped, tag = 'scoped memory for tpu_custom_call.1']
    #allocation16 [shape = 'u8[4096]{0}', space=vmem, size = 0x1000, scoped, tag = 'output window, operand 0, single buffered']
    %27 = vsyncpa [#allocation6], 0
    %s28 = scalar_lea.sflag [#allocation6], 1
    %29 = vsyncpa %s28, 0
    %30 = vsyncpa [#allocation9], 0
    %31 = vsyncpa [#allocation12], 0
    %32 = vsyncpa [#allocation15], 0
    %33 = vsyncpa [#allocation7], 0
    loop: start=0, step=1, limit=5
    $region2: #{tpu_custom_call.1} parent=1 // loop_pre_header
      _
    $region3: #{tpu_custom_call.1} parent=1 // loop_header
      %s35 = sphi 0, %s39
      %p36 = scmp.ge.s32.totalorder %s35, 5
      %s45 = sphi 0, %s47
      %s48 = sphi 0, %s45
      %s49 = sphi 0, %s48
      %s65 = sphi 0, %s49
      %s69 = sphi 0, %s69
      %s71 = sphi 0, %s69
      %s72 = sphi 0, %s71
      %s86 = sphi 0, %s72
      %s90 = sphi 0, %s90
      %s92 = sphi 0, %s90
      %s93 = sphi 0, %s92
      %s107 = sphi 0, %s93
      %s113 = sphi 0, %s115
      %s116 = sphi 0, %s113
      %s117 = sphi 0, %s116
      %s133 = sphi 0, %s117
      %s137 = sphi 0, %s137
      %s139 = sphi 0, %s137
      %s140 = sphi 0, %s139
      %s154 = sphi 0, %s140
      %s158 = sphi 0, %s158
      %s160 = sphi 0, %s158
      %s161 = sphi 0, %s160
      %s175 = sphi 0, %s161
      %s179 = sphi 0, %s179
      %s181 = sphi 0, %s179
      %s182 = sphi 0, %s181
      %s196 = sphi 0, %s182
      %s200 = sphi 0, %s200
      %s202 = sphi 0, %s200
      %s203 = sphi 0, %s202
      %s217 = sphi 0, %s203
      %s221 = sphi 0, %s221
      %s223 = sphi 0, %s221
      %s224 = sphi 0, %s223
      %s238 = sphi 0, %s224
      %s242 = sphi 0, %s242
      %s244 = sphi 0, %s242
      %s245 = sphi 0, %s244
      %s259 = sphi 0, %s245
      %s263 = sphi 0, %s263
      %s265 = sphi 0, %s263
      %s266 = sphi 0, %s265
      %s280 = sphi 0, %s266
      %s284 = sphi 0, %s284
      %s286 = sphi 0, %s284
      %s287 = sphi 0, %s286
      %s301 = sphi 0, %s287
      %s305 = sphi 0, %s305
      %s307 = sphi 0, %s305
      %s308 = sphi 0, %s307
      %s322 = sphi 0, %s308
      %s326 = sphi 0, %s326
      %s328 = sphi 0, %s326
      %s329 = sphi 0, %s328
      %s343 = sphi 0, %s329
      %s347 = sphi 0, %s347
      %s349 = sphi 0, %s347
      %s350 = sphi 0, %s349
      %s364 = sphi 0, %s350
      %s368 = sphi 0, %s368
      %s370 = sphi 0, %s368
      %s371 = sphi 0, %s370
      %s385 = sphi 0, %s371
      %s389 = sphi 0, %s389
      %s391 = sphi 0, %s389
      %s392 = sphi 0, %s391
      %s406 = sphi 0, %s392
      %s410 = sphi 0, %s410
      %s412 = sphi 0, %s410
      %s413 = sphi 0, %s412
      %s427 = sphi 0, %s413
      %s431 = sphi 0, %s431
      %s433 = sphi 0, %s431
      %s434 = sphi 0, %s433
      %s448 = sphi 0, %s434
      %s452 = sphi 0, %s452
      %s454 = sphi 0, %s452
      %s455 = sphi 0, %s454
      %s469 = sphi 0, %s455
    $region4: #{tpu_custom_call.1} parent=1 // loop_header_branch
      %38 = sbr.rel (%p36) target = $region8
    $region5: #{tpu_custom_call.1} parent=1 // loop_body
      %s40 = ssub.s32 %s35, 1
      %s41 = ssub.s32 %s35, 2
      %s42 = sadd.s32 %s35, 1
      %s43 = ssub.s32 %s35, %s42
      %p44 = scmp.eq.s32.totalorder %s43, 0
      %s46 = sadd.s32 %s45, 1
      %s47 = scalar_select %p44, %s45, %s46
      %p50 = pneg %p44
      %p51 = scmp.eq.s32.totalorder %s35, 2
      %p52 = por %p50, %p51
      %p53 = scmp.ne.s32.totalorder %s45, %s48
      %p54 = scmp.eq.s32.totalorder %s35, 0
      %p55 = por %p53, %p54
      %p56 = scmp.ne.s32.totalorder %s45, %s48
      %p57 = scmp.eq.s32.totalorder %s40, 2
      %p58 = por %p56, %p57
      %p59 = scmp.ne.s32.totalorder %s48, %s49
      %p60 = scmp.eq.s32.totalorder %s40, 0
      %p61 = por %p59, %p60
      %p62 = scmp.ne.s32.totalorder %s48, %s49
      %p63 = scmp.eq.s32.totalorder %s41, 2
      %p64 = por %p62, %p63
      %p66 = scmp.ne.s32.totalorder %s49, %s65
      %p67 = scmp.eq.s32.totalorder %s41, 0
      %p68 = por %p66, %p67
      %s70 = sadd.s32 %s69, 1
      %p73 = scmp.eq.s32.totalorder %s35, 2
      %p74 = scmp.ne.s32.totalorder %s69, %s71
      %p75 = scmp.eq.s32.totalorder %s35, 0
      %p76 = por %p74, %p75
      %p77 = scmp.ne.s32.totalorder %s69, %s71
      %p78 = scmp.eq.s32.totalorder %s40, 2
      %p79 = por %p77, %p78
      %p80 = scmp.ne.s32.totalorder %s71, %s72
      %p81 = scmp.eq.s32.totalorder %s40, 0
      %p82 = por %p80, %p81
      %p83 = scmp.ne.s32.totalorder %s71, %s72
      %p84 = scmp.eq.s32.totalorder %s41, 2
      %p85 = por %p83, %p84
      %p87 = scmp.ne.s32.totalorder %s72, %s86
      %p88 = scmp.eq.s32.totalorder %s41, 0
      %p89 = por %p87, %p88
      %s91 = sadd.s32 %s90, 1
      %p94 = scmp.eq.s32.totalorder %s35, 2
      %p95 = scmp.ne.s32.totalorder %s90, %s92
      %p96 = scmp.eq.s32.totalorder %s35, 0
      %p97 = por %p95, %p96
      %p98 = scmp.ne.s32.totalorder %s90, %s92
      %p99 = scmp.eq.s32.totalorder %s40, 2
      %p100 = por %p98, %p99
      %p101 = scmp.ne.s32.totalorder %s92, %s93
      %p102 = scmp.eq.s32.totalorder %s40, 0
      %p103 = por %p101, %p102
      %p104 = scmp.ne.s32.totalorder %s92, %s93
      %p105 = scmp.eq.s32.totalorder %s41, 2
      %p106 = por %p104, %p105
      %p108 = scmp.ne.s32.totalorder %s93, %s107
      %p109 = scmp.eq.s32.totalorder %s41, 0
      %p110 = por %p108, %p109
      %s111 = ssub.s32 %s35, %s42
      %p112 = scmp.eq.s32.totalorder %s111, 0
      %s114 = sadd.s32 %s113, 1
      %s115 = scalar_select %p112, %s113, %s114
      %p118 = pneg %p112
      %p119 = scmp.eq.s32.totalorder %s35, 2
      %p120 = por %p118, %p119
      %p121 = scmp.ne.s32.totalorder %s113, %s116
      %p122 = scmp.eq.s32.totalorder %s35, 0
      %p123 = por %p121, %p122
      %p124 = scmp.ne.s32.totalorder %s113, %s116
      %p125 = scmp.eq.s32.totalorder %s40, 2
      %p126 = por %p124, %p125
      %p127 = scmp.ne.s32.totalorder %s116, %s117
      %p128 = scmp.eq.s32.totalorder %s40, 0
      %p129 = por %p127, %p128
      %p130 = scmp.ne.s32.totalorder %s116, %s117
      %p131 = scmp.eq.s32.totalorder %s41, 2
      %p132 = por %p130, %p131
      %p134 = scmp.ne.s32.totalorder %s117, %s133
      %p135 = scmp.eq.s32.totalorder %s41, 0
      %p136 = por %p134, %p135
      %s138 = sadd.s32 %s137, 1
      %p141 = scmp.eq.s32.totalorder %s35, 2
      %p142 = scmp.ne.s32.totalorder %s137, %s139
      %p143 = scmp.eq.s32.totalorder %s35, 0
      %p144 = por %p142, %p143
      %p145 = scmp.ne.s32.totalorder %s137, %s139
      %p146 = scmp.eq.s32.totalorder %s40, 2
      %p147 = por %p145, %p146
      %p148 = scmp.ne.s32.totalorder %s139, %s140
      %p149 = scmp.eq.s32.totalorder %s40, 0
      %p150 = por %p148, %p149
      %p151 = scmp.ne.s32.totalorder %s139, %s140
      %p152 = scmp.eq.s32.totalorder %s41, 2
      %p153 = por %p151, %p152
      %p155 = scmp.ne.s32.totalorder %s140, %s154
      %p156 = scmp.eq.s32.totalorder %s41, 0
      %p157 = por %p155, %p156
      %s159 = sadd.s32 %s158, 1
      %p162 = scmp.eq.s32.totalorder %s35, 2
      %p163 = scmp.ne.s32.totalorder %s158, %s160
      %p164 = scmp.eq.s32.totalorder %s35, 0
      %p165 = por %p163, %p164
      %p166 = scmp.ne.s32.totalorder %s158, %s160
      %p167 = scmp.eq.s32.totalorder %s40, 2
      %p168 = por %p166, %p167
      %p169 = scmp.ne.s32.totalorder %s160, %s161
      %p170 = scmp.eq.s32.totalorder %s40, 0
      %p171 = por %p169, %p170
      %p172 = scmp.ne.s32.totalorder %s160, %s161
      %p173 = scmp.eq.s32.totalorder %s41, 2
      %p174 = por %p172, %p173
      %p176 = scmp.ne.s32.totalorder %s161, %s175
      %p177 = scmp.eq.s32.totalorder %s41, 0
      %p178 = por %p176, %p177
      %s180 = sadd.s32 %s179, 1
      %p183 = scmp.eq.s32.totalorder %s35, 2
      %p184 = scmp.ne.s32.totalorder %s179, %s181
      %p185 = scmp.eq.s32.totalorder %s35, 0
      %p186 = por %p184, %p185
      %p187 = scmp.ne.s32.totalorder %s179, %s181
      %p188 = scmp.eq.s32.totalorder %s40, 2
      %p189 = por %p187, %p188
      %p190 = scmp.ne.s32.totalorder %s181, %s182
      %p191 = scmp.eq.s32.totalorder %s40, 0
      %p192 = por %p190, %p191
      %p193 = scmp.ne.s32.totalorder %s181, %s182
      %p194 = scmp.eq.s32.totalorder %s41, 2
      %p195 = por %p193, %p194
      %p197 = scmp.ne.s32.totalorder %s182, %s196
      %p198 = scmp.eq.s32.totalorder %s41, 0
      %p199 = por %p197, %p198
      %s201 = sadd.s32 %s200, 1
      %p204 = scmp.eq.s32.totalorder %s35, 2
      %p205 = scmp.ne.s32.totalorder %s200, %s202
      %p206 = scmp.eq.s32.totalorder %s35, 0
      %p207 = por %p205, %p206
      %p208 = scmp.ne.s32.totalorder %s200, %s202
      %p209 = scmp.eq.s32.totalorder %s40, 2
      %p210 = por %p208, %p209
      %p211 = scmp.ne.s32.totalorder %s202, %s203
      %p212 = scmp.eq.s32.totalorder %s40, 0
      %p213 = por %p211, %p212
      %p214 = scmp.ne.s32.totalorder %s202, %s203
      %p215 = scmp.eq.s32.totalorder %s41, 2
      %p216 = por %p214, %p215
      %p218 = scmp.ne.s32.totalorder %s203, %s217
      %p219 = scmp.eq.s32.totalorder %s41, 0
      %p220 = por %p218, %p219
      %s222 = sadd.s32 %s221, 1
      %p225 = scmp.eq.s32.totalorder %s35, 2
      %p226 = scmp.ne.s32.totalorder %s221, %s223
      %p227 = scmp.eq.s32.totalorder %s35, 0
      %p228 = por %p226, %p227
      %p229 = scmp.ne.s32.totalorder %s221, %s223
      %p230 = scmp.eq.s32.totalorder %s40, 2
      %p231 = por %p229, %p230
      %p232 = scmp.ne.s32.totalorder %s223, %s224
      %p233 = scmp.eq.s32.totalorder %s40, 0
      %p234 = por %p232, %p233
      %p235 = scmp.ne.s32.totalorder %s223, %s224
      %p236 = scmp.eq.s32.totalorder %s41, 2
      %p237 = por %p235, %p236
      %p239 = scmp.ne.s32.totalorder %s224, %s238
      %p240 = scmp.eq.s32.totalorder %s41, 0
      %p241 = por %p239, %p240
      %s243 = sadd.s32 %s242, 1
      %p246 = scmp.eq.s32.totalorder %s35, 2
      %p247 = scmp.ne.s32.totalorder %s242, %s244
      %p248 = scmp.eq.s32.totalorder %s35, 0
      %p249 = por %p247, %p248
      %p250 = scmp.ne.s32.totalorder %s242, %s244
      %p251 = scmp.eq.s32.totalorder %s40, 2
      %p252 = por %p250, %p251
      %p253 = scmp.ne.s32.totalorder %s244, %s245
      %p254 = scmp.eq.s32.totalorder %s40, 0
      %p255 = por %p253, %p254
      %p256 = scmp.ne.s32.totalorder %s244, %s245
      %p257 = scmp.eq.s32.totalorder %s41, 2
      %p258 = por %p256, %p257
      %p260 = scmp.ne.s32.totalorder %s245, %s259
      %p261 = scmp.eq.s32.totalorder %s41, 0
      %p262 = por %p260, %p261
      %s264 = sadd.s32 %s263, 1
      %p267 = scmp.eq.s32.totalorder %s35, 2
      %p268 = scmp.ne.s32.totalorder %s263, %s265
      %p269 = scmp.eq.s32.totalorder %s35, 0
      %p270 = por %p268, %p269
      %p271 = scmp.ne.s32.totalorder %s263, %s265
      %p272 = scmp.eq.s32.totalorder %s40, 2
      %p273 = por %p271, %p272
      %p274 = scmp.ne.s32.totalorder %s265, %s266
      %p275 = scmp.eq.s32.totalorder %s40, 0
      %p276 = por %p274, %p275
      %p277 = scmp.ne.s32.totalorder %s265, %s266
      %p278 = scmp.eq.s32.totalorder %s41, 2
      %p279 = por %p277, %p278
      %p281 = scmp.ne.s32.totalorder %s266, %s280
      %p282 = scmp.eq.s32.totalorder %s41, 0
      %p283 = por %p281, %p282
      %s285 = sadd.s32 %s284, 1
      %p288 = scmp.eq.s32.totalorder %s35, 2
      %p289 = scmp.ne.s32.totalorder %s284, %s286
      %p290 = scmp.eq.s32.totalorder %s35, 0
      %p291 = por %p289, %p290
      %p292 = scmp.ne.s32.totalorder %s284, %s286
      %p293 = scmp.eq.s32.totalorder %s40, 2
      %p294 = por %p292, %p293
      %p295 = scmp.ne.s32.totalorder %s286, %s287
      %p296 = scmp.eq.s32.totalorder %s40, 0
      %p297 = por %p295, %p296
      %p298 = scmp.ne.s32.totalorder %s286, %s287
      %p299 = scmp.eq.s32.totalorder %s41, 2
      %p300 = por %p298, %p299
      %p302 = scmp.ne.s32.totalorder %s287, %s301
      %p303 = scmp.eq.s32.totalorder %s41, 0
      %p304 = por %p302, %p303
      %s306 = sadd.s32 %s305, 1
      %p309 = scmp.eq.s32.totalorder %s35, 2
      %p310 = scmp.ne.s32.totalorder %s305, %s307
      %p311 = scmp.eq.s32.totalorder %s35, 0
      %p312 = por %p310, %p311
      %p313 = scmp.ne.s32.totalorder %s305, %s307
      %p314 = scmp.eq.s32.totalorder %s40, 2
      %p315 = por %p313, %p314
      %p316 = scmp.ne.s32.totalorder %s307, %s308
      %p317 = scmp.eq.s32.totalorder %s40, 0
      %p318 = por %p316, %p317
      %p319 = scmp.ne.s32.totalorder %s307, %s308
      %p320 = scmp.eq.s32.totalorder %s41, 2
      %p321 = por %p319, %p320
      %p323 = scmp.ne.s32.totalorder %s308, %s322
      %p324 = scmp.eq.s32.totalorder %s41, 0
      %p325 = por %p323, %p324
      %s327 = sadd.s32 %s326, 1
      %p330 = scmp.eq.s32.totalorder %s35, 2
      %p331 = scmp.ne.s32.totalorder %s326, %s328
      %p332 = scmp.eq.s32.totalorder %s35, 0
      %p333 = por %p331, %p332
      %p334 = scmp.ne.s32.totalorder %s326, %s328
      %p335 = scmp.eq.s32.totalorder %s40, 2
      %p336 = por %p334, %p335
      %p337 = scmp.ne.s32.totalorder %s328, %s329
      %p338 = scmp.eq.s32.totalorder %s40, 0
      %p339 = por %p337, %p338
      %p340 = scmp.ne.s32.totalorder %s328, %s329
      %p341 = scmp.eq.s32.totalorder %s41, 2
      %p342 = por %p340, %p341
      %p344 = scmp.ne.s32.totalorder %s329, %s343
      %p345 = scmp.eq.s32.totalorder %s41, 0
      %p346 = por %p344, %p345
      %s348 = sadd.s32 %s347, 1
      %p351 = scmp.eq.s32.totalorder %s35, 2
      %p352 = scmp.ne.s32.totalorder %s347, %s349
      %p353 = scmp.eq.s32.totalorder %s35, 0
      %p354 = por %p352, %p353
      %p355 = scmp.ne.s32.totalorder %s347, %s349
      %p356 = scmp.eq.s32.totalorder %s40, 2
      %p357 = por %p355, %p356
      %p358 = scmp.ne.s32.totalorder %s349, %s350
      %p359 = scmp.eq.s32.totalorder %s40, 0
      %p360 = por %p358, %p359
      %p361 = scmp.ne.s32.totalorder %s349, %s350
      %p362 = scmp.eq.s32.totalorder %s41, 2
      %p363 = por %p361, %p362
      %p365 = scmp.ne.s32.totalorder %s350, %s364
      %p366 = scmp.eq.s32.totalorder %s41, 0
      %p367 = por %p365, %p366
      %s369 = sadd.s32 %s368, 1
      %p372 = scmp.eq.s32.totalorder %s35, 2
      %p373 = scmp.ne.s32.totalorder %s368, %s370
      %p374 = scmp.eq.s32.totalorder %s35, 0
      %p375 = por %p373, %p374
      %p376 = scmp.ne.s32.totalorder %s368, %s370
      %p377 = scmp.eq.s32.totalorder %s40, 2
      %p378 = por %p376, %p377
      %p379 = scmp.ne.s32.totalorder %s370, %s371
      %p380 = scmp.eq.s32.totalorder %s40, 0
      %p381 = por %p379, %p380
      %p382 = scmp.ne.s32.totalorder %s370, %s371
      %p383 = scmp.eq.s32.totalorder %s41, 2
      %p384 = por %p382, %p383
      %p386 = scmp.ne.s32.totalorder %s371, %s385
      %p387 = scmp.eq.s32.totalorder %s41, 0
      %p388 = por %p386, %p387
      %s390 = sadd.s32 %s389, 1
      %p393 = scmp.eq.s32.totalorder %s35, 2
      %p394 = scmp.ne.s32.totalorder %s389, %s391
      %p395 = scmp.eq.s32.totalorder %s35, 0
      %p396 = por %p394, %p395
      %p397 = scmp.ne.s32.totalorder %s389, %s391
      %p398 = scmp.eq.s32.totalorder %s40, 2
      %p399 = por %p397, %p398
      %p400 = scmp.ne.s32.totalorder %s391, %s392
      %p401 = scmp.eq.s32.totalorder %s40, 0
      %p402 = por %p400, %p401
      %p403 = scmp.ne.s32.totalorder %s391, %s392
      %p404 = scmp.eq.s32.totalorder %s41, 2
      %p405 = por %p403, %p404
      %p407 = scmp.ne.s32.totalorder %s392, %s406
      %p408 = scmp.eq.s32.totalorder %s41, 0
      %p409 = por %p407, %p408
      %s411 = sadd.s32 %s410, 1
      %p414 = scmp.eq.s32.totalorder %s35, 2
      %p415 = scmp.ne.s32.totalorder %s410, %s412
      %p416 = scmp.eq.s32.totalorder %s35, 0
      %p417 = por %p415, %p416
      %p418 = scmp.ne.s32.totalorder %s410, %s412
      %p419 = scmp.eq.s32.totalorder %s40, 2
      %p420 = por %p418, %p419
      %p421 = scmp.ne.s32.totalorder %s412, %s413
      %p422 = scmp.eq.s32.totalorder %s40, 0
      %p423 = por %p421, %p422
      %p424 = scmp.ne.s32.totalorder %s412, %s413
      %p425 = scmp.eq.s32.totalorder %s41, 2
      %p426 = por %p424, %p425
      %p428 = scmp.ne.s32.totalorder %s413, %s427
      %p429 = scmp.eq.s32.totalorder %s41, 0
      %p430 = por %p428, %p429
      %s432 = sadd.s32 %s431, 1
      %p435 = scmp.eq.s32.totalorder %s35, 2
      %p436 = scmp.ne.s32.totalorder %s431, %s433
      %p437 = scmp.eq.s32.totalorder %s35, 0
      %p438 = por %p436, %p437
      %p439 = scmp.ne.s32.totalorder %s431, %s433
      %p440 = scmp.eq.s32.totalorder %s40, 2
      %p441 = por %p439, %p440
      %p442 = scmp.ne.s32.totalorder %s433, %s434
      %p443 = scmp.eq.s32.totalorder %s40, 0
      %p444 = por %p442, %p443
      %p445 = scmp.ne.s32.totalorder %s433, %s434
      %p446 = scmp.eq.s32.totalorder %s41, 2
      %p447 = por %p445, %p446
      %p449 = scmp.ne.s32.totalorder %s434, %s448
      %p450 = scmp.eq.s32.totalorder %s41, 0
      %p451 = por %p449, %p450
      %s453 = sadd.s32 %s452, 1
      %p456 = scmp.eq.s32.totalorder %s35, 2
      %p457 = scmp.ne.s32.totalorder %s452, %s454
      %p458 = scmp.eq.s32.totalorder %s35, 0
      %p459 = por %p457, %p458
      %p460 = scmp.ne.s32.totalorder %s452, %s454
      %p461 = scmp.eq.s32.totalorder %s40, 2
      %p462 = por %p460, %p461
      %p463 = scmp.ne.s32.totalorder %s454, %s455
      %p464 = scmp.eq.s32.totalorder %s40, 0
      %p465 = por %p463, %p464
      %p466 = scmp.ne.s32.totalorder %s454, %s455
      %p467 = scmp.eq.s32.totalorder %s41, 2
      %p468 = por %p466, %p467
      %p470 = scmp.ne.s32.totalorder %s455, %s469
      %p471 = scmp.eq.s32.totalorder %s41, 0
      %p472 = por %p470, %p471
      %p473 = scmp.le.s32.totalorder 1, %s35
      %p474 = scmp.lt.s32.totalorder %s35, 4
      %p475 = pnand %p473, %p474
      %p476 = pneg %p475
      // Predicated region
      $region9: #{tpu_custom_call.1} parent=5 // pred_check
        _
      $region10: #{tpu_custom_call.1} parent=5 // pred_check_branch
        %478 = sbr.rel (%p475) target = $region12
      $region11: #{tpu_custom_call.1} parent=5 // pred_region
        %s479 = ssub.s32 %s35, 1
        // Predicated region
        $region13: #{tpu_custom_call.1} parent=11 // pred_check
          %p480 = pneg %p82
        $region14: #{tpu_custom_call.1} parent=11 // pred_check_branch
          %482 = sbr.rel (%p480) target = $region16
        $region15: #{tpu_custom_call.1} parent=11 // pred_region
          _
        $region16: #{tpu_custom_call.1} parent=11 // pred_fallthru
          _
        // Predicated region
        $region17: #{tpu_custom_call.1} parent=11 // pred_check
          %p483 = pneg %p103
        $region18: #{tpu_custom_call.1} parent=11 // pred_check_branch
          %485 = sbr.rel (%p483) target = $region20
        $region19: #{tpu_custom_call.1} parent=11 // pred_region
          _
        $region20: #{tpu_custom_call.1} parent=11 // pred_fallthru
          _
        // Predicated region
        $region21: #{tpu_custom_call.1} parent=11 // pred_check
          %p486 = pneg %p150
        $region22: #{tpu_custom_call.1} parent=11 // pred_check_branch
          %488 = sbr.rel (%p486) target = $region24
        $region23: #{tpu_custom_call.1} parent=11 // pred_region
          %s490 = ssub.s32 512, 512
          %491 = vsyncadd [#allocation9], %s490
          %s492 = sshll.u32 [#allocation8], 4
          %s493 = int_to_ptr.vmem [resolvable:$true] %s492
          %498 = dma.hbm_to_vmem [thread:$0]  %s4, 512, %s493, [#allocation9], 64, 64, 4
        $region24: #{tpu_custom_call.1} parent=11 // pred_fallthru
          _
        // Predicated region
        $region25: #{tpu_custom_call.1} parent=11 // pred_check
          %p499 = pneg %p171
        $region26: #{tpu_custom_call.1} parent=11 // pred_check_branch
          %501 = sbr.rel (%p499) target = $region28
        $region27: #{tpu_custom_call.1} parent=11 // pred_region
          %s503 = ssub.s32 512, 512
          %504 = vsyncadd [#allocation9], %s503
          %s505 = sshll.u32 [#allocation10], 4
          %s506 = int_to_ptr.vmem [resolvable:$true] %s505
          %511 = dma.hbm_to_vmem [thread:$0]  %s5, 512, %s506, [#allocation9], 64, 64, 4
        $region28: #{tpu_custom_call.1} parent=11 // pred_fallthru
          _
        // Predicated region
        $region29: #{tpu_custom_call.1} parent=11 // pred_check
          %p512 = pneg %p192
        $region30: #{tpu_custom_call.1} parent=11 // pred_check_branch
          %514 = sbr.rel (%p512) target = $region32
        $region31: #{tpu_custom_call.1} parent=11 // pred_region
          %s516 = ssub.s32 16, 16
          %517 = vsyncadd [#allocation12], %s516
          %s519 = sshll.u32 [#allocation11], 4
          %s520 = int_to_ptr.vmem [resolvable:$true] %s519
          %522 = dma.hbm_to_vmem [thread:$0]  %s6, 16, %s520, [#allocation12]
        $region32: #{tpu_custom_call.1} parent=11 // pred_fallthru
          _
        // Predicated region
        $region33: #{tpu_custom_call.1} parent=11 // pred_check
          %p523 = pneg %p213
        $region34: #{tpu_custom_call.1} parent=11 // pred_check_branch
          %525 = sbr.rel (%p523) target = $region36
        $region35: #{tpu_custom_call.1} parent=11 // pred_region
          %s527 = ssub.s32 192, 192
          %528 = vsyncadd [#allocation12], %s527
          %s530 = sshll.u32 [#allocation13], 4
          %s531 = int_to_ptr.vmem [resolvable:$true] %s530
          %533 = dma.hbm_to_vmem [thread:$0]  %s7, 192, %s531, [#allocation12]
        $region36: #{tpu_custom_call.1} parent=11 // pred_fallthru
          _
        // Predicated region
        $region37: #{tpu_custom_call.1} parent=11 // pred_check
          %p534 = pneg %p234
        $region38: #{tpu_custom_call.1} parent=11 // pred_check_branch
          %536 = sbr.rel (%p534) target = $region40
        $region39: #{tpu_custom_call.1} parent=11 // pred_region
          _
        $region40: #{tpu_custom_call.1} parent=11 // pred_fallthru
          _
        // Predicated region
        $region41: #{tpu_custom_call.1} parent=11 // pred_check
          %p537 = pneg %p255
        $region42: #{tpu_custom_call.1} parent=11 // pred_check_branch
          %539 = sbr.rel (%p537) target = $region44
        $region43: #{tpu_custom_call.1} parent=11 // pred_region
          _
        $region44: #{tpu_custom_call.1} parent=11 // pred_fallthru
          _
        // Predicated region
        $region45: #{tpu_custom_call.1} parent=11 // pred_check
          %p540 = pneg %p276
        $region46: #{tpu_custom_call.1} parent=11 // pred_check_branch
          %542 = sbr.rel (%p540) target = $region48
        $region47: #{tpu_custom_call.1} parent=11 // pred_region
          _
        $region48: #{tpu_custom_call.1} parent=11 // pred_fallthru
          _
        // Predicated region
        $region49: #{tpu_custom_call.1} parent=11 // pred_check
          %p543 = pneg %p297
        $region50: #{tpu_custom_call.1} parent=11 // pred_check_branch
          %545 = sbr.rel (%p543) target = $region52
        $region51: #{tpu_custom_call.1} parent=11 // pred_region
          _
        $region52: #{tpu_custom_call.1} parent=11 // pred_fallthru
          _
        // Predicated region
        $region53: #{tpu_custom_call.1} parent=11 // pred_check
          %p546 = pneg %p318
        $region54: #{tpu_custom_call.1} parent=11 // pred_check_branch
          %548 = sbr.rel (%p546) target = $region56
        $region55: #{tpu_custom_call.1} parent=11 // pred_region
          %s550 = ssub.s32 2048, 2048
          %551 = vsyncadd [#allocation15], %s550
          %s552 = sshll.u32 [#allocation14], 4
          %s553 = int_to_ptr.vmem [resolvable:$true] %s552
          %558 = dma.hbm_to_vmem [thread:$0]  %s12, 2048, %s553, [#allocation15], 256, 256, 16
        $region56: #{tpu_custom_call.1} parent=11 // pred_fallthru
          _
        // Predicated region
        $region57: #{tpu_custom_call.1} parent=11 // pred_check
          %p559 = pneg %p339
        $region58: #{tpu_custom_call.1} parent=11 // pred_check_branch
          %561 = sbr.rel (%p559) target = $region60
        $region59: #{tpu_custom_call.1} parent=11 // pred_region
          _
        $region60: #{tpu_custom_call.1} parent=11 // pred_fallthru
          _
        // Predicated region
        $region61: #{tpu_custom_call.1} parent=11 // pred_check
          %p562 = pneg %p360
        $region62: #{tpu_custom_call.1} parent=11 // pred_check_branch
          %564 = sbr.rel (%p562) target = $region64
        $region63: #{tpu_custom_call.1} parent=11 // pred_region
          _
        $region64: #{tpu_custom_call.1} parent=11 // pred_fallthru
          _
        // Predicated region
        $region65: #{tpu_custom_call.1} parent=11 // pred_check
          %p565 = pneg %p381
        $region66: #{tpu_custom_call.1} parent=11 // pred_check_branch
          %567 = sbr.rel (%p565) target = $region68
        $region67: #{tpu_custom_call.1} parent=11 // pred_region
          _
        $region68: #{tpu_custom_call.1} parent=11 // pred_fallthru
          _
        // Predicated region
        $region69: #{tpu_custom_call.1} parent=11 // pred_check
          %p568 = pneg %p402
        $region70: #{tpu_custom_call.1} parent=11 // pred_check_branch
          %570 = sbr.rel (%p568) target = $region72
        $region71: #{tpu_custom_call.1} parent=11 // pred_region
          _
        $region72: #{tpu_custom_call.1} parent=11 // pred_fallthru
          _
        // Predicated region
        $region73: #{tpu_custom_call.1} parent=11 // pred_check
          %p571 = pneg %p423
        $region74: #{tpu_custom_call.1} parent=11 // pred_check_branch
          %573 = sbr.rel (%p571) target = $region76
        $region75: #{tpu_custom_call.1} parent=11 // pred_region
          _
        $region76: #{tpu_custom_call.1} parent=11 // pred_fallthru
          _
      $region12: #{tpu_custom_call.1} parent=5 // pred_fallthru
        _
      %p574 = scmp.lt.s32.totalorder %s35, 3
      // Predicated region
      $region77: #{tpu_custom_call.1} parent=5 // pred_check
        %p575 = pneg %p574
      $region78: #{tpu_custom_call.1} parent=5 // pred_check_branch
        %577 = sbr.rel (%p575) target = $region80
      $region79: #{tpu_custom_call.1} parent=5 // pred_region
        // Predicated region
        $region81: #{tpu_custom_call.1} parent=79 // pred_check
          %p578 = pneg %p55
        $region82: #{tpu_custom_call.1} parent=79 // pred_check_branch
          %580 = sbr.rel (%p578) target = $region84
        $region83: #{tpu_custom_call.1} parent=79 // pred_region
          %s581 = smul.u32 16, %s35
          %p582 = scmp.lt.s32.totalorder %s581, 47
          %s583 = scalar_select %p582, %s581, 47
          %s584 = smul.addr %s583, 4
          %s585 = scalar_lea.vmem %s0, %s584
          %s586 = smul.u32 16, %s35
        $region84: #{tpu_custom_call.1} parent=79 // pred_fallthru
          _
        // Predicated region
        $region85: #{tpu_custom_call.1} parent=79 // pred_check
          %p587 = pneg %p123
        $region86: #{tpu_custom_call.1} parent=79 // pred_check_branch
          %589 = sbr.rel (%p587) target = $region88
        $region87: #{tpu_custom_call.1} parent=79 // pred_region
          %s590 = sand.u32 %s113, 1
          %s591 = scalar_lea.sflag [#allocation6], %s590
          %s592 = sand.u32 %s113, 1
          %s593 = smul.addr %s592, 192
          %s594 = scalar_lea.vmem [#allocation5], %s593
          %s596 = ssub.s32 3072, 3072
          %597 = vsyncadd %s591, %s596
          %s598 = smul.addr %s35, 64
          %s599 = scalar_lea.hbm %s3, %s598
          %s600 = sshll.u32 %s594, 4
          %s601 = int_to_ptr.vmem [resolvable:$true] %s600
          %606 = dma.hbm_to_vmem [thread:$0]  %s599, 3072, %s601, %s591, 192, 64, 4
        $region88: #{tpu_custom_call.1} parent=79 // pred_fallthru
          _
      $region80: #{tpu_custom_call.1} parent=5 // pred_fallthru
        _
      %p607 = scmp.le.s32.totalorder 1, %s35
      %p608 = scmp.lt.s32.totalorder %s35, 4
      %p609 = pnand %p607, %p608
      %p610 = pneg %p609
      // Predicated region
      $region89: #{tpu_custom_call.1} parent=5 // pred_check
        _
      $region90: #{tpu_custom_call.1} parent=5 // pred_check_branch
        %612 = sbr.rel (%p609) target = $region92
      $region91: #{tpu_custom_call.1} parent=5 // pred_region
        %s613 = ssub.s32 %s35, 1
        %s614 = sand.u32 %s116, 1
        %s615 = scalar_lea.sflag [#allocation6], %s614
        %s616 = sand.u32 %s116, 1
        %s617 = smul.addr %s616, 192
        %s618 = scalar_lea.vmem [#allocation5], %s617
        // Predicated region
        $region93: #{tpu_custom_call.1} parent=91 // pred_check
          %p619 = pneg %p129
        $region94: #{tpu_custom_call.1} parent=91 // pred_check_branch
          %621 = sbr.rel (%p619) target = $region96
        $region95: #{tpu_custom_call.1} parent=91 // pred_region
          %622 = dma.done %s615, 3072
        $region96: #{tpu_custom_call.1} parent=91 // pred_fallthru
          _
        // Predicated region
        $region97: #{tpu_custom_call.1} parent=91 // pred_check
          %p623 = pneg %p150
        $region98: #{tpu_custom_call.1} parent=91 // pred_check_branch
          %625 = sbr.rel (%p623) target = $region100
        $region99: #{tpu_custom_call.1} parent=91 // pred_region
          %626 = dma.done [#allocation9], 512
        $region100: #{tpu_custom_call.1} parent=91 // pred_fallthru
          _
        // Predicated region
        $region101: #{tpu_custom_call.1} parent=91 // pred_check
          %p627 = pneg %p171
        $region102: #{tpu_custom_call.1} parent=91 // pred_check_branch
          %629 = sbr.rel (%p627) target = $region104
        $region103: #{tpu_custom_call.1} parent=91 // pred_region
          %630 = dma.done [#allocation9], 512
        $region104: #{tpu_custom_call.1} parent=91 // pred_fallthru
          _
        // Predicated region
        $region105: #{tpu_custom_call.1} parent=91 // pred_check
          %p631 = pneg %p192
        $region106: #{tpu_custom_call.1} parent=91 // pred_check_branch
          %633 = sbr.rel (%p631) target = $region108
        $region107: #{tpu_custom_call.1} parent=91 // pred_region
          %634 = dma.done [#allocation12], 16
        $region108: #{tpu_custom_call.1} parent=91 // pred_fallthru
          _
        // Predicated region
        $region109: #{tpu_custom_call.1} parent=91 // pred_check
          %p635 = pneg %p213
        $region110: #{tpu_custom_call.1} parent=91 // pred_check_branch
          %637 = sbr.rel (%p635) target = $region112
        $region111: #{tpu_custom_call.1} parent=91 // pred_region
          %638 = dma.done [#allocation12], 192
        $region112: #{tpu_custom_call.1} parent=91 // pred_fallthru
          _
        // Predicated region
        $region113: #{tpu_custom_call.1} parent=91 // pred_check
          %p639 = pneg %p318
        $region114: #{tpu_custom_call.1} parent=91 // pred_check_branch
          %641 = sbr.rel (%p639) target = $region116
        $region115: #{tpu_custom_call.1} parent=91 // pred_region
          %642 = dma.done [#allocation15], 2048
        $region116: #{tpu_custom_call.1} parent=91 // pred_fallthru
          _
        %s643 = smul.u32 16, %s40
        %p644 = scmp.lt.s32.totalorder %s643, 47
        %s645 = scalar_select %p644, %s643, 47
        %s646 = smul.addr %s645, 4
        %s647 = scalar_lea.vmem %s0, %s646
        %p648 = pneg %p61
        %p649 = pneg %p58
        %p650 = pneg %p82
        %p651 = pneg %p79
        %p652 = pneg %p103
        %p653 = pneg %p100
        %s654 = sand.u32 %s116, 1
        %s655 = scalar_lea.sflag [#allocation6], %s654
        %s656 = sand.u32 %s116, 1
        %s657 = smul.addr %s656, 192
        %s658 = scalar_lea.vmem [#allocation5], %s657
        %p659 = pneg %p129
        %p660 = pneg %p126
        %p661 = pneg %p150
        %p662 = pneg %p147
        %p663 = pneg %p171
        %p664 = pneg %p168
        %p665 = pneg %p192
        %p666 = pneg %p189
        %p667 = pneg %p213
        %p668 = pneg %p210
        %p669 = pneg %p234
        %p670 = pneg %p231
        %p671 = pneg %p255
        %p672 = pneg %p252
        %p673 = pneg %p276
        %p674 = pneg %p273
        %p675 = pneg %p297
        %p676 = pneg %p294
        %p677 = pneg %p318
        %p678 = pneg %p315
        %p679 = pneg %p339
        %p680 = pneg %p336
        %p681 = pneg %p360
        %p682 = pneg %p357
        %p683 = pneg %p381
        %p684 = pneg %p378
        %p685 = pneg %p402
        %p686 = pneg %p399
        %p687 = pneg %p423
        %p688 = pneg %p420
        %p689 = pneg %p444
        %p690 = pneg %p441
        %p691 = pneg %p465
        %p692 = pneg %p462
        %s693 = smul.u32 16, %s40
        %p694 = scmp.lt.s32.totalorder %s693, 47
        %s695 = scalar_select %p694, %s693, 47
        %s696 = smul.addr %s695, 4
        %s697 = scalar_lea.vmem %s0, %s696
        %s698 = smul.u32 16, %s40
        %p700 = scmp.eq.s32.totalorder %s40, 0
        // Predicated region
        $region117: #{tpu_custom_call.1} parent=91 // pred_check
          %p701 = pneg %p700
        $region118: #{tpu_custom_call.1} parent=91 // pred_check_branch
          %703 = sbr.rel (%p701) target = $region120
        $region119: #{tpu_custom_call.1} parent=91 // pred_region
          %vm704 = vcmask 523264
          %705 = vst.msk [vmem:[#allocation3] sm:$0xff] %vm704, 0.0
          %706 = vst.msk [vmem:[#allocation3 + $0x8] sm:$0xff] %vm704, 0.0
          %707 = vst.msk [vmem:[#allocation3 + $0x10] sm:$0xff] %vm704, 0.0
          %708 = vst.msk [vmem:[#allocation3 + $0x18] sm:$0xff] %vm704, 0.0
          %709 = vst.msk [vmem:[#allocation3 + $0x20] sm:$0xff] %vm704, 0.0
          %710 = vst.msk [vmem:[#allocation3 + $0x28] sm:$0xff] %vm704, 0.0
          %711 = vst.msk [vmem:[#allocation3 + $0x30] sm:$0xff] %vm704, 0.0
          %712 = vst.msk [vmem:[#allocation3 + $0x38] sm:$0xff] %vm704, 0.0
          %713 = vst.msk [vmem:[#allocation3 + $0x40] sm:$0xff] %vm704, 0.0
          %714 = vst.msk [vmem:[#allocation3 + $0x48] sm:$0xff] %vm704, 0.0
          %715 = vst.msk [vmem:[#allocation3 + $0x50] sm:$0xff] %vm704, 0.0
          %716 = vst.msk [vmem:[#allocation3 + $0x58] sm:$0xff] %vm704, 0.0
          %717 = vst.msk [vmem:[#allocation3 + $0x60] sm:$0xff] %vm704, 0.0
          %718 = vst.msk [vmem:[#allocation3 + $0x68] sm:$0xff] %vm704, 0.0
          %719 = vst.msk [vmem:[#allocation3 + $0x70] sm:$0xff] %vm704, 0.0
          %720 = vst.msk [vmem:[#allocation3 + $0x78] sm:$0xff] %vm704, 0.0
          %721 = vst.msk [vmem:[#allocation3 + $0x80] sm:$0xff] %vm704, 0.0
          %722 = vst.msk [vmem:[#allocation3 + $0x88] sm:$0xff] %vm704, 0.0
          %723 = vst.msk [vmem:[#allocation3 + $0x90] sm:$0xff] %vm704, 0.0
          %724 = vst.msk [vmem:[#allocation3 + $0x98] sm:$0xff] %vm704, 0.0
          %725 = vst.msk [vmem:[#allocation3 + $0xa0] sm:$0xff] %vm704, 0.0
          %726 = vst.msk [vmem:[#allocation3 + $0xa8] sm:$0xff] %vm704, 0.0
          %727 = vst.msk [vmem:[#allocation3 + $0xb0] sm:$0xff] %vm704, 0.0
          %728 = vst.msk [vmem:[#allocation3 + $0xb8] sm:$0xff] %vm704, 0.0
          %729 = vst.msk [vmem:[#allocation3 + $0xc0] sm:$0xff] %vm704, 0.0
          %730 = vst.msk [vmem:[#allocation3 + $0xc8] sm:$0xff] %vm704, 0.0
          %731 = vst.msk [vmem:[#allocation3 + $0xd0] sm:$0xff] %vm704, 0.0
          %732 = vst.msk [vmem:[#allocation3 + $0xd8] sm:$0xff] %vm704, 0.0
          %733 = vst.msk [vmem:[#allocation3 + $0xe0] sm:$0xff] %vm704, 0.0
          %734 = vst.msk [vmem:[#allocation3 + $0xe8] sm:$0xff] %vm704, 0.0
          %735 = vst.msk [vmem:[#allocation3 + $0xf0] sm:$0xff] %vm704, 0.0
          %736 = vst.msk [vmem:[#allocation3 + $0xf8] sm:$0xff] %vm704, 0.0
          %737 = vst.msk [vmem:[#allocation3 + $0x100] sm:$0xff] %vm704, 0.0
          %738 = vst.msk [vmem:[#allocation3 + $0x108] sm:$0xff] %vm704, 0.0
          %739 = vst.msk [vmem:[#allocation3 + $0x110] sm:$0xff] %vm704, 0.0
          %740 = vst.msk [vmem:[#allocation3 + $0x118] sm:$0xff] %vm704, 0.0
          %741 = vst.msk [vmem:[#allocation3 + $0x120] sm:$0xff] %vm704, 0.0
          %742 = vst.msk [vmem:[#allocation3 + $0x128] sm:$0xff] %vm704, 0.0
          %743 = vst.msk [vmem:[#allocation3 + $0x130] sm:$0xff] %vm704, 0.0
          %744 = vst.msk [vmem:[#allocation3 + $0x138] sm:$0xff] %vm704, 0.0
          %745 = vst.msk [vmem:[#allocation3 + $0x140] sm:$0xff] %vm704, 0.0
          %746 = vst.msk [vmem:[#allocation3 + $0x148] sm:$0xff] %vm704, 0.0
          %747 = vst.msk [vmem:[#allocation3 + $0x150] sm:$0xff] %vm704, 0.0
          %748 = vst.msk [vmem:[#allocation3 + $0x158] sm:$0xff] %vm704, 0.0
          %749 = vst.msk [vmem:[#allocation3 + $0x160] sm:$0xff] %vm704, 0.0
          %750 = vst.msk [vmem:[#allocation3 + $0x168] sm:$0xff] %vm704, 0.0
          %751 = vst.msk [vmem:[#allocation3 + $0x170] sm:$0xff] %vm704, 0.0
          %752 = vst.msk [vmem:[#allocation3 + $0x178] sm:$0xff] %vm704, 0.0
        $region120: #{tpu_custom_call.1} parent=91 // pred_fallthru
          _
        %v753 = vld [vmem:[%s697] sm:$0xf]
        %v754 = vld [vmem:[%s697 + $0x4] sm:$0xf]
        %v755 = vld [vmem:[%s697 + $0x8] sm:$0xf]
        %v756 = vld [vmem:[%s697 + $0xc] sm:$0xf]
        %v757 = vld [vmem:[%s697 + $0x10] sm:$0xf]
        %v758 = vld [vmem:[%s697 + $0x14] sm:$0xf]
        %v759 = vld [vmem:[%s697 + $0x18] sm:$0xf]
        %v760 = vld [vmem:[%s697 + $0x1c] sm:$0xf]
        %v761 = vld [vmem:[%s697 + $0x20] sm:$0xf]
        %v762 = vld [vmem:[%s697 + $0x24] sm:$0xf]
        %v763 = vld [vmem:[%s697 + $0x28] sm:$0xf]
        %v764 = vld [vmem:[%s697 + $0x2c] sm:$0xf]
        %v765 = vld [vmem:[%s697 + $0x30] sm:$0xf]
        %v766 = vld [vmem:[%s697 + $0x34] sm:$0xf]
        %v767 = vld [vmem:[%s697 + $0x38] sm:$0xf]
        %v768 = vld [vmem:[%s697 + $0x3c] sm:$0xf]
        %v769 = vld [vmem:[%s1] sm:$0xf]
        %v770 = vld [vmem:[%s1 + $0x4] sm:$0xf]
        %v771 = vld [vmem:[%s1 + $0x8] sm:$0xf]
        %v772 = vld [vmem:[%s1 + $0xc] sm:$0xf]
        %v773 = vld [vmem:[%s1 + $0x10] sm:$0xf]
        %v774 = vld [vmem:[%s1 + $0x14] sm:$0xf]
        %v775 = vld [vmem:[%s1 + $0x18] sm:$0xf]
        %v776 = vld [vmem:[%s1 + $0x1c] sm:$0xf]
        %v777 = vld [vmem:[%s1 + $0x20] sm:$0xf]
        %v778 = vld [vmem:[%s1 + $0x24] sm:$0xf]
        %v779 = vld [vmem:[%s1 + $0x28] sm:$0xf]
        %v780 = vld [vmem:[%s1 + $0x2c] sm:$0xf]
        %v781 = vld [vmem:[%s1 + $0x30] sm:$0xf]
        %v782 = vld [vmem:[%s1 + $0x34] sm:$0xf]
        %v783 = vld [vmem:[%s1 + $0x38] sm:$0xf]
        %v784 = vld [vmem:[%s1 + $0x3c] sm:$0xf]
        %v785 = vld [vmem:[%s2] sm:$0x1]
        %v787 = vlaneseq
        %v788 = vshrl.u32 %v787, 7
        %v789 = vsub.s32 0, %v788
        %v790 = vrot.slane %v785, %v789
        %v808 = vunpack.c.l.b16 %v753
        %v809 = vunpack.c.l.b16 %v754
        %v810 = vunpack.c.l.b16 %v755
        %v811 = vunpack.c.l.b16 %v756
        %v812 = vunpack.c.l.b16 %v757
        %v813 = vunpack.c.l.b16 %v758
        %v814 = vunpack.c.l.b16 %v759
        %v815 = vunpack.c.l.b16 %v760
        %v816 = vunpack.c.l.b16 %v761
        %v817 = vunpack.c.l.b16 %v762
        %v818 = vunpack.c.l.b16 %v763
        %v819 = vunpack.c.l.b16 %v764
        %v820 = vunpack.c.l.b16 %v765
        %v821 = vunpack.c.l.b16 %v766
        %v822 = vunpack.c.l.b16 %v767
        %v823 = vunpack.c.l.b16 %v768
        %v824 = vpack.c.b16 %v809, %v808
        %v825 = vpack.c.b16 %v811, %v810
        %v826 = vpack.c.b16 %v813, %v812
        %v827 = vpack.c.b16 %v815, %v814
        %v828 = vpack.c.b16 %v817, %v816
        %v829 = vpack.c.b16 %v819, %v818
        %v830 = vpack.c.b16 %v821, %v820
        %v831 = vpack.c.b16 %v823, %v822
        %v856 = vunpack.c.l.b16 %v769
        %v857 = vunpack.c.l.b16 %v770
        %v858 = vunpack.c.l.b16 %v771
        %v859 = vunpack.c.l.b16 %v772
        %v860 = vunpack.c.l.b16 %v773
        %v861 = vunpack.c.l.b16 %v774
        %v862 = vunpack.c.l.b16 %v775
        %v863 = vunpack.c.l.b16 %v776
        %v864 = vunpack.c.l.b16 %v777
        %v865 = vunpack.c.l.b16 %v778
        %v866 = vunpack.c.l.b16 %v779
        %v867 = vunpack.c.l.b16 %v780
        %v868 = vunpack.c.l.b16 %v781
        %v869 = vunpack.c.l.b16 %v782
        %v870 = vunpack.c.l.b16 %v783
        %v871 = vunpack.c.l.b16 %v784
        %v872 = vpack.c.b16 %v857, %v856
        %v873 = vpack.c.b16 %v859, %v858
        %v874 = vpack.c.b16 %v861, %v860
        %v875 = vpack.c.b16 %v863, %v862
        %v876 = vpack.c.b16 %v865, %v864
        %v877 = vpack.c.b16 %v867, %v866
        %v878 = vpack.c.b16 %v869, %v868
        %v879 = vpack.c.b16 %v871, %v870
        %888 = vmatprep.subr.bf16.mxu0 0
        %889 = vmatpush1.bf16.msra.mxu0 %v872
        %890 = vmatprep.subr.bf16.mxu0 0
        %891 = vmatpush1.bf16.msra.mxu0 %v873
        %892 = vmatprep.subr.bf16.mxu0 0
        %893 = vmatpush1.bf16.msra.mxu0 %v874
        %894 = vmatprep.subr.bf16.mxu0 0
        %895 = vmatpush1.bf16.msra.mxu0 %v875
        %896 = vmatprep.subr.bf16.mxu0 0
        %897 = vmatpush1.bf16.msra.mxu0 %v876
        %898 = vmatprep.subr.bf16.mxu0 0
        %899 = vmatpush1.bf16.msra.mxu0 %v877
        %900 = vmatprep.subr.bf16.mxu0 0
        %901 = vmatpush1.bf16.msra.mxu0 %v878
        %902 = vmatprep.subr.bf16.mxu0 0
        %903 = vmatpush1.bf16.msra.mxu0 %v879
        %904 = vmatprep.subr.bf16.mxu0 0
        %905 = vmatpush1.bf16.msra.mxu0 0
        %906 = vmatprep.subr.bf16.mxu0 0
        %907 = vmatpush1.bf16.msra.mxu0 0
        %908 = vmatprep.subr.bf16.mxu0 0
        %909 = vmatpush1.bf16.msra.mxu0 0
        %910 = vmatprep.subr.bf16.mxu0 0
        %911 = vmatpush1.bf16.msra.mxu0 0
        %912 = vmatprep.subr.bf16.mxu0 0
        %913 = vmatpush1.bf16.msra.mxu0 0
        %914 = vmatprep.subr.bf16.mxu0 0
        %915 = vmatpush1.bf16.msra.mxu0 0
        %916 = vmatprep.subr.bf16.mxu0 0
        %917 = vmatpush1.bf16.msra.mxu0 0
        %918 = vmatprep.subr.bf16.mxu0 0
        %919 = vmatpush1.bf16.msra.mxu0 0
        %920 = vmatprep.mubr.bf16.mxu0 0
        %921 = vmatmul.mubr.bf16.gmra.mrb[0].mxu0 %v824
        %v922 = vpop.f32.mrb[0].mxu0
        %v923 = vadd.f32 %v790, %v922
        %v924 = vpop.f32.mrb[0].mxu0
        %v925 = vpop.f32.mrb[0].mxu0
        %v926 = vadd.f32 %v790, %v925
        %v927 = vpop.f32.mrb[0].mxu0
        %928 = vmatprep.mubr.bf16.mxu0 0
        %929 = vmatmul.mubr.bf16.gmra.mrb[0].mxu0 %v825
        %v930 = vpop.f32.mrb[0].mxu0
        %v931 = vadd.f32 %v790, %v930
        %v932 = vpop.f32.mrb[0].mxu0
        %v933 = vpop.f32.mrb[0].mxu0
        %v934 = vadd.f32 %v790, %v933
        %v935 = vpop.f32.mrb[0].mxu0
        %936 = vmatprep.mubr.bf16.mxu0 0
        %937 = vmatmul.mubr.bf16.gmra.mrb[0].mxu0 %v826
        %v938 = vpop.f32.mrb[0].mxu0
        %v939 = vadd.f32 %v790, %v938
        %v940 = vpop.f32.mrb[0].mxu0
        %v941 = vpop.f32.mrb[0].mxu0
        %v942 = vadd.f32 %v790, %v941
        %v943 = vpop.f32.mrb[0].mxu0
        %944 = vmatprep.mubr.bf16.mxu0 0
        %945 = vmatmul.mubr.bf16.gmra.mrb[0].mxu0 %v827
        %v946 = vpop.f32.mrb[0].mxu0
        %v947 = vadd.f32 %v790, %v946
        %v948 = vpop.f32.mrb[0].mxu0
        %v949 = vpop.f32.mrb[0].mxu0
        %v950 = vadd.f32 %v790, %v949
        %v951 = vpop.f32.mrb[0].mxu0
        %952 = vmatprep.mubr.bf16.mxu0 0
        %953 = vmatmul.mubr.bf16.gmra.mrb[0].mxu0 %v828
        %v954 = vpop.f32.mrb[0].mxu0
        %v955 = vadd.f32 %v790, %v954
        %v956 = vpop.f32.mrb[0].mxu0
        %v957 = vpop.f32.mrb[0].mxu0
        %v958 = vadd.f32 %v790, %v957
        %v959 = vpop.f32.mrb[0].mxu0
        %960 = vmatprep.mubr.bf16.mxu0 0
        %961 = vmatmul.mubr.bf16.gmra.mrb[0].mxu0 %v829
        %v962 = vpop.f32.mrb[0].mxu0
        %v963 = vadd.f32 %v790, %v962
        %v964 = vpop.f32.mrb[0].mxu0
        %v965 = vpop.f32.mrb[0].mxu0
        %v966 = vadd.f32 %v790, %v965
        %v967 = vpop.f32.mrb[0].mxu0
        %968 = vmatprep.mubr.bf16.mxu0 0
        %969 = vmatmul.mubr.bf16.gmra.mrb[0].mxu0 %v830
        %v970 = vpop.f32.mrb[0].mxu0
        %v971 = vadd.f32 %v790, %v970
        %v972 = vpop.f32.mrb[0].mxu0
        %v973 = vpop.f32.mrb[0].mxu0
        %v974 = vadd.f32 %v790, %v973
        %v975 = vpop.f32.mrb[0].mxu0
        %976 = vmatprep.mubr.bf16.mxu0 0
        %977 = vmatmul.mubr.bf16.gmra.mrb[0].mxu0 %v831
        %v978 = vpop.f32.mrb[0].mxu0
        %v979 = vadd.f32 %v790, %v978
        %v980 = vpop.f32.mrb[0].mxu0
        %v981 = vpop.f32.mrb[0].mxu0
        %v982 = vadd.f32 %v790, %v981
        %v983 = vpop.f32.mrb[0].mxu0
        %984 = vdwg.mxu0
        %s985 = smul.u32 %s40, 128
        %s986 = scalar_lea.vmem [#allocation2], %s985
        %vm987 = vcmask 523264
        %988 = vst.msk [vmem:[%s986] sm:$0xff] %vm987, %v923
        %989 = vst.msk [vmem:[%s986 + $0x8] sm:$0xff] %vm987, %v926
        %990 = vst.msk [vmem:[%s986 + $0x10] sm:$0xff] %vm987, %v931
        %991 = vst.msk [vmem:[%s986 + $0x18] sm:$0xff] %vm987, %v934
        %992 = vst.msk [vmem:[%s986 + $0x20] sm:$0xff] %vm987, %v939
        %993 = vst.msk [vmem:[%s986 + $0x28] sm:$0xff] %vm987, %v942
        %994 = vst.msk [vmem:[%s986 + $0x30] sm:$0xff] %vm987, %v947
        %995 = vst.msk [vmem:[%s986 + $0x38] sm:$0xff] %vm987, %v950
        %996 = vst.msk [vmem:[%s986 + $0x40] sm:$0xff] %vm987, %v955
        %997 = vst.msk [vmem:[%s986 + $0x48] sm:$0xff] %vm987, %v958
        %998 = vst.msk [vmem:[%s986 + $0x50] sm:$0xff] %vm987, %v963
        %999 = vst.msk [vmem:[%s986 + $0x58] sm:$0xff] %vm987, %v966
        %1000 = vst.msk [vmem:[%s986 + $0x60] sm:$0xff] %vm987, %v971
        %1001 = vst.msk [vmem:[%s986 + $0x68] sm:$0xff] %vm987, %v974
        %1002 = vst.msk [vmem:[%s986 + $0x70] sm:$0xff] %vm987, %v979
        %1003 = vst.msk [vmem:[%s986 + $0x78] sm:$0xff] %vm987, %v982
        %v1004 = vld [vmem:[#allocation3] sm:$0xff]
        %v1005 = vld [vmem:[#allocation3 + $0x8] sm:$0xff]
        %v1006 = vld [vmem:[#allocation3 + $0x10] sm:$0xff]
        %v1007 = vld [vmem:[#allocation3 + $0x18] sm:$0xff]
        %v1008 = vld [vmem:[#allocation3 + $0x20] sm:$0xff]
        %v1009 = vld [vmem:[#allocation3 + $0x28] sm:$0xff]
        %v1010 = vld [vmem:[#allocation3 + $0x30] sm:$0xff]
        %v1011 = vld [vmem:[#allocation3 + $0x38] sm:$0xff]
        %v1012 = vld [vmem:[#allocation3 + $0x40] sm:$0xff]
        %v1013 = vld [vmem:[#allocation3 + $0x48] sm:$0xff]
        %v1014 = vld [vmem:[#allocation3 + $0x50] sm:$0xff]
        %v1015 = vld [vmem:[#allocation3 + $0x58] sm:$0xff]
        %v1016 = vld [vmem:[#allocation3 + $0x60] sm:$0xff]
        %v1017 = vld [vmem:[#allocation3 + $0x68] sm:$0xff]
        %v1018 = vld [vmem:[#allocation3 + $0x70] sm:$0xff]
        %v1019 = vld [vmem:[#allocation3 + $0x78] sm:$0xff]
        %v1020 = vld [vmem:[#allocation3 + $0x80] sm:$0xff]
        %v1021 = vld [vmem:[#allocation3 + $0x88] sm:$0xff]
        %v1022 = vld [vmem:[#allocation3 + $0x90] sm:$0xff]
        %v1023 = vld [vmem:[#allocation3 + $0x98] sm:$0xff]
        %v1024 = vld [vmem:[#allocation3 + $0xa0] sm:$0xff]
        %v1025 = vld [vmem:[#allocation3 + $0xa8] sm:$0xff]
        %v1026 = vld [vmem:[#allocation3 + $0xb0] sm:$0xff]
        %v1027 = vld [vmem:[#allocation3 + $0xb8] sm:$0xff]
        %v1028 = vld [vmem:[#allocation3 + $0xc0] sm:$0xff]
        %v1029 = vld [vmem:[#allocation3 + $0xc8] sm:$0xff]
        %v1030 = vld [vmem:[#allocation3 + $0xd0] sm:$0xff]
        %v1031 = vld [vmem:[#allocation3 + $0xd8] sm:$0xff]
        %v1032 = vld [vmem:[#allocation3 + $0xe0] sm:$0xff]
        %v1033 = vld [vmem:[#allocation3 + $0xe8] sm:$0xff]
        %v1034 = vld [vmem:[#allocation3 + $0xf0] sm:$0xff]
        %v1035 = vld [vmem:[#allocation3 + $0xf8] sm:$0xff]
        %v1036 = vld [vmem:[#allocation3 + $0x100] sm:$0xff]
        %v1037 = vld [vmem:[#allocation3 + $0x108] sm:$0xff]
        %v1038 = vld [vmem:[#allocation3 + $0x110] sm:$0xff]
        %v1039 = vld [vmem:[#allocation3 + $0x118] sm:$0xff]
        %v1040 = vld [vmem:[#allocation3 + $0x120] sm:$0xff]
        %v1041 = vld [vmem:[#allocation3 + $0x128] sm:$0xff]
        %v1042 = vld [vmem:[#allocation3 + $0x130] sm:$0xff]
        %v1043 = vld [vmem:[#allocation3 + $0x138] sm:$0xff]
        %v1044 = vld [vmem:[#allocation3 + $0x140] sm:$0xff]
        %v1045 = vld [vmem:[#allocation3 + $0x148] sm:$0xff]
        %v1046 = vld [vmem:[#allocation3 + $0x150] sm:$0xff]
        %v1047 = vld [vmem:[#allocation3 + $0x158] sm:$0xff]
        %v1048 = vld [vmem:[#allocation3 + $0x160] sm:$0xff]
        %v1049 = vld [vmem:[#allocation3 + $0x168] sm:$0xff]
        %v1050 = vld [vmem:[#allocation3 + $0x170] sm:$0xff]
        %v1051 = vld [vmem:[#allocation3 + $0x178] sm:$0xff]
        %v1052 = vld [vmem:[%s618] sm:$0xf]
        %v1053 = vld [vmem:[%s618 + $0x4] sm:$0xf]
        %v1054 = vld [vmem:[%s618 + $0x8] sm:$0xf]
        %v1055 = vld [vmem:[%s618 + $0xc] sm:$0xf]
        %v1056 = vld [vmem:[%s618 + $0x10] sm:$0xf]
        %v1057 = vld [vmem:[%s618 + $0x14] sm:$0xf]
        %v1058 = vld [vmem:[%s618 + $0x18] sm:$0xf]
        %v1059 = vld [vmem:[%s618 + $0x1c] sm:$0xf]
        %v1060 = vld [vmem:[%s618 + $0x20] sm:$0xf]
        %v1061 = vld [vmem:[%s618 + $0x24] sm:$0xf]
        %v1062 = vld [vmem:[%s618 + $0x28] sm:$0xf]
        %v1063 = vld [vmem:[%s618 + $0x2c] sm:$0xf]
        %v1064 = vld [vmem:[%s618 + $0x30] sm:$0xf]
        %v1065 = vld [vmem:[%s618 + $0x34] sm:$0xf]
        %v1066 = vld [vmem:[%s618 + $0x38] sm:$0xf]
        %v1067 = vld [vmem:[%s618 + $0x3c] sm:$0xf]
        %v1068 = vld [vmem:[%s618 + $0x40] sm:$0xf]
        %v1069 = vld [vmem:[%s618 + $0x44] sm:$0xf]
        %v1070 = vld [vmem:[%s618 + $0x48] sm:$0xf]
        %v1071 = vld [vmem:[%s618 + $0x4c] sm:$0xf]
        %v1072 = vld [vmem:[%s618 + $0x50] sm:$0xf]
        %v1073 = vld [vmem:[%s618 + $0x54] sm:$0xf]
        %v1074 = vld [vmem:[%s618 + $0x58] sm:$0xf]
        %v1075 = vld [vmem:[%s618 + $0x5c] sm:$0xf]
        %v1076 = vld [vmem:[%s618 + $0x60] sm:$0xf]
        %v1077 = vld [vmem:[%s618 + $0x64] sm:$0xf]
        %v1078 = vld [vmem:[%s618 + $0x68] sm:$0xf]
        %v1079 = vld [vmem:[%s618 + $0x6c] sm:$0xf]
        %v1080 = vld [vmem:[%s618 + $0x70] sm:$0xf]
        %v1081 = vld [vmem:[%s618 + $0x74] sm:$0xf]
        %v1082 = vld [vmem:[%s618 + $0x78] sm:$0xf]
        %v1083 = vld [vmem:[%s618 + $0x7c] sm:$0xf]
        %v1084 = vld [vmem:[%s618 + $0x80] sm:$0xf]
        %v1085 = vld [vmem:[%s618 + $0x84] sm:$0xf]
        %v1086 = vld [vmem:[%s618 + $0x88] sm:$0xf]
        %v1087 = vld [vmem:[%s618 + $0x8c] sm:$0xf]
        %v1088 = vld [vmem:[%s618 + $0x90] sm:$0xf]
        %v1089 = vld [vmem:[%s618 + $0x94] sm:$0xf]
        %v1090 = vld [vmem:[%s618 + $0x98] sm:$0xf]
        %v1091 = vld [vmem:[%s618 + $0x9c] sm:$0xf]
        %v1092 = vld [vmem:[%s618 + $0xa0] sm:$0xf]
        %v1093 = vld [vmem:[%s618 + $0xa4] sm:$0xf]
        %v1094 = vld [vmem:[%s618 + $0xa8] sm:$0xf]
        %v1095 = vld [vmem:[%s618 + $0xac] sm:$0xf]
        %v1096 = vld [vmem:[%s618 + $0xb0] sm:$0xf]
        %v1097 = vld [vmem:[%s618 + $0xb4] sm:$0xf]
        %v1098 = vld [vmem:[%s618 + $0xb8] sm:$0xf]
        %v1099 = vld [vmem:[%s618 + $0xbc] sm:$0xf]
        %v1100 = vpack.c.bf16 %v926, %v923
        %v1101 = vpack.c.bf16 %v934, %v931
        %v1102 = vpack.c.bf16 %v942, %v939
        %v1103 = vpack.c.bf16 %v950, %v947
        %v1104 = vpack.c.bf16 %v958, %v955
        %v1105 = vpack.c.bf16 %v966, %v963
        %v1106 = vpack.c.bf16 %v974, %v971
        %v1107 = vpack.c.bf16 %v982, %v979
        %v1156 = vunpack.c.l.b16 %v1052
        %v1157 = vunpack.c.l.b16 %v1053
        %v1158 = vunpack.c.l.b16 %v1054
        %v1159 = vunpack.c.l.b16 %v1055
        %v1160 = vunpack.c.l.b16 %v1056
        %v1161 = vunpack.c.l.b16 %v1057
        %v1162 = vunpack.c.l.b16 %v1058
        %v1163 = vunpack.c.l.b16 %v1059
        %v1164 = vunpack.c.l.b16 %v1060
        %v1165 = vunpack.c.l.b16 %v1061
        %v1166 = vunpack.c.l.b16 %v1062
        %v1167 = vunpack.c.l.b16 %v1063
        %v1168 = vunpack.c.l.b16 %v1064
        %v1169 = vunpack.c.l.b16 %v1065
        %v1170 = vunpack.c.l.b16 %v1066
        %v1171 = vunpack.c.l.b16 %v1067
        %v1172 = vunpack.c.l.b16 %v1068
        %v1173 = vunpack.c.l.b16 %v1069
        %v1174 = vunpack.c.l.b16 %v1070
        %v1175 = vunpack.c.l.b16 %v1071
        %v1176 = vunpack.c.l.b16 %v1072
        %v1177 = vunpack.c.l.b16 %v1073
        %v1178 = vunpack.c.l.b16 %v1074
        %v1179 = vunpack.c.l.b16 %v1075
        %v1180 = vunpack.c.l.b16 %v1076
        %v1181 = vunpack.c.l.b16 %v1077
        %v1182 = vunpack.c.l.b16 %v1078
        %v1183 = vunpack.c.l.b16 %v1079
        %v1184 = vunpack.c.l.b16 %v1080
        %v1185 = vunpack.c.l.b16 %v1081
        %v1186 = vunpack.c.l.b16 %v1082
        %v1187 = vunpack.c.l.b16 %v1083
        %v1188 = vunpack.c.l.b16 %v1084
        %v1189 = vunpack.c.l.b16 %v1085
        %v1190 = vunpack.c.l.b16 %v1086
        %v1191 = vunpack.c.l.b16 %v1087
        %v1192 = vunpack.c.l.b16 %v1088
        %v1193 = vunpack.c.l.b16 %v1089
        %v1194 = vunpack.c.l.b16 %v1090
        %v1195 = vunpack.c.l.b16 %v1091
        %v1196 = vunpack.c.l.b16 %v1092
        %v1197 = vunpack.c.l.b16 %v1093
        %v1198 = vunpack.c.l.b16 %v1094
        %v1199 = vunpack.c.l.b16 %v1095
        %v1200 = vunpack.c.l.b16 %v1096
        %v1201 = vunpack.c.l.b16 %v1097
        %v1202 = vunpack.c.l.b16 %v1098
        %v1203 = vunpack.c.l.b16 %v1099
        %v1204 = vpack.c.b16 %v1157, %v1156
        %v1205 = vpack.c.b16 %v1159, %v1158
        %v1206 = vpack.c.b16 %v1161, %v1160
        %v1207 = vpack.c.b16 %v1163, %v1162
        %v1208 = vpack.c.b16 %v1165, %v1164
        %v1209 = vpack.c.b16 %v1167, %v1166
        %v1210 = vpack.c.b16 %v1169, %v1168
        %v1211 = vpack.c.b16 %v1171, %v1170
        %v1212 = vpack.c.b16 %v1173, %v1172
        %v1213 = vpack.c.b16 %v1175, %v1174
        %v1214 = vpack.c.b16 %v1177, %v1176
        %v1215 = vpack.c.b16 %v1179, %v1178
        %v1216 = vpack.c.b16 %v1181, %v1180
        %v1217 = vpack.c.b16 %v1183, %v1182
        %v1218 = vpack.c.b16 %v1185, %v1184
        %v1219 = vpack.c.b16 %v1187, %v1186
        %v1220 = vpack.c.b16 %v1189, %v1188
        %v1221 = vpack.c.b16 %v1191, %v1190
        %v1222 = vpack.c.b16 %v1193, %v1192
        %v1223 = vpack.c.b16 %v1195, %v1194
        %v1224 = vpack.c.b16 %v1197, %v1196
        %v1225 = vpack.c.b16 %v1199, %v1198
        %v1226 = vpack.c.b16 %v1201, %v1200
        %v1227 = vpack.c.b16 %v1203, %v1202
        %1252 = vmatprep.subr.bf16.mxu0 0
        %1253 = vmatpush1.bf16.msra.mxu0 %v1100
        %1254 = vmatprep.subr.bf16.mxu0 0
        %1255 = vmatpush1.bf16.msra.mxu0 %v1101
        %1256 = vmatprep.subr.bf16.mxu0 0
        %1257 = vmatpush1.bf16.msra.mxu0 %v1102
        %1258 = vmatprep.subr.bf16.mxu0 0
        %1259 = vmatpush1.bf16.msra.mxu0 %v1103
        %1260 = vmatprep.subr.bf16.mxu0 0
        %1261 = vmatpush1.bf16.msra.mxu0 %v1104
        %1262 = vmatprep.subr.bf16.mxu0 0
        %1263 = vmatpush1.bf16.msra.mxu0 %v1105
        %1264 = vmatprep.subr.bf16.mxu0 0
        %1265 = vmatpush1.bf16.msra.mxu0 %v1106
        %1266 = vmatprep.subr.bf16.mxu0 0
        %1267 = vmatpush1.bf16.msra.mxu0 %v1107
        %1268 = vmatprep.subr.bf16.mxu0 0
        %1269 = vmatpush1.bf16.msra.mxu0 0
        %1270 = vmatprep.subr.bf16.mxu0 0
        %1271 = vmatpush1.bf16.msra.mxu0 0
        %1272 = vmatprep.subr.bf16.mxu0 0
        %1273 = vmatpush1.bf16.msra.mxu0 0
        %1274 = vmatprep.subr.bf16.mxu0 0
        %1275 = vmatpush1.bf16.msra.mxu0 0
        %1276 = vmatprep.subr.bf16.mxu0 0
        %1277 = vmatpush1.bf16.msra.mxu0 0
        %1278 = vmatprep.subr.bf16.mxu0 0
        %1279 = vmatpush1.bf16.msra.mxu0 0
        %1280 = vmatprep.subr.bf16.mxu0 0
        %1281 = vmatpush1.bf16.msra.mxu0 0
        %1282 = vmatprep.subr.bf16.mxu0 0
        %1283 = vmatpush1.bf16.msra.mxu0 0
        %1284 = vmatprep.mubr.bf16.mxu0 0
        %1285 = vmatmul.mubr.bf16.gmra.mrb[0].mxu0 %v1204
        %v1286 = vpop.f32.mrb[0].mxu0
        %v1287 = vadd.f32 0.0, %v1286
        %v1288 = vpop.f32.mrb[0].mxu0
        %v1289 = vpop.f32.mrb[0].mxu0
        %v1290 = vadd.f32 0.0, %v1289
        %v1291 = vpop.f32.mrb[0].mxu0
        %1292 = vmatprep.mubr.bf16.mxu0 0
        %1293 = vmatmul.mubr.bf16.gmra.mrb[0].mxu0 %v1205
        %v1294 = vpop.f32.mrb[0].mxu0
        %v1295 = vadd.f32 0.0, %v1294
        %v1296 = vpop.f32.mrb[0].mxu0
        %v1297 = vpop.f32.mrb[0].mxu0
        %v1298 = vadd.f32 0.0, %v1297
        %v1299 = vpop.f32.mrb[0].mxu0
        %1300 = vmatprep.mubr.bf16.mxu0 0
        %1301 = vmatmul.mubr.bf16.gmra.mrb[0].mxu0 %v1206
        %v1302 = vpop.f32.mrb[0].mxu0
        %v1303 = vadd.f32 0.0, %v1302
        %v1304 = vpop.f32.mrb[0].mxu0
        %v1305 = vpop.f32.mrb[0].mxu0
        %v1306 = vadd.f32 0.0, %v1305
        %v1307 = vpop.f32.mrb[0].mxu0
        %1308 = vmatprep.mubr.bf16.mxu0 0
        %1309 = vmatmul.mubr.bf16.gmra.mrb[0].mxu0 %v1207
        %v1310 = vpop.f32.mrb[0].mxu0
        %v1311 = vadd.f32 0.0, %v1310
        %v1312 = vpop.f32.mrb[0].mxu0
        %v1313 = vpop.f32.mrb[0].mxu0
        %v1314 = vadd.f32 0.0, %v1313
        %v1315 = vpop.f32.mrb[0].mxu0
        %1316 = vmatprep.mubr.bf16.mxu0 0
        %1317 = vmatmul.mubr.bf16.gmra.mrb[0].mxu0 %v1208
        %v1318 = vpop.f32.mrb[0].mxu0
        %v1319 = vadd.f32 0.0, %v1318
        %v1320 = vpop.f32.mrb[0].mxu0
        %v1321 = vpop.f32.mrb[0].mxu0
        %v1322 = vadd.f32 0.0, %v1321
        %v1323 = vpop.f32.mrb[0].mxu0
        %1324 = vmatprep.mubr.bf16.mxu0 0
        %1325 = vmatmul.mubr.bf16.gmra.mrb[0].mxu0 %v1209
        %v1326 = vpop.f32.mrb[0].mxu0
        %v1327 = vadd.f32 0.0, %v1326
        %v1328 = vpop.f32.mrb[0].mxu0
        %v1329 = vpop.f32.mrb[0].mxu0
        %v1330 = vadd.f32 0.0, %v1329
        %v1331 = vpop.f32.mrb[0].mxu0
        %1332 = vmatprep.mubr.bf16.mxu0 0
        %1333 = vmatmul.mubr.bf16.gmra.mrb[0].mxu0 %v1210
        %v1334 = vpop.f32.mrb[0].mxu0
        %v1335 = vadd.f32 0.0, %v1334
        %v1336 = vpop.f32.mrb[0].mxu0
        %v1337 = vpop.f32.mrb[0].mxu0
        %v1338 = vadd.f32 0.0, %v1337
        %v1339 = vpop.f32.mrb[0].mxu0
        %1340 = vmatprep.mubr.bf16.mxu0 0
        %1341 = vmatmul.mubr.bf16.gmra.mrb[0].mxu0 %v1211
        %v1342 = vpop.f32.mrb[0].mxu0
        %v1343 = vadd.f32 0.0, %v1342
        %v1344 = vpop.f32.mrb[0].mxu0
        %v1345 = vpop.f32.mrb[0].mxu0
        %v1346 = vadd.f32 0.0, %v1345
        %v1347 = vpop.f32.mrb[0].mxu0
        %1348 = vmatprep.mubr.bf16.mxu0 0
        %1349 = vmatmul.mubr.bf16.gmra.mrb[0].mxu0 %v1212
        %v1350 = vpop.f32.mrb[0].mxu0
        %v1351 = vadd.f32 0.0, %v1350
        %v1352 = vpop.f32.mrb[0].mxu0
        %v1353 = vpop.f32.mrb[0].mxu0
        %v1354 = vadd.f32 0.0, %v1353
        %v1355 = vpop.f32.mrb[0].mxu0
        %1356 = vmatprep.mubr.bf16.mxu0 0
        %1357 = vmatmul.mubr.bf16.gmra.mrb[0].mxu0 %v1213
        %v1358 = vpop.f32.mrb[0].mxu0
        %v1359 = vadd.f32 0.0, %v1358
        %v1360 = vpop.f32.mrb[0].mxu0
        %v1361 = vpop.f32.mrb[0].mxu0
        %v1362 = vadd.f32 0.0, %v1361
        %v1363 = vpop.f32.mrb[0].mxu0
        %1364 = vmatprep.mubr.bf16.mxu0 0
        %1365 = vmatmul.mubr.bf16.gmra.mrb[0].mxu0 %v1214
        %v1366 = vpop.f32.mrb[0].mxu0
        %v1367 = vadd.f32 0.0, %v1366
        %v1368 = vpop.f32.mrb[0].mxu0
        %v1369 = vpop.f32.mrb[0].mxu0
        %v1370 = vadd.f32 0.0, %v1369
        %v1371 = vpop.f32.mrb[0].mxu0
        %1372 = vmatprep.mubr.bf16.mxu0 0
        %1373 = vmatmul.mubr.bf16.gmra.mrb[0].mxu0 %v1215
        %v1374 = vpop.f32.mrb[0].mxu0
        %v1375 = vadd.f32 0.0, %v1374
        %v1376 = vpop.f32.mrb[0].mxu0
        %v1377 = vpop.f32.mrb[0].mxu0
        %v1378 = vadd.f32 0.0, %v1377
        %v1379 = vpop.f32.mrb[0].mxu0
        %1380 = vmatprep.mubr.bf16.mxu0 0
        %1381 = vmatmul.mubr.bf16.gmra.mrb[0].mxu0 %v1216
        %v1382 = vpop.f32.mrb[0].mxu0
        %v1383 = vadd.f32 0.0, %v1382
        %v1384 = vpop.f32.mrb[0].mxu0
        %v1385 = vpop.f32.mrb[0].mxu0
        %v1386 = vadd.f32 0.0, %v1385
        %v1387 = vpop.f32.mrb[0].mxu0
        %1388 = vmatprep.mubr.bf16.mxu0 0
        %1389 = vmatmul.mubr.bf16.gmra.mrb[0].mxu0 %v1217
        %v1390 = vpop.f32.mrb[0].mxu0
        %v1391 = vadd.f32 0.0, %v1390
        %v1392 = vpop.f32.mrb[0].mxu0
        %v1393 = vpop.f32.mrb[0].mxu0
        %v1394 = vadd.f32 0.0, %v1393
        %v1395 = vpop.f32.mrb[0].mxu0
        %1396 = vmatprep.mubr.bf16.mxu0 0
        %1397 = vmatmul.mubr.bf16.gmra.mrb[0].mxu0 %v1218
        %v1398 = vpop.f32.mrb[0].mxu0
        %v1399 = vadd.f32 0.0, %v1398
        %v1400 = vpop.f32.mrb[0].mxu0
        %v1401 = vpop.f32.mrb[0].mxu0
        %v1402 = vadd.f32 0.0, %v1401
        %v1403 = vpop.f32.mrb[0].mxu0
        %1404 = vmatprep.mubr.bf16.mxu0 0
        %1405 = vmatmul.mubr.bf16.gmra.mrb[0].mxu0 %v1219
        %v1406 = vpop.f32.mrb[0].mxu0
        %v1407 = vadd.f32 0.0, %v1406
        %v1408 = vpop.f32.mrb[0].mxu0
        %v1409 = vpop.f32.mrb[0].mxu0
        %v1410 = vadd.f32 0.0, %v1409
        %v1411 = vpop.f32.mrb[0].mxu0
        %1412 = vmatprep.mubr.bf16.mxu0 0
        %1413 = vmatmul.mubr.bf16.gmra.mrb[0].mxu0 %v1220
        %v1414 = vpop.f32.mrb[0].mxu0
        %v1415 = vadd.f32 0.0, %v1414
        %v1416 = vpop.f32.mrb[0].mxu0
        %v1417 = vpop.f32.mrb[0].mxu0
        %v1418 = vadd.f32 0.0, %v1417
        %v1419 = vpop.f32.mrb[0].mxu0
        %1420 = vmatprep.mubr.bf16.mxu0 0
        %1421 = vmatmul.mubr.bf16.gmra.mrb[0].mxu0 %v1221
        %v1422 = vpop.f32.mrb[0].mxu0
        %v1423 = vadd.f32 0.0, %v1422
        %v1424 = vpop.f32.mrb[0].mxu0
        %v1425 = vpop.f32.mrb[0].mxu0
        %v1426 = vadd.f32 0.0, %v1425
        %v1427 = vpop.f32.mrb[0].mxu0
        %1428 = vmatprep.mubr.bf16.mxu0 0
        %1429 = vmatmul.mubr.bf16.gmra.mrb[0].mxu0 %v1222
        %v1430 = vpop.f32.mrb[0].mxu0
        %v1431 = vadd.f32 0.0, %v1430
        %v1432 = vpop.f32.mrb[0].mxu0
        %v1433 = vpop.f32.mrb[0].mxu0
        %v1434 = vadd.f32 0.0, %v1433
        %v1435 = vpop.f32.mrb[0].mxu0
        %1436 = vmatprep.mubr.bf16.mxu0 0
        %1437 = vmatmul.mubr.bf16.gmra.mrb[0].mxu0 %v1223
        %v1438 = vpop.f32.mrb[0].mxu0
        %v1439 = vadd.f32 0.0, %v1438
        %v1440 = vpop.f32.mrb[0].mxu0
        %v1441 = vpop.f32.mrb[0].mxu0
        %v1442 = vadd.f32 0.0, %v1441
        %v1443 = vpop.f32.mrb[0].mxu0
        %1444 = vmatprep.mubr.bf16.mxu0 0
        %1445 = vmatmul.mubr.bf16.gmra.mrb[0].mxu0 %v1224
        %v1446 = vpop.f32.mrb[0].mxu0
        %v1447 = vadd.f32 0.0, %v1446
        %v1448 = vpop.f32.mrb[0].mxu0
        %v1449 = vpop.f32.mrb[0].mxu0
        %v1450 = vadd.f32 0.0, %v1449
        %v1451 = vpop.f32.mrb[0].mxu0
        %1452 = vmatprep.mubr.bf16.mxu0 0
        %1453 = vmatmul.mubr.bf16.gmra.mrb[0].mxu0 %v1225
        %v1454 = vpop.f32.mrb[0].mxu0
        %v1455 = vadd.f32 0.0, %v1454
        %v1456 = vpop.f32.mrb[0].mxu0
        %v1457 = vpop.f32.mrb[0].mxu0
        %v1458 = vadd.f32 0.0, %v1457
        %v1459 = vpop.f32.mrb[0].mxu0
        %1460 = vmatprep.mubr.bf16.mxu0 0
        %1461 = vmatmul.mubr.bf16.gmra.mrb[0].mxu0 %v1226
        %v1462 = vpop.f32.mrb[0].mxu0
        %v1463 = vadd.f32 0.0, %v1462
        %v1464 = vpop.f32.mrb[0].mxu0
        %v1465 = vpop.f32.mrb[0].mxu0
        %v1466 = vadd.f32 0.0, %v1465
        %v1467 = vpop.f32.mrb[0].mxu0
        %1468 = vmatprep.mubr.bf16.mxu0 0
        %1469 = vmatmul.mubr.bf16.gmra.mrb[0].mxu0 %v1227
        %v1470 = vpop.f32.mrb[0].mxu0
        %v1471 = vadd.f32 0.0, %v1470
        %v1472 = vpop.f32.mrb[0].mxu0
        %v1473 = vpop.f32.mrb[0].mxu0
        %v1474 = vadd.f32 0.0, %v1473
        %v1475 = vpop.f32.mrb[0].mxu0
        %1476 = vdwg.mxu0
        %v1477 = vadd.f32 %v1004, %v1287
        %v1478 = vadd.f32 %v1005, %v1290
        %v1479 = vadd.f32 %v1006, %v1295
        %v1480 = vadd.f32 %v1007, %v1298
        %v1481 = vadd.f32 %v1008, %v1303
        %v1482 = vadd.f32 %v1009, %v1306
        %v1483 = vadd.f32 %v1010, %v1311
        %v1484 = vadd.f32 %v1011, %v1314
        %v1485 = vadd.f32 %v1012, %v1319
        %v1486 = vadd.f32 %v1013, %v1322
        %v1487 = vadd.f32 %v1014, %v1327
        %v1488 = vadd.f32 %v1015, %v1330
        %v1489 = vadd.f32 %v1016, %v1335
        %v1490 = vadd.f32 %v1017, %v1338
        %v1491 = vadd.f32 %v1018, %v1343
        %v1492 = vadd.f32 %v1019, %v1346
        %v1493 = vadd.f32 %v1020, %v1351
        %v1494 = vadd.f32 %v1021, %v1354
        %v1495 = vadd.f32 %v1022, %v1359
        %v1496 = vadd.f32 %v1023, %v1362
        %v1497 = vadd.f32 %v1024, %v1367
        %v1498 = vadd.f32 %v1025, %v1370
        %v1499 = vadd.f32 %v1026, %v1375
        %v1500 = vadd.f32 %v1027, %v1378
        %v1501 = vadd.f32 %v1028, %v1383
        %v1502 = vadd.f32 %v1029, %v1386
        %v1503 = vadd.f32 %v1030, %v1391
        %v1504 = vadd.f32 %v1031, %v1394
        %v1505 = vadd.f32 %v1032, %v1399
        %v1506 = vadd.f32 %v1033, %v1402
        %v1507 = vadd.f32 %v1034, %v1407
        %v1508 = vadd.f32 %v1035, %v1410
        %v1509 = vadd.f32 %v1036, %v1415
        %v1510 = vadd.f32 %v1037, %v1418
        %v1511 = vadd.f32 %v1038, %v1423
        %v1512 = vadd.f32 %v1039, %v1426
        %v1513 = vadd.f32 %v1040, %v1431
        %v1514 = vadd.f32 %v1041, %v1434
        %v1515 = vadd.f32 %v1042, %v1439
        %v1516 = vadd.f32 %v1043, %v1442
        %v1517 = vadd.f32 %v1044, %v1447
        %v1518 = vadd.f32 %v1045, %v1450
        %v1519 = vadd.f32 %v1046, %v1455
        %v1520 = vadd.f32 %v1047, %v1458
        %v1521 = vadd.f32 %v1048, %v1463
        %v1522 = vadd.f32 %v1049, %v1466
        %v1523 = vadd.f32 %v1050, %v1471
        %v1524 = vadd.f32 %v1051, %v1474
        %1525 = vst.msk [vmem:[#allocation3] sm:$0xff] %vm987, %v1477
        %1526 = vst.msk [vmem:[#allocation3 + $0x8] sm:$0xff] %vm987, %v1478
        %1527 = vst.msk [vmem:[#allocation3 + $0x10] sm:$0xff] %vm987, %v1479
        %1528 = vst.msk [vmem:[#allocation3 + $0x18] sm:$0xff] %vm987, %v1480
        %1529 = vst.msk [vmem:[#allocation3 + $0x20] sm:$0xff] %vm987, %v1481
        %1530 = vst.msk [vmem:[#allocation3 + $0x28] sm:$0xff] %vm987, %v1482
        %1531 = vst.msk [vmem:[#allocation3 + $0x30] sm:$0xff] %vm987, %v1483
        %1532 = vst.msk [vmem:[#allocation3 + $0x38] sm:$0xff] %vm987, %v1484
        %1533 = vst.msk [vmem:[#allocation3 + $0x40] sm:$0xff] %vm987, %v1485
        %1534 = vst.msk [vmem:[#allocation3 + $0x48] sm:$0xff] %vm987, %v1486
        %1535 = vst.msk [vmem:[#allocation3 + $0x50] sm:$0xff] %vm987, %v1487
        %1536 = vst.msk [vmem:[#allocation3 + $0x58] sm:$0xff] %vm987, %v1488
        %1537 = vst.msk [vmem:[#allocation3 + $0x60] sm:$0xff] %vm987, %v1489
        %1538 = vst.msk [vmem:[#allocation3 + $0x68] sm:$0xff] %vm987, %v1490
        %1539 = vst.msk [vmem:[#allocation3 + $0x70] sm:$0xff] %vm987, %v1491
        %1540 = vst.msk [vmem:[#allocation3 + $0x78] sm:$0xff] %vm987, %v1492
        %1541 = vst.msk [vmem:[#allocation3 + $0x80] sm:$0xff] %vm987, %v1493
        %1542 = vst.msk [vmem:[#allocation3 + $0x88] sm:$0xff] %vm987, %v1494
        %1543 = vst.msk [vmem:[#allocation3 + $0x90] sm:$0xff] %vm987, %v1495
        %1544 = vst.msk [vmem:[#allocation3 + $0x98] sm:$0xff] %vm987, %v1496
        %1545 = vst.msk [vmem:[#allocation3 + $0xa0] sm:$0xff] %vm987, %v1497
        %1546 = vst.msk [vmem:[#allocation3 + $0xa8] sm:$0xff] %vm987, %v1498
        %1547 = vst.msk [vmem:[#allocation3 + $0xb0] sm:$0xff] %vm987, %v1499
        %1548 = vst.msk [vmem:[#allocation3 + $0xb8] sm:$0xff] %vm987, %v1500
        %1549 = vst.msk [vmem:[#allocation3 + $0xc0] sm:$0xff] %vm987, %v1501
        %1550 = vst.msk [vmem:[#allocation3 + $0xc8] sm:$0xff] %vm987, %v1502
        %1551 = vst.msk [vmem:[#allocation3 + $0xd0] sm:$0xff] %vm987, %v1503
        %1552 = vst.msk [vmem:[#allocation3 + $0xd8] sm:$0xff] %vm987, %v1504
        %1553 = vst.msk [vmem:[#allocation3 + $0xe0] sm:$0xff] %vm987, %v1505
        %1554 = vst.msk [vmem:[#allocation3 + $0xe8] sm:$0xff] %vm987, %v1506
        %1555 = vst.msk [vmem:[#allocation3 + $0xf0] sm:$0xff] %vm987, %v1507
        %1556 = vst.msk [vmem:[#allocation3 + $0xf8] sm:$0xff] %vm987, %v1508
        %1557 = vst.msk [vmem:[#allocation3 + $0x100] sm:$0xff] %vm987, %v1509
        %1558 = vst.msk [vmem:[#allocation3 + $0x108] sm:$0xff] %vm987, %v1510
        %1559 = vst.msk [vmem:[#allocation3 + $0x110] sm:$0xff] %vm987, %v1511
        %1560 = vst.msk [vmem:[#allocation3 + $0x118] sm:$0xff] %vm987, %v1512
        %1561 = vst.msk [vmem:[#allocation3 + $0x120] sm:$0xff] %vm987, %v1513
        %1562 = vst.msk [vmem:[#allocation3 + $0x128] sm:$0xff] %vm987, %v1514
        %1563 = vst.msk [vmem:[#allocation3 + $0x130] sm:$0xff] %vm987, %v1515
        %1564 = vst.msk [vmem:[#allocation3 + $0x138] sm:$0xff] %vm987, %v1516
        %1565 = vst.msk [vmem:[#allocation3 + $0x140] sm:$0xff] %vm987, %v1517
        %1566 = vst.msk [vmem:[#allocation3 + $0x148] sm:$0xff] %vm987, %v1518
        %1567 = vst.msk [vmem:[#allocation3 + $0x150] sm:$0xff] %vm987, %v1519
        %1568 = vst.msk [vmem:[#allocation3 + $0x158] sm:$0xff] %vm987, %v1520
        %1569 = vst.msk [vmem:[#allocation3 + $0x160] sm:$0xff] %vm987, %v1521
        %1570 = vst.msk [vmem:[#allocation3 + $0x168] sm:$0xff] %vm987, %v1522
        %1571 = vst.msk [vmem:[#allocation3 + $0x170] sm:$0xff] %vm987, %v1523
        %1572 = vst.msk [vmem:[#allocation3 + $0x178] sm:$0xff] %vm987, %v1524
        %p1573 = scmp.eq.s32.totalorder %s40, 2
        // Predicated region
        $region121: #{tpu_custom_call.1} parent=91 // pred_check
          %p1574 = pneg %p1573
        $region122: #{tpu_custom_call.1} parent=91 // pred_check_branch
          %1576 = sbr.rel (%p1574) target = $region124
        $region123: #{tpu_custom_call.1} parent=91 // pred_region
          %v1577 = vld [vmem:[#allocation3] sm:$0xff]
          %v1578 = vld [vmem:[#allocation3 + $0x8] sm:$0xff]
          %v1579 = vld [vmem:[#allocation3 + $0x10] sm:$0xff]
          %v1580 = vld [vmem:[#allocation3 + $0x18] sm:$0xff]
          %v1581 = vld [vmem:[#allocation3 + $0x20] sm:$0xff]
          %v1582 = vld [vmem:[#allocation3 + $0x28] sm:$0xff]
          %v1583 = vld [vmem:[#allocation3 + $0x30] sm:$0xff]
          %v1584 = vld [vmem:[#allocation3 + $0x38] sm:$0xff]
          %v1585 = vld [vmem:[#allocation3 + $0x40] sm:$0xff]
          %v1586 = vld [vmem:[#allocation3 + $0x48] sm:$0xff]
          %v1587 = vld [vmem:[#allocation3 + $0x50] sm:$0xff]
          %v1588 = vld [vmem:[#allocation3 + $0x58] sm:$0xff]
          %v1589 = vld [vmem:[#allocation3 + $0x60] sm:$0xff]
          %v1590 = vld [vmem:[#allocation3 + $0x68] sm:$0xff]
          %v1591 = vld [vmem:[#allocation3 + $0x70] sm:$0xff]
          %v1592 = vld [vmem:[#allocation3 + $0x78] sm:$0xff]
          %v1593 = vld [vmem:[#allocation3 + $0x80] sm:$0xff]
          %v1594 = vld [vmem:[#allocation3 + $0x88] sm:$0xff]
          %v1595 = vld [vmem:[#allocation3 + $0x90] sm:$0xff]
          %v1596 = vld [vmem:[#allocation3 + $0x98] sm:$0xff]
          %v1597 = vld [vmem:[#allocation3 + $0xa0] sm:$0xff]
          %v1598 = vld [vmem:[#allocation3 + $0xa8] sm:$0xff]
          %v1599 = vld [vmem:[#allocation3 + $0xb0] sm:$0xff]
          %v1600 = vld [vmem:[#allocation3 + $0xb8] sm:$0xff]
          %v1601 = vld [vmem:[#allocation3 + $0xc0] sm:$0xff]
          %v1602 = vld [vmem:[#allocation3 + $0xc8] sm:$0xff]
          %v1603 = vld [vmem:[#allocation3 + $0xd0] sm:$0xff]
          %v1604 = vld [vmem:[#allocation3 + $0xd8] sm:$0xff]
          %v1605 = vld [vmem:[#allocation3 + $0xe0] sm:$0xff]
          %v1606 = vld [vmem:[#allocation3 + $0xe8] sm:$0xff]
          %v1607 = vld [vmem:[#allocation3 + $0xf0] sm:$0xff]
          %v1608 = vld [vmem:[#allocation3 + $0xf8] sm:$0xff]
          %v1609 = vld [vmem:[#allocation3 + $0x100] sm:$0xff]
          %v1610 = vld [vmem:[#allocation3 + $0x108] sm:$0xff]
          %v1611 = vld [vmem:[#allocation3 + $0x110] sm:$0xff]
          %v1612 = vld [vmem:[#allocation3 + $0x118] sm:$0xff]
          %v1613 = vld [vmem:[#allocation3 + $0x120] sm:$0xff]
          %v1614 = vld [vmem:[#allocation3 + $0x128] sm:$0xff]
          %v1615 = vld [vmem:[#allocation3 + $0x130] sm:$0xff]
          %v1616 = vld [vmem:[#allocation3 + $0x138] sm:$0xff]
          %v1617 = vld [vmem:[#allocation3 + $0x140] sm:$0xff]
          %v1618 = vld [vmem:[#allocation3 + $0x148] sm:$0xff]
          %v1619 = vld [vmem:[#allocation3 + $0x150] sm:$0xff]
          %v1620 = vld [vmem:[#allocation3 + $0x158] sm:$0xff]
          %v1621 = vld [vmem:[#allocation3 + $0x160] sm:$0xff]
          %v1622 = vld [vmem:[#allocation3 + $0x168] sm:$0xff]
          %v1623 = vld [vmem:[#allocation3 + $0x170] sm:$0xff]
          %v1624 = vld [vmem:[#allocation3 + $0x178] sm:$0xff]
          %v1625 = vpack.c.bf16 %v1578, %v1577
          %v1626 = vpack.c.bf16 %v1580, %v1579
          %v1627 = vpack.c.bf16 %v1582, %v1581
          %v1628 = vpack.c.bf16 %v1584, %v1583
          %v1629 = vpack.c.bf16 %v1586, %v1585
          %v1630 = vpack.c.bf16 %v1588, %v1587
          %v1631 = vpack.c.bf16 %v1590, %v1589
          %v1632 = vpack.c.bf16 %v1592, %v1591
          %v1633 = vpack.c.bf16 %v1594, %v1593
          %v1634 = vpack.c.bf16 %v1596, %v1595
          %v1635 = vpack.c.bf16 %v1598, %v1597
          %v1636 = vpack.c.bf16 %v1600, %v1599
          %v1637 = vpack.c.bf16 %v1602, %v1601
          %v1638 = vpack.c.bf16 %v1604, %v1603
          %v1639 = vpack.c.bf16 %v1606, %v1605
          %v1640 = vpack.c.bf16 %v1608, %v1607
          %v1641 = vpack.c.bf16 %v1610, %v1609
          %v1642 = vpack.c.bf16 %v1612, %v1611
          %v1643 = vpack.c.bf16 %v1614, %v1613
          %v1644 = vpack.c.bf16 %v1616, %v1615
          %v1645 = vpack.c.bf16 %v1618, %v1617
          %v1646 = vpack.c.bf16 %v1620, %v1619
          %v1647 = vpack.c.bf16 %v1622, %v1621
          %v1648 = vpack.c.bf16 %v1624, %v1623
          %v1649 = vld [vmem:[#allocation8] sm:$0xf]
          %v1650 = vld [vmem:[#allocation8 + $0x4] sm:$0xf]
          %v1651 = vld [vmem:[#allocation8 + $0x8] sm:$0xf]
          %v1652 = vld [vmem:[#allocation8 + $0xc] sm:$0xf]
          %v1653 = vld [vmem:[#allocation8 + $0x10] sm:$0xf]
          %v1654 = vld [vmem:[#allocation8 + $0x14] sm:$0xf]
          %v1655 = vld [vmem:[#allocation8 + $0x18] sm:$0xf]
          %v1656 = vld [vmem:[#allocation8 + $0x1c] sm:$0xf]
          %v1657 = vld [vmem:[#allocation2] sm:$0xff]
          %v1658 = vld [vmem:[#allocation2 + $0x8] sm:$0xff]
          %v1659 = vld [vmem:[#allocation2 + $0x10] sm:$0xff]
          %v1660 = vld [vmem:[#allocation2 + $0x18] sm:$0xff]
          %v1661 = vld [vmem:[#allocation2 + $0x20] sm:$0xff]
          %v1662 = vld [vmem:[#allocation2 + $0x28] sm:$0xff]
          %v1663 = vld [vmem:[#allocation2 + $0x30] sm:$0xff]
          %v1664 = vld [vmem:[#allocation2 + $0x38] sm:$0xff]
          %v1665 = vld [vmem:[#allocation2 + $0x40] sm:$0xff]
          %v1666 = vld [vmem:[#allocation2 + $0x48] sm:$0xff]
          %v1667 = vld [vmem:[#allocation2 + $0x50] sm:$0xff]
          %v1668 = vld [vmem:[#allocation2 + $0x58] sm:$0xff]
          %v1669 = vld [vmem:[#allocation2 + $0x60] sm:$0xff]
          %v1670 = vld [vmem:[#allocation2 + $0x68] sm:$0xff]
          %v1671 = vld [vmem:[#allocation2 + $0x70] sm:$0xff]
          %v1672 = vld [vmem:[#allocation2 + $0x78] sm:$0xff]
          %v1673 = vld [vmem:[#allocation2 + $0x80] sm:$0xff]
          %v1674 = vld [vmem:[#allocation2 + $0x88] sm:$0xff]
          %v1675 = vld [vmem:[#allocation2 + $0x90] sm:$0xff]
          %v1676 = vld [vmem:[#allocation2 + $0x98] sm:$0xff]
          %v1677 = vld [vmem:[#allocation2 + $0xa0] sm:$0xff]
          %v1678 = vld [vmem:[#allocation2 + $0xa8] sm:$0xff]
          %v1679 = vld [vmem:[#allocation2 + $0xb0] sm:$0xff]
          %v1680 = vld [vmem:[#allocation2 + $0xb8] sm:$0xff]
          %v1681 = vld [vmem:[#allocation2 + $0xc0] sm:$0xff]
          %v1682 = vld [vmem:[#allocation2 + $0xc8] sm:$0xff]
          %v1683 = vld [vmem:[#allocation2 + $0xd0] sm:$0xff]
          %v1684 = vld [vmem:[#allocation2 + $0xd8] sm:$0xff]
          %v1685 = vld [vmem:[#allocation2 + $0xe0] sm:$0xff]
          %v1686 = vld [vmem:[#allocation2 + $0xe8] sm:$0xff]
          %v1687 = vld [vmem:[#allocation2 + $0xf0] sm:$0xff]
          %v1688 = vld [vmem:[#allocation2 + $0xf8] sm:$0xff]
          %v1689 = vld [vmem:[#allocation2 + $0x100] sm:$0xff]
          %v1690 = vld [vmem:[#allocation2 + $0x108] sm:$0xff]
          %v1691 = vld [vmem:[#allocation2 + $0x110] sm:$0xff]
          %v1692 = vld [vmem:[#allocation2 + $0x118] sm:$0xff]
          %v1693 = vld [vmem:[#allocation2 + $0x120] sm:$0xff]
          %v1694 = vld [vmem:[#allocation2 + $0x128] sm:$0xff]
          %v1695 = vld [vmem:[#allocation2 + $0x130] sm:$0xff]
          %v1696 = vld [vmem:[#allocation2 + $0x138] sm:$0xff]
          %v1697 = vld [vmem:[#allocation2 + $0x140] sm:$0xff]
          %v1698 = vld [vmem:[#allocation2 + $0x148] sm:$0xff]
          %v1699 = vld [vmem:[#allocation2 + $0x150] sm:$0xff]
          %v1700 = vld [vmem:[#allocation2 + $0x158] sm:$0xff]
          %v1701 = vld [vmem:[#allocation2 + $0x160] sm:$0xff]
          %v1702 = vld [vmem:[#allocation2 + $0x168] sm:$0xff]
          %v1703 = vld [vmem:[#allocation2 + $0x170] sm:$0xff]
          %v1704 = vld [vmem:[#allocation2 + $0x178] sm:$0xff]
          %v1705 = vpack.c.bf16 %v1658, %v1657
          %v1706 = vpack.c.bf16 %v1660, %v1659
          %v1707 = vpack.c.bf16 %v1662, %v1661
          %v1708 = vpack.c.bf16 %v1664, %v1663
          %v1709 = vpack.c.bf16 %v1666, %v1665
          %v1710 = vpack.c.bf16 %v1668, %v1667
          %v1711 = vpack.c.bf16 %v1670, %v1669
          %v1712 = vpack.c.bf16 %v1672, %v1671
          %v1713 = vpack.c.bf16 %v1674, %v1673
          %v1714 = vpack.c.bf16 %v1676, %v1675
          %v1715 = vpack.c.bf16 %v1678, %v1677
          %v1716 = vpack.c.bf16 %v1680, %v1679
          %v1717 = vpack.c.bf16 %v1682, %v1681
          %v1718 = vpack.c.bf16 %v1684, %v1683
          %v1719 = vpack.c.bf16 %v1686, %v1685
          %v1720 = vpack.c.bf16 %v1688, %v1687
          %v1721 = vpack.c.bf16 %v1690, %v1689
          %v1722 = vpack.c.bf16 %v1692, %v1691
          %v1723 = vpack.c.bf16 %v1694, %v1693
          %v1724 = vpack.c.bf16 %v1696, %v1695
          %v1725 = vpack.c.bf16 %v1698, %v1697
          %v1726 = vpack.c.bf16 %v1700, %v1699
          %v1727 = vpack.c.bf16 %v1702, %v1701
          %v1728 = vpack.c.bf16 %v1704, %v1703
          %v1729 = vld [vmem:[#allocation10] sm:$0xf]
          %v1730 = vld [vmem:[#allocation10 + $0x4] sm:$0xf]
          %v1731 = vld [vmem:[#allocation10 + $0x8] sm:$0xf]
          %v1732 = vld [vmem:[#allocation10 + $0xc] sm:$0xf]
          %v1733 = vld [vmem:[#allocation10 + $0x10] sm:$0xf]
          %v1734 = vld [vmem:[#allocation10 + $0x14] sm:$0xf]
          %v1735 = vld [vmem:[#allocation10 + $0x18] sm:$0xf]
          %v1736 = vld [vmem:[#allocation10 + $0x1c] sm:$0xf]
          %v1745 = vunpack.c.l.b16 %v1729
          %v1746 = vunpack.c.l.b16 %v1730
          %v1747 = vunpack.c.l.b16 %v1731
          %v1748 = vunpack.c.l.b16 %v1732
          %v1749 = vunpack.c.l.b16 %v1733
          %v1750 = vunpack.c.l.b16 %v1734
          %v1751 = vunpack.c.l.b16 %v1735
          %v1752 = vunpack.c.l.b16 %v1736
          %v1753 = vpack.c.b16 %v1746, %v1745
          %v1754 = vpack.c.b16 %v1748, %v1747
          %v1755 = vpack.c.b16 %v1750, %v1749
          %v1756 = vpack.c.b16 %v1752, %v1751
          %v1762 = vsel %vm987, %v1705, 0
          %v1765 = vsel %vm987, %v1706, 0
          %v1768 = vsel %vm987, %v1707, 0
          %v1771 = vsel %vm987, %v1708, 0
          %v1774 = vsel %vm987, %v1709, 0
          %v1777 = vsel %vm987, %v1710, 0
          %v1780 = vsel %vm987, %v1711, 0
          %v1783 = vsel %vm987, %v1712, 0
          %v1786 = vsel %vm987, %v1713, 0
          %v1789 = vsel %vm987, %v1714, 0
          %v1792 = vsel %vm987, %v1715, 0
          %v1795 = vsel %vm987, %v1716, 0
          %v1798 = vsel %vm987, %v1717, 0
          %v1801 = vsel %vm987, %v1718, 0
          %v1804 = vsel %vm987, %v1719, 0
          %v1807 = vsel %vm987, %v1720, 0
          %v1810 = vsel %vm987, %v1721, 0
          %v1813 = vsel %vm987, %v1722, 0
          %v1816 = vsel %vm987, %v1723, 0
          %v1819 = vsel %vm987, %v1724, 0
          %v1822 = vsel %vm987, %v1725, 0
          %v1825 = vsel %vm987, %v1726, 0
          %v1828 = vsel %vm987, %v1727, 0
          %v1831 = vsel %vm987, %v1728, 0
          %1833 = vmatprep.subr.bf16.mxu0 0
          %1834 = vmatpush1.bf16.msra.mxu0 %v1753
          %1835 = vmatprep.subr.bf16.mxu0 0
          %1836 = vmatpush1.bf16.msra.mxu0 %v1754
          %1837 = vmatprep.subr.bf16.mxu0 0
          %1838 = vmatpush1.bf16.msra.mxu0 %v1755
          %1839 = vmatprep.subr.bf16.mxu0 0
          %1840 = vmatpush1.bf16.msra.mxu0 %v1756
          %1841 = vmatprep.subr.bf16.mxu0 0
          %1842 = vmatpush1.bf16.msra.mxu0 0
          %1843 = vmatprep.subr.bf16.mxu0 0
          %1844 = vmatpush1.bf16.msra.mxu0 0
          %1845 = vmatprep.subr.bf16.mxu0 0
          %1846 = vmatpush1.bf16.msra.mxu0 0
          %1847 = vmatprep.subr.bf16.mxu0 0
          %1848 = vmatpush1.bf16.msra.mxu0 0
          %1849 = vmatprep.subr.bf16.mxu0 0
          %1850 = vmatpush1.bf16.msra.mxu0 0
          %1851 = vmatprep.subr.bf16.mxu0 0
          %1852 = vmatpush1.bf16.msra.mxu0 0
          %1853 = vmatprep.subr.bf16.mxu0 0
          %1854 = vmatpush1.bf16.msra.mxu0 0
          %1855 = vmatprep.subr.bf16.mxu0 0
          %1856 = vmatpush1.bf16.msra.mxu0 0
          %1857 = vmatprep.subr.bf16.mxu0 0
          %1858 = vmatpush1.bf16.msra.mxu0 0
          %1859 = vmatprep.subr.bf16.mxu0 0
          %1860 = vmatpush1.bf16.msra.mxu0 0
          %1861 = vmatprep.subr.bf16.mxu0 0
          %1862 = vmatpush1.bf16.msra.mxu0 0
          %1863 = vmatprep.subr.bf16.mxu0 0
          %1864 = vmatpush1.bf16.msra.mxu0 0
          %1865 = vmatprep.mubr.bf16.mxu0 0
          %1866 = vmatmul.mubr.bf16.gmra.mrb[0].mxu0 %v1762
          %v1867 = vpop.f32.mrb[0].mxu0
          %v1868 = vadd.f32 0.0, %v1867
          %v1869 = vpop.f32.mrb[0].mxu0
          %v1870 = vpop.f32.mrb[0].mxu0
          %v1871 = vadd.f32 0.0, %v1870
          %v1872 = vpop.f32.mrb[0].mxu0
          %1873 = vmatprep.mubr.bf16.mxu0 0
          %1874 = vmatmul.mubr.bf16.gmra.mrb[0].mxu0 %v1765
          %v1875 = vpop.f32.mrb[0].mxu0
          %v1876 = vadd.f32 0.0, %v1875
          %v1877 = vpop.f32.mrb[0].mxu0
          %v1878 = vpop.f32.mrb[0].mxu0
          %v1879 = vadd.f32 0.0, %v1878
          %v1880 = vpop.f32.mrb[0].mxu0
          %1881 = vmatprep.mubr.bf16.mxu0 0
          %1882 = vmatmul.mubr.bf16.gmra.mrb[0].mxu0 %v1768
          %v1883 = vpop.f32.mrb[0].mxu0
          %v1884 = vadd.f32 0.0, %v1883
          %v1885 = vpop.f32.mrb[0].mxu0
          %v1886 = vpop.f32.mrb[0].mxu0
          %v1887 = vadd.f32 0.0, %v1886
          %v1888 = vpop.f32.mrb[0].mxu0
          %1889 = vmatprep.mubr.bf16.mxu0 0
          %1890 = vmatmul.mubr.bf16.gmra.mrb[0].mxu0 %v1771
          %v1891 = vpop.f32.mrb[0].mxu0
          %v1892 = vadd.f32 0.0, %v1891
          %v1893 = vpop.f32.mrb[0].mxu0
          %v1894 = vpop.f32.mrb[0].mxu0
          %v1895 = vadd.f32 0.0, %v1894
          %v1896 = vpop.f32.mrb[0].mxu0
          %1897 = vmatprep.mubr.bf16.mxu0 0
          %1898 = vmatmul.mubr.bf16.gmra.mrb[0].mxu0 %v1774
          %v1899 = vpop.f32.mrb[0].mxu0
          %v1900 = vadd.f32 0.0, %v1899
          %v1901 = vpop.f32.mrb[0].mxu0
          %v1902 = vpop.f32.mrb[0].mxu0
          %v1903 = vadd.f32 0.0, %v1902
          %v1904 = vpop.f32.mrb[0].mxu0
          %1905 = vmatprep.mubr.bf16.mxu0 0
          %1906 = vmatmul.mubr.bf16.gmra.mrb[0].mxu0 %v1777
          %v1907 = vpop.f32.mrb[0].mxu0
          %v1908 = vadd.f32 0.0, %v1907
          %v1909 = vpop.f32.mrb[0].mxu0
          %v1910 = vpop.f32.mrb[0].mxu0
          %v1911 = vadd.f32 0.0, %v1910
          %v1912 = vpop.f32.mrb[0].mxu0
          %1913 = vmatprep.mubr.bf16.mxu0 0
          %1914 = vmatmul.mubr.bf16.gmra.mrb[0].mxu0 %v1780
          %v1915 = vpop.f32.mrb[0].mxu0
          %v1916 = vadd.f32 0.0, %v1915
          %v1917 = vpop.f32.mrb[0].mxu0
          %v1918 = vpop.f32.mrb[0].mxu0
          %v1919 = vadd.f32 0.0, %v1918
          %v1920 = vpop.f32.mrb[0].mxu0
          %1921 = vmatprep.mubr.bf16.mxu0 0
          %1922 = vmatmul.mubr.bf16.gmra.mrb[0].mxu0 %v1783
          %v1923 = vpop.f32.mrb[0].mxu0
          %v1924 = vadd.f32 0.0, %v1923
          %v1925 = vpop.f32.mrb[0].mxu0
          %v1926 = vpop.f32.mrb[0].mxu0
          %v1927 = vadd.f32 0.0, %v1926
          %v1928 = vpop.f32.mrb[0].mxu0
          %1929 = vmatprep.mubr.bf16.mxu0 0
          %1930 = vmatmul.mubr.bf16.gmra.mrb[0].mxu0 %v1786
          %v1931 = vpop.f32.mrb[0].mxu0
          %v1932 = vadd.f32 0.0, %v1931
          %v1933 = vpop.f32.mrb[0].mxu0
          %v1934 = vpop.f32.mrb[0].mxu0
          %v1935 = vadd.f32 0.0, %v1934
          %v1936 = vpop.f32.mrb[0].mxu0
          %1937 = vmatprep.mubr.bf16.mxu0 0
          %1938 = vmatmul.mubr.bf16.gmra.mrb[0].mxu0 %v1789
          %v1939 = vpop.f32.mrb[0].mxu0
          %v1940 = vadd.f32 0.0, %v1939
          %v1941 = vpop.f32.mrb[0].mxu0
          %v1942 = vpop.f32.mrb[0].mxu0
          %v1943 = vadd.f32 0.0, %v1942
          %v1944 = vpop.f32.mrb[0].mxu0
          %1945 = vmatprep.mubr.bf16.mxu0 0
          %1946 = vmatmul.mubr.bf16.gmra.mrb[0].mxu0 %v1792
          %v1947 = vpop.f32.mrb[0].mxu0
          %v1948 = vadd.f32 0.0, %v1947
          %v1949 = vpop.f32.mrb[0].mxu0
          %v1950 = vpop.f32.mrb[0].mxu0
          %v1951 = vadd.f32 0.0, %v1950
          %v1952 = vpop.f32.mrb[0].mxu0
          %1953 = vmatprep.mubr.bf16.mxu0 0
          %1954 = vmatmul.mubr.bf16.gmra.mrb[0].mxu0 %v1795
          %v1955 = vpop.f32.mrb[0].mxu0
          %v1956 = vadd.f32 0.0, %v1955
          %v1957 = vpop.f32.mrb[0].mxu0
          %v1958 = vpop.f32.mrb[0].mxu0
          %v1959 = vadd.f32 0.0, %v1958
          %v1960 = vpop.f32.mrb[0].mxu0
          %1961 = vmatprep.mubr.bf16.mxu0 0
          %1962 = vmatmul.mubr.bf16.gmra.mrb[0].mxu0 %v1798
          %v1963 = vpop.f32.mrb[0].mxu0
          %v1964 = vadd.f32 0.0, %v1963
          %v1965 = vpop.f32.mrb[0].mxu0
          %v1966 = vpop.f32.mrb[0].mxu0
          %v1967 = vadd.f32 0.0, %v1966
          %v1968 = vpop.f32.mrb[0].mxu0
          %1969 = vmatprep.mubr.bf16.mxu0 0
          %1970 = vmatmul.mubr.bf16.gmra.mrb[0].mxu0 %v1801
          %v1971 = vpop.f32.mrb[0].mxu0
          %v1972 = vadd.f32 0.0, %v1971
          %v1973 = vpop.f32.mrb[0].mxu0
          %v1974 = vpop.f32.mrb[0].mxu0
          %v1975 = vadd.f32 0.0, %v1974
          %v1976 = vpop.f32.mrb[0].mxu0
          %1977 = vmatprep.mubr.bf16.mxu0 0
          %1978 = vmatmul.mubr.bf16.gmra.mrb[0].mxu0 %v1804
          %v1979 = vpop.f32.mrb[0].mxu0
          %v1980 = vadd.f32 0.0, %v1979
          %v1981 = vpop.f32.mrb[0].mxu0
          %v1982 = vpop.f32.mrb[0].mxu0
          %v1983 = vadd.f32 0.0, %v1982
          %v1984 = vpop.f32.mrb[0].mxu0
          %1985 = vmatprep.mubr.bf16.mxu0 0
          %1986 = vmatmul.mubr.bf16.gmra.mrb[0].mxu0 %v1807
          %v1987 = vpop.f32.mrb[0].mxu0
          %v1988 = vadd.f32 0.0, %v1987
          %v1989 = vpop.f32.mrb[0].mxu0
          %v1990 = vpop.f32.mrb[0].mxu0
          %v1991 = vadd.f32 0.0, %v1990
          %v1992 = vpop.f32.mrb[0].mxu0
          %1993 = vmatprep.mubr.bf16.mxu0 0
          %1994 = vmatmul.mubr.bf16.gmra.mrb[0].mxu0 %v1810
          %v1995 = vpop.f32.mrb[0].mxu0
          %v1996 = vadd.f32 0.0, %v1995
          %v1997 = vpop.f32.mrb[0].mxu0
          %v1998 = vpop.f32.mrb[0].mxu0
          %v1999 = vadd.f32 0.0, %v1998
          %v2000 = vpop.f32.mrb[0].mxu0
          %2001 = vmatprep.mubr.bf16.mxu0 0
          %2002 = vmatmul.mubr.bf16.gmra.mrb[0].mxu0 %v1813
          %v2003 = vpop.f32.mrb[0].mxu0
          %v2004 = vadd.f32 0.0, %v2003
          %v2005 = vpop.f32.mrb[0].mxu0
          %v2006 = vpop.f32.mrb[0].mxu0
          %v2007 = vadd.f32 0.0, %v2006
          %v2008 = vpop.f32.mrb[0].mxu0
          %2009 = vmatprep.mubr.bf16.mxu0 0
          %2010 = vmatmul.mubr.bf16.gmra.mrb[0].mxu0 %v1816
          %v2011 = vpop.f32.mrb[0].mxu0
          %v2012 = vadd.f32 0.0, %v2011
          %v2013 = vpop.f32.mrb[0].mxu0
          %v2014 = vpop.f32.mrb[0].mxu0
          %v2015 = vadd.f32 0.0, %v2014
          %v2016 = vpop.f32.mrb[0].mxu0
          %2017 = vmatprep.mubr.bf16.mxu0 0
          %2018 = vmatmul.mubr.bf16.gmra.mrb[0].mxu0 %v1819
          %v2019 = vpop.f32.mrb[0].mxu0
          %v2020 = vadd.f32 0.0, %v2019
          %v2021 = vpop.f32.mrb[0].mxu0
          %v2022 = vpop.f32.mrb[0].mxu0
          %v2023 = vadd.f32 0.0, %v2022
          %v2024 = vpop.f32.mrb[0].mxu0
          %2025 = vmatprep.mubr.bf16.mxu0 0
          %2026 = vmatmul.mubr.bf16.gmra.mrb[0].mxu0 %v1822
          %v2027 = vpop.f32.mrb[0].mxu0
          %v2028 = vadd.f32 0.0, %v2027
          %v2029 = vpop.f32.mrb[0].mxu0
          %v2030 = vpop.f32.mrb[0].mxu0
          %v2031 = vadd.f32 0.0, %v2030
          %v2032 = vpop.f32.mrb[0].mxu0
          %2033 = vmatprep.mubr.bf16.mxu0 0
          %2034 = vmatmul.mubr.bf16.gmra.mrb[0].mxu0 %v1825
          %v2035 = vpop.f32.mrb[0].mxu0
          %v2036 = vadd.f32 0.0, %v2035
          %v2037 = vpop.f32.mrb[0].mxu0
          %v2038 = vpop.f32.mrb[0].mxu0
          %v2039 = vadd.f32 0.0, %v2038
          %v2040 = vpop.f32.mrb[0].mxu0
          %2041 = vmatprep.mubr.bf16.mxu0 0
          %2042 = vmatmul.mubr.bf16.gmra.mrb[0].mxu0 %v1828
          %v2043 = vpop.f32.mrb[0].mxu0
          %v2044 = vadd.f32 0.0, %v2043
          %v2045 = vpop.f32.mrb[0].mxu0
          %v2046 = vpop.f32.mrb[0].mxu0
          %v2047 = vadd.f32 0.0, %v2046
          %v2048 = vpop.f32.mrb[0].mxu0
          %2049 = vmatprep.mubr.bf16.mxu0 0
          %2050 = vmatmul.mubr.bf16.gmra.mrb[0].mxu0 %v1831
          %v2051 = vpop.f32.mrb[0].mxu0
          %v2052 = vadd.f32 0.0, %v2051
          %v2053 = vpop.f32.mrb[0].mxu0
          %v2054 = vpop.f32.mrb[0].mxu0
          %v2055 = vadd.f32 0.0, %v2054
          %v2056 = vpop.f32.mrb[0].mxu0
          %2057 = vdwg.mxu0
          %v2066 = vunpack.c.l.b16 %v1649
          %v2067 = vunpack.c.l.b16 %v1650
          %v2068 = vunpack.c.l.b16 %v1651
          %v2069 = vunpack.c.l.b16 %v1652
          %v2070 = vunpack.c.l.b16 %v1653
          %v2071 = vunpack.c.l.b16 %v1654
          %v2072 = vunpack.c.l.b16 %v1655
          %v2073 = vunpack.c.l.b16 %v1656
          %v2074 = vpack.c.b16 %v2067, %v2066
          %v2075 = vpack.c.b16 %v2069, %v2068
          %v2076 = vpack.c.b16 %v2071, %v2070
          %v2077 = vpack.c.b16 %v2073, %v2072
          %v2083 = vsel %vm987, %v1625, 0
          %v2086 = vsel %vm987, %v1626, 0
          %v2089 = vsel %vm987, %v1627, 0
          %v2092 = vsel %vm987, %v1628, 0
          %v2095 = vsel %vm987, %v1629, 0
          %v2098 = vsel %vm987, %v1630, 0
          %v2101 = vsel %vm987, %v1631, 0
          %v2104 = vsel %vm987, %v1632, 0
          %v2107 = vsel %vm987, %v1633, 0
          %v2110 = vsel %vm987, %v1634, 0
          %v2113 = vsel %vm987, %v1635, 0
          %v2116 = vsel %vm987, %v1636, 0
          %v2119 = vsel %vm987, %v1637, 0
          %v2122 = vsel %vm987, %v1638, 0
          %v2125 = vsel %vm987, %v1639, 0
          %v2128 = vsel %vm987, %v1640, 0
          %v2131 = vsel %vm987, %v1641, 0
          %v2134 = vsel %vm987, %v1642, 0
          %v2137 = vsel %vm987, %v1643, 0
          %v2140 = vsel %vm987, %v1644, 0
          %v2143 = vsel %vm987, %v1645, 0
          %v2146 = vsel %vm987, %v1646, 0
          %v2149 = vsel %vm987, %v1647, 0
          %v2152 = vsel %vm987, %v1648, 0
          %2154 = vmatprep.subr.bf16.mxu0 0
          %2155 = vmatpush1.bf16.msra.mxu0 %v2074
          %2156 = vmatprep.subr.bf16.mxu0 0
          %2157 = vmatpush1.bf16.msra.mxu0 %v2075
          %2158 = vmatprep.subr.bf16.mxu0 0
          %2159 = vmatpush1.bf16.msra.mxu0 %v2076
          %2160 = vmatprep.subr.bf16.mxu0 0
          %2161 = vmatpush1.bf16.msra.mxu0 %v2077
          %2162 = vmatprep.subr.bf16.mxu0 0
          %2163 = vmatpush1.bf16.msra.mxu0 0
          %2164 = vmatprep.subr.bf16.mxu0 0
          %2165 = vmatpush1.bf16.msra.mxu0 0
          %2166 = vmatprep.subr.bf16.mxu0 0
          %2167 = vmatpush1.bf16.msra.mxu0 0
          %2168 = vmatprep.subr.bf16.mxu0 0
          %2169 = vmatpush1.bf16.msra.mxu0 0
          %2170 = vmatprep.subr.bf16.mxu0 0
          %2171 = vmatpush1.bf16.msra.mxu0 0
          %2172 = vmatprep.subr.bf16.mxu0 0
          %2173 = vmatpush1.bf16.msra.mxu0 0
          %2174 = vmatprep.subr.bf16.mxu0 0
          %2175 = vmatpush1.bf16.msra.mxu0 0
          %2176 = vmatprep.subr.bf16.mxu0 0
          %2177 = vmatpush1.bf16.msra.mxu0 0
          %2178 = vmatprep.subr.bf16.mxu0 0
          %2179 = vmatpush1.bf16.msra.mxu0 0
          %2180 = vmatprep.subr.bf16.mxu0 0
          %2181 = vmatpush1.bf16.msra.mxu0 0
          %2182 = vmatprep.subr.bf16.mxu0 0
          %2183 = vmatpush1.bf16.msra.mxu0 0
          %2184 = vmatprep.subr.bf16.mxu0 0
          %2185 = vmatpush1.bf16.msra.mxu0 0
          %2186 = vmatprep.mubr.bf16.mxu0 0
          %2187 = vmatmul.mubr.bf16.gmra.mrb[0].mxu0 %v2083
          %v2188 = vpop.f32.mrb[0].mxu0
          %v2189 = vadd.f32 %v1868, %v2188
          %v2190 = vpop.f32.mrb[0].mxu0
          %v2191 = vpop.f32.mrb[0].mxu0
          %v2192 = vadd.f32 %v1871, %v2191
          %v2193 = vpop.f32.mrb[0].mxu0
          %2194 = vmatprep.mubr.bf16.mxu0 0
          %2195 = vmatmul.mubr.bf16.gmra.mrb[0].mxu0 %v2086
          %v2196 = vpop.f32.mrb[0].mxu0
          %v2197 = vadd.f32 %v1876, %v2196
          %v2198 = vpop.f32.mrb[0].mxu0
          %v2199 = vpop.f32.mrb[0].mxu0
          %v2200 = vadd.f32 %v1879, %v2199
          %v2201 = vpop.f32.mrb[0].mxu0
          %2202 = vmatprep.mubr.bf16.mxu0 0
          %2203 = vmatmul.mubr.bf16.gmra.mrb[0].mxu0 %v2089
          %v2204 = vpop.f32.mrb[0].mxu0
          %v2205 = vadd.f32 %v1884, %v2204
          %v2206 = vpop.f32.mrb[0].mxu0
          %v2207 = vpop.f32.mrb[0].mxu0
          %v2208 = vadd.f32 %v1887, %v2207
          %v2209 = vpop.f32.mrb[0].mxu0
          %2210 = vmatprep.mubr.bf16.mxu0 0
          %2211 = vmatmul.mubr.bf16.gmra.mrb[0].mxu0 %v2092
          %v2212 = vpop.f32.mrb[0].mxu0
          %v2213 = vadd.f32 %v1892, %v2212
          %v2214 = vpop.f32.mrb[0].mxu0
          %v2215 = vpop.f32.mrb[0].mxu0
          %v2216 = vadd.f32 %v1895, %v2215
          %v2217 = vpop.f32.mrb[0].mxu0
          %2218 = vmatprep.mubr.bf16.mxu0 0
          %2219 = vmatmul.mubr.bf16.gmra.mrb[0].mxu0 %v2095
          %v2220 = vpop.f32.mrb[0].mxu0
          %v2221 = vadd.f32 %v1900, %v2220
          %v2222 = vpop.f32.mrb[0].mxu0
          %v2223 = vpop.f32.mrb[0].mxu0
          %v2224 = vadd.f32 %v1903, %v2223
          %v2225 = vpop.f32.mrb[0].mxu0
          %2226 = vmatprep.mubr.bf16.mxu0 0
          %2227 = vmatmul.mubr.bf16.gmra.mrb[0].mxu0 %v2098
          %v2228 = vpop.f32.mrb[0].mxu0
          %v2229 = vadd.f32 %v1908, %v2228
          %v2230 = vpop.f32.mrb[0].mxu0
          %v2231 = vpop.f32.mrb[0].mxu0
          %v2232 = vadd.f32 %v1911, %v2231
          %v2233 = vpop.f32.mrb[0].mxu0
          %2234 = vmatprep.mubr.bf16.mxu0 0
          %2235 = vmatmul.mubr.bf16.gmra.mrb[0].mxu0 %v2101
          %v2236 = vpop.f32.mrb[0].mxu0
          %v2237 = vadd.f32 %v1916, %v2236
          %v2238 = vpop.f32.mrb[0].mxu0
          %v2239 = vpop.f32.mrb[0].mxu0
          %v2240 = vadd.f32 %v1919, %v2239
          %v2241 = vpop.f32.mrb[0].mxu0
          %2242 = vmatprep.mubr.bf16.mxu0 0
          %2243 = vmatmul.mubr.bf16.gmra.mrb[0].mxu0 %v2104
          %v2244 = vpop.f32.mrb[0].mxu0
          %v2245 = vadd.f32 %v1924, %v2244
          %v2246 = vpop.f32.mrb[0].mxu0
          %v2247 = vpop.f32.mrb[0].mxu0
          %v2248 = vadd.f32 %v1927, %v2247
          %v2249 = vpop.f32.mrb[0].mxu0
          %2250 = vmatprep.mubr.bf16.mxu0 0
          %2251 = vmatmul.mubr.bf16.gmra.mrb[0].mxu0 %v2107
          %v2252 = vpop.f32.mrb[0].mxu0
          %v2253 = vadd.f32 %v1932, %v2252
          %v2254 = vpop.f32.mrb[0].mxu0
          %v2255 = vpop.f32.mrb[0].mxu0
          %v2256 = vadd.f32 %v1935, %v2255
          %v2257 = vpop.f32.mrb[0].mxu0
          %2258 = vmatprep.mubr.bf16.mxu0 0
          %2259 = vmatmul.mubr.bf16.gmra.mrb[0].mxu0 %v2110
          %v2260 = vpop.f32.mrb[0].mxu0
          %v2261 = vadd.f32 %v1940, %v2260
          %v2262 = vpop.f32.mrb[0].mxu0
          %v2263 = vpop.f32.mrb[0].mxu0
          %v2264 = vadd.f32 %v1943, %v2263
          %v2265 = vpop.f32.mrb[0].mxu0
          %2266 = vmatprep.mubr.bf16.mxu0 0
          %2267 = vmatmul.mubr.bf16.gmra.mrb[0].mxu0 %v2113
          %v2268 = vpop.f32.mrb[0].mxu0
          %v2269 = vadd.f32 %v1948, %v2268
          %v2270 = vpop.f32.mrb[0].mxu0
          %v2271 = vpop.f32.mrb[0].mxu0
          %v2272 = vadd.f32 %v1951, %v2271
          %v2273 = vpop.f32.mrb[0].mxu0
          %2274 = vmatprep.mubr.bf16.mxu0 0
          %2275 = vmatmul.mubr.bf16.gmra.mrb[0].mxu0 %v2116
          %v2276 = vpop.f32.mrb[0].mxu0
          %v2277 = vadd.f32 %v1956, %v2276
          %v2278 = vpop.f32.mrb[0].mxu0
          %v2279 = vpop.f32.mrb[0].mxu0
          %v2280 = vadd.f32 %v1959, %v2279
          %v2281 = vpop.f32.mrb[0].mxu0
          %2282 = vmatprep.mubr.bf16.mxu0 0
          %2283 = vmatmul.mubr.bf16.gmra.mrb[0].mxu0 %v2119
          %v2284 = vpop.f32.mrb[0].mxu0
          %v2285 = vadd.f32 %v1964, %v2284
          %v2286 = vpop.f32.mrb[0].mxu0
          %v2287 = vpop.f32.mrb[0].mxu0
          %v2288 = vadd.f32 %v1967, %v2287
          %v2289 = vpop.f32.mrb[0].mxu0
          %2290 = vmatprep.mubr.bf16.mxu0 0
          %2291 = vmatmul.mubr.bf16.gmra.mrb[0].mxu0 %v2122
          %v2292 = vpop.f32.mrb[0].mxu0
          %v2293 = vadd.f32 %v1972, %v2292
          %v2294 = vpop.f32.mrb[0].mxu0
          %v2295 = vpop.f32.mrb[0].mxu0
          %v2296 = vadd.f32 %v1975, %v2295
          %v2297 = vpop.f32.mrb[0].mxu0
          %2298 = vmatprep.mubr.bf16.mxu0 0
          %2299 = vmatmul.mubr.bf16.gmra.mrb[0].mxu0 %v2125
          %v2300 = vpop.f32.mrb[0].mxu0
          %v2301 = vadd.f32 %v1980, %v2300
          %v2302 = vpop.f32.mrb[0].mxu0
          %v2303 = vpop.f32.mrb[0].mxu0
          %v2304 = vadd.f32 %v1983, %v2303
          %v2305 = vpop.f32.mrb[0].mxu0
          %2306 = vmatprep.mubr.bf16.mxu0 0
          %2307 = vmatmul.mubr.bf16.gmra.mrb[0].mxu0 %v2128
          %v2308 = vpop.f32.mrb[0].mxu0
          %v2309 = vadd.f32 %v1988, %v2308
          %v2310 = vpop.f32.mrb[0].mxu0
          %v2311 = vpop.f32.mrb[0].mxu0
          %v2312 = vadd.f32 %v1991, %v2311
          %v2313 = vpop.f32.mrb[0].mxu0
          %2314 = vmatprep.mubr.bf16.mxu0 0
          %2315 = vmatmul.mubr.bf16.gmra.mrb[0].mxu0 %v2131
          %v2316 = vpop.f32.mrb[0].mxu0
          %v2317 = vadd.f32 %v1996, %v2316
          %v2318 = vpop.f32.mrb[0].mxu0
          %v2319 = vpop.f32.mrb[0].mxu0
          %v2320 = vadd.f32 %v1999, %v2319
          %v2321 = vpop.f32.mrb[0].mxu0
          %2322 = vmatprep.mubr.bf16.mxu0 0
          %2323 = vmatmul.mubr.bf16.gmra.mrb[0].mxu0 %v2134
          %v2324 = vpop.f32.mrb[0].mxu0
          %v2325 = vadd.f32 %v2004, %v2324
          %v2326 = vpop.f32.mrb[0].mxu0
          %v2327 = vpop.f32.mrb[0].mxu0
          %v2328 = vadd.f32 %v2007, %v2327
          %v2329 = vpop.f32.mrb[0].mxu0
          %2330 = vmatprep.mubr.bf16.mxu0 0
          %2331 = vmatmul.mubr.bf16.gmra.mrb[0].mxu0 %v2137
          %v2332 = vpop.f32.mrb[0].mxu0
          %v2333 = vadd.f32 %v2012, %v2332
          %v2334 = vpop.f32.mrb[0].mxu0
          %v2335 = vpop.f32.mrb[0].mxu0
          %v2336 = vadd.f32 %v2015, %v2335
          %v2337 = vpop.f32.mrb[0].mxu0
          %2338 = vmatprep.mubr.bf16.mxu0 0
          %2339 = vmatmul.mubr.bf16.gmra.mrb[0].mxu0 %v2140
          %v2340 = vpop.f32.mrb[0].mxu0
          %v2341 = vadd.f32 %v2020, %v2340
          %v2342 = vpop.f32.mrb[0].mxu0
          %v2343 = vpop.f32.mrb[0].mxu0
          %v2344 = vadd.f32 %v2023, %v2343
          %v2345 = vpop.f32.mrb[0].mxu0
          %2346 = vmatprep.mubr.bf16.mxu0 0
          %2347 = vmatmul.mubr.bf16.gmra.mrb[0].mxu0 %v2143
          %v2348 = vpop.f32.mrb[0].mxu0
          %v2349 = vadd.f32 %v2028, %v2348
          %v2350 = vpop.f32.mrb[0].mxu0
          %v2351 = vpop.f32.mrb[0].mxu0
          %v2352 = vadd.f32 %v2031, %v2351
          %v2353 = vpop.f32.mrb[0].mxu0
          %2354 = vmatprep.mubr.bf16.mxu0 0
          %2355 = vmatmul.mubr.bf16.gmra.mrb[0].mxu0 %v2146
          %v2356 = vpop.f32.mrb[0].mxu0
          %v2357 = vadd.f32 %v2036, %v2356
          %v2358 = vpop.f32.mrb[0].mxu0
          %v2359 = vpop.f32.mrb[0].mxu0
          %v2360 = vadd.f32 %v2039, %v2359
          %v2361 = vpop.f32.mrb[0].mxu0
          %2362 = vmatprep.mubr.bf16.mxu0 0
          %2363 = vmatmul.mubr.bf16.gmra.mrb[0].mxu0 %v2149
          %v2364 = vpop.f32.mrb[0].mxu0
          %v2365 = vadd.f32 %v2044, %v2364
          %v2366 = vpop.f32.mrb[0].mxu0
          %v2367 = vpop.f32.mrb[0].mxu0
          %v2368 = vadd.f32 %v2047, %v2367
          %v2369 = vpop.f32.mrb[0].mxu0
          %2370 = vmatprep.mubr.bf16.mxu0 0
          %2371 = vmatmul.mubr.bf16.gmra.mrb[0].mxu0 %v2152
          %v2372 = vpop.f32.mrb[0].mxu0
          %v2373 = vadd.f32 %v2052, %v2372
          %v2374 = vpop.f32.mrb[0].mxu0
          %v2375 = vpop.f32.mrb[0].mxu0
          %v2376 = vadd.f32 %v2055, %v2375
          %v2377 = vpop.f32.mrb[0].mxu0
          %2378 = vdwg.mxu0
          %v2379 = vld [vmem:[#allocation11] sm:$0x1]
          %v2381 = vlaneseq
          %v2382 = vshrl.u32 %v2381, 7
          %v2383 = vsub.s32 0, %v2382
          %v2384 = vrot.slane %v2379, %v2383
          %v2386 = vadd.f32 %v2189, %v2384
          %v2387 = vadd.f32 %v2192, %v2384
          %v2388 = vadd.f32 %v2197, %v2384
          %v2389 = vadd.f32 %v2200, %v2384
          %v2390 = vadd.f32 %v2205, %v2384
          %v2391 = vadd.f32 %v2208, %v2384
          %v2392 = vadd.f32 %v2213, %v2384
          %v2393 = vadd.f32 %v2216, %v2384
          %v2394 = vadd.f32 %v2221, %v2384
          %v2395 = vadd.f32 %v2224, %v2384
          %v2396 = vadd.f32 %v2229, %v2384
          %v2397 = vadd.f32 %v2232, %v2384
          %v2398 = vadd.f32 %v2237, %v2384
          %v2399 = vadd.f32 %v2240, %v2384
          %v2400 = vadd.f32 %v2245, %v2384
          %v2401 = vadd.f32 %v2248, %v2384
          %v2402 = vadd.f32 %v2253, %v2384
          %v2403 = vadd.f32 %v2256, %v2384
          %v2404 = vadd.f32 %v2261, %v2384
          %v2405 = vadd.f32 %v2264, %v2384
          %v2406 = vadd.f32 %v2269, %v2384
          %v2407 = vadd.f32 %v2272, %v2384
          %v2408 = vadd.f32 %v2277, %v2384
          %v2409 = vadd.f32 %v2280, %v2384
          %v2410 = vadd.f32 %v2285, %v2384
          %v2411 = vadd.f32 %v2288, %v2384
          %v2412 = vadd.f32 %v2293, %v2384
          %v2413 = vadd.f32 %v2296, %v2384
          %v2414 = vadd.f32 %v2301, %v2384
          %v2415 = vadd.f32 %v2304, %v2384
          %v2416 = vadd.f32 %v2309, %v2384
          %v2417 = vadd.f32 %v2312, %v2384
          %v2418 = vadd.f32 %v2317, %v2384
          %v2419 = vadd.f32 %v2320, %v2384
          %v2420 = vadd.f32 %v2325, %v2384
          %v2421 = vadd.f32 %v2328, %v2384
          %v2422 = vadd.f32 %v2333, %v2384
          %v2423 = vadd.f32 %v2336, %v2384
          %v2424 = vadd.f32 %v2341, %v2384
          %v2425 = vadd.f32 %v2344, %v2384
          %v2426 = vadd.f32 %v2349, %v2384
          %v2427 = vadd.f32 %v2352, %v2384
          %v2428 = vadd.f32 %v2357, %v2384
          %v2429 = vadd.f32 %v2360, %v2384
          %v2430 = vadd.f32 %v2365, %v2384
          %v2431 = vadd.f32 %v2368, %v2384
          %v2432 = vadd.f32 %v2373, %v2384
          %v2433 = vadd.f32 %v2376, %v2384
          %v2434 = vld [vmem:[#allocation13] sm:$0xff]
          %v2435 = vld [vmem:[#allocation13 + $0x8] sm:$0xf]
          %v2436 = vpack.c.bf16 %v2387, %v2386
          %v2437 = vpack.c.bf16 %v2389, %v2388
          %v2438 = vpack.c.bf16 %v2391, %v2390
          %v2439 = vpack.c.bf16 %v2393, %v2392
          %v2440 = vpack.c.bf16 %v2395, %v2394
          %v2441 = vpack.c.bf16 %v2397, %v2396
          %v2442 = vpack.c.bf16 %v2399, %v2398
          %v2443 = vpack.c.bf16 %v2401, %v2400
          %v2444 = vpack.c.bf16 %v2403, %v2402
          %v2445 = vpack.c.bf16 %v2405, %v2404
          %v2446 = vpack.c.bf16 %v2407, %v2406
          %v2447 = vpack.c.bf16 %v2409, %v2408
          %v2448 = vpack.c.bf16 %v2411, %v2410
          %v2449 = vpack.c.bf16 %v2413, %v2412
          %v2450 = vpack.c.bf16 %v2415, %v2414
          %v2451 = vpack.c.bf16 %v2417, %v2416
          %v2452 = vpack.c.bf16 %v2419, %v2418
          %v2453 = vpack.c.bf16 %v2421, %v2420
          %v2454 = vpack.c.bf16 %v2423, %v2422
          %v2455 = vpack.c.bf16 %v2425, %v2424
          %v2456 = vpack.c.bf16 %v2427, %v2426
          %v2457 = vpack.c.bf16 %v2429, %v2428
          %v2458 = vpack.c.bf16 %v2431, %v2430
          %v2459 = vpack.c.bf16 %v2433, %v2432
          %v2462 = vunpack.c.l.b16 %v2434
          %v2463 = vunpack.c.h.b16 %v2434
          %v2464 = vunpack.c.l.b16 %v2435
          %v2465 = vpack.c.b16 %v2462, %v2462
          %v2466 = vpack.c.b16 %v2463, %v2463
          %v2467 = vpack.c.b16 %v2464, %v2464
          %2471 = vmatprep.subr.bf16.mxu0 0
          %2472 = vmatpush1.bf16.msra.mxu0 %v2436
          %2473 = vmatprep.subr.bf16.mxu0 0
          %2474 = vmatpush1.bf16.msra.mxu0 %v2437
          %2475 = vmatprep.subr.bf16.mxu0 0
          %2476 = vmatpush1.bf16.msra.mxu0 %v2438
          %2477 = vmatprep.subr.bf16.mxu0 0
          %2478 = vmatpush1.bf16.msra.mxu0 %v2439
          %2479 = vmatprep.subr.bf16.mxu0 0
          %2480 = vmatpush1.bf16.msra.mxu0 %v2440
          %2481 = vmatprep.subr.bf16.mxu0 0
          %2482 = vmatpush1.bf16.msra.mxu0 %v2441
          %2483 = vmatprep.subr.bf16.mxu0 0
          %2484 = vmatpush1.bf16.msra.mxu0 %v2442
          %2485 = vmatprep.subr.bf16.mxu0 0
          %2486 = vmatpush1.bf16.msra.mxu0 %v2443
          %2487 = vmatprep.subr.bf16.mxu0 0
          %2488 = vmatpush1.bf16.msra.mxu0 %v2444
          %2489 = vmatprep.subr.bf16.mxu0 0
          %2490 = vmatpush1.bf16.msra.mxu0 %v2445
          %2491 = vmatprep.subr.bf16.mxu0 0
          %2492 = vmatpush1.bf16.msra.mxu0 %v2446
          %2493 = vmatprep.subr.bf16.mxu0 0
          %2494 = vmatpush1.bf16.msra.mxu0 %v2447
          %2495 = vmatprep.subr.bf16.mxu0 0
          %2496 = vmatpush1.bf16.msra.mxu0 %v2448
          %2497 = vmatprep.subr.bf16.mxu0 0
          %2498 = vmatpush1.bf16.msra.mxu0 %v2449
          %2499 = vmatprep.subr.bf16.mxu0 0
          %2500 = vmatpush1.bf16.msra.mxu0 %v2450
          %2501 = vmatprep.subr.bf16.mxu0 0
          %2502 = vmatpush1.bf16.msra.mxu0 %v2451
          %2503 = vmatprep.mubr.bf16.mxu0 %v2466
          %2504 = vmatmul.mubr.bf16.gmra.mrb[0].mxu0 %v2465
          %v2505 = vpop.f32.mrb[0].mxu0
          %v2506 = vadd.f32 0.0, %v2505
          %v2507 = vpop.f32.mrb[0].mxu0
          %v2508 = vpop.f32.mrb[0].mxu0
          %v2509 = vpop.f32.mrb[0].mxu0
          %2510 = vdwg.mxu0
          %2511 = vmatprep.subr.bf16.mxu0 0
          %2512 = vmatpush1.bf16.msra.mxu0 %v2452
          %2513 = vmatprep.subr.bf16.mxu0 0
          %2514 = vmatpush1.bf16.msra.mxu0 %v2453
          %2515 = vmatprep.subr.bf16.mxu0 0
          %2516 = vmatpush1.bf16.msra.mxu0 %v2454
          %2517 = vmatprep.subr.bf16.mxu0 0
          %2518 = vmatpush1.bf16.msra.mxu0 %v2455
          %2519 = vmatprep.subr.bf16.mxu0 0
          %2520 = vmatpush1.bf16.msra.mxu0 %v2456
          %2521 = vmatprep.subr.bf16.mxu0 0
          %2522 = vmatpush1.bf16.msra.mxu0 %v2457
          %2523 = vmatprep.subr.bf16.mxu0 0
          %2524 = vmatpush1.bf16.msra.mxu0 %v2458
          %2525 = vmatprep.subr.bf16.mxu0 0
          %2526 = vmatpush1.bf16.msra.mxu0 %v2459
          %2527 = vmatprep.subr.bf16.mxu0 0
          %2528 = vmatpush1.bf16.msra.mxu0 0
          %2529 = vmatprep.subr.bf16.mxu0 0
          %2530 = vmatpush1.bf16.msra.mxu0 0
          %2531 = vmatprep.subr.bf16.mxu0 0
          %2532 = vmatpush1.bf16.msra.mxu0 0
          %2533 = vmatprep.subr.bf16.mxu0 0
          %2534 = vmatpush1.bf16.msra.mxu0 0
          %2535 = vmatprep.subr.bf16.mxu0 0
          %2536 = vmatpush1.bf16.msra.mxu0 0
          %2537 = vmatprep.subr.bf16.mxu0 0
          %2538 = vmatpush1.bf16.msra.mxu0 0
          %2539 = vmatprep.subr.bf16.mxu0 0
          %2540 = vmatpush1.bf16.msra.mxu0 0
          %2541 = vmatprep.subr.bf16.mxu0 0
          %2542 = vmatpush1.bf16.msra.mxu0 0
          %2543 = vmatprep.mubr.bf16.mxu0 0
          %2544 = vmatmul.mubr.bf16.gmra.mrb[0].mxu0 %v2467
          %v2545 = vpop.f32.mrb[0].mxu0
          %v2546 = vadd.f32 %v2506, %v2545
          %v2547 = vpop.f32.mrb[0].mxu0
          %v2548 = vpop.f32.mrb[0].mxu0
          %v2549 = vpop.f32.mrb[0].mxu0
          %2550 = vdwg.mxu0
          %v2551 = vld [vmem:[%s8] sm:$0xff]
          %2553 = vset.pattern.permute.xlu0 0
          %2554 = vperm.xlu0 %2553, %v2551
          %v2555 = vpop.permute.xlu0 %2554
          %v2557 = vmul.f32 %v2546, %v2555
          %2558 = vst.msk [vmem:[#allocation16] sm:$0xff] %vm987, %v2557
          %v2559 = vpack.c.bf16 %v2557, %v2557
          %v2560 = vld [vmem:[%s9] sm:$0xf]
          %vm2561 = vcmask 64512
          %v2563 = vsel %vm2561, %v2560, 0
          %vm2565 = vcmask 1043456
          %v2567 = vsel %vm2565, %v2559, 0
          %2569 = vmatprep.subr.bf16.mxu0 0
          %2570 = vmatpush1.bf16.msra.mxu0 %v2567
          %2571 = vmatprep.subr.bf16.mxu0 0
          %2572 = vmatpush1.bf16.msra.mxu0 0
          %2573 = vmatprep.subr.bf16.mxu0 0
          %2574 = vmatpush1.bf16.msra.mxu0 0
          %2575 = vmatprep.subr.bf16.mxu0 0
          %2576 = vmatpush1.bf16.msra.mxu0 0
          %2577 = vmatprep.subr.bf16.mxu0 0
          %2578 = vmatpush1.bf16.msra.mxu0 0
          %2579 = vmatprep.subr.bf16.mxu0 0
          %2580 = vmatpush1.bf16.msra.mxu0 0
          %2581 = vmatprep.subr.bf16.mxu0 0
          %2582 = vmatpush1.bf16.msra.mxu0 0
          %2583 = vmatprep.subr.bf16.mxu0 0
          %2584 = vmatpush1.bf16.msra.mxu0 0
          %2585 = vmatprep.subr.bf16.mxu0 0
          %2586 = vmatpush1.bf16.msra.mxu0 0
          %2587 = vmatprep.subr.bf16.mxu0 0
          %2588 = vmatpush1.bf16.msra.mxu0 0
          %2589 = vmatprep.subr.bf16.mxu0 0
          %2590 = vmatpush1.bf16.msra.mxu0 0
          %2591 = vmatprep.subr.bf16.mxu0 0
          %2592 = vmatpush1.bf16.msra.mxu0 0
          %2593 = vmatprep.subr.bf16.mxu0 0
          %2594 = vmatpush1.bf16.msra.mxu0 0
          %2595 = vmatprep.subr.bf16.mxu0 0
          %2596 = vmatpush1.bf16.msra.mxu0 0
          %2597 = vmatprep.subr.bf16.mxu0 0
          %2598 = vmatpush1.bf16.msra.mxu0 0
          %2599 = vmatprep.subr.bf16.mxu0 0
          %2600 = vmatpush1.bf16.msra.mxu0 0
          %2601 = vmatprep.mubr.bf16.mxu0 0
          %2602 = vmatmul.mubr.bf16.gmra.mrb[0].mxu0 %v2563
          %v2603 = vpop.f32.mrb[0].mxu0
          %v2604 = vadd.f32 0.0, %v2603
          %v2605 = vpop.f32.mrb[0].mxu0
          %v2606 = vpop.f32.mrb[0].mxu0
          %v2607 = vpop.f32.mrb[0].mxu0
          %2608 = vdwg.mxu0
          %v2609 = vld [vmem:[%s10] sm:$0xf]
          %v2611 = vsel %vm2561, %v2609, 0
          %2613 = vmatprep.subr.bf16.mxu0 0
          %2614 = vmatpush1.bf16.msra.mxu0 %v2567
          %2615 = vmatprep.subr.bf16.mxu0 0
          %2616 = vmatpush1.bf16.msra.mxu0 0
          %2617 = vmatprep.subr.bf16.mxu0 0
          %2618 = vmatpush1.bf16.msra.mxu0 0
          %2619 = vmatprep.subr.bf16.mxu0 0
          %2620 = vmatpush1.bf16.msra.mxu0 0
          %2621 = vmatprep.subr.bf16.mxu0 0
          %2622 = vmatpush1.bf16.msra.mxu0 0
          %2623 = vmatprep.subr.bf16.mxu0 0
          %2624 = vmatpush1.bf16.msra.mxu0 0
          %2625 = vmatprep.subr.bf16.mxu0 0
          %2626 = vmatpush1.bf16.msra.mxu0 0
          %2627 = vmatprep.subr.bf16.mxu0 0
          %2628 = vmatpush1.bf16.msra.mxu0 0
          %2629 = vmatprep.subr.bf16.mxu0 0
          %2630 = vmatpush1.bf16.msra.mxu0 0
          %2631 = vmatprep.subr.bf16.mxu0 0
          %2632 = vmatpush1.bf16.msra.mxu0 0
          %2633 = vmatprep.subr.bf16.mxu0 0
          %2634 = vmatpush1.bf16.msra.mxu0 0
          %2635 = vmatprep.subr.bf16.mxu0 0
          %2636 = vmatpush1.bf16.msra.mxu0 0
          %2637 = vmatprep.subr.bf16.mxu0 0
          %2638 = vmatpush1.bf16.msra.mxu0 0
          %2639 = vmatprep.subr.bf16.mxu0 0
          %2640 = vmatpush1.bf16.msra.mxu0 0
          %2641 = vmatprep.subr.bf16.mxu0 0
          %2642 = vmatpush1.bf16.msra.mxu0 0
          %2643 = vmatprep.subr.bf16.mxu0 0
          %2644 = vmatpush1.bf16.msra.mxu0 0
          %2645 = vmatprep.mubr.bf16.mxu0 0
          %2646 = vmatmul.mubr.bf16.gmra.mrb[0].mxu0 %v2611
          %v2647 = vpop.f32.mrb[0].mxu0
          %v2648 = vadd.f32 0.0, %v2647
          %v2649 = vpop.f32.mrb[0].mxu0
          %v2650 = vpop.f32.mrb[0].mxu0
          %v2651 = vpop.f32.mrb[0].mxu0
          %2652 = vdwg.mxu0
          %v2653 = vpack.c.bf16 %v2604, %v2604
          %v2654 = vld [vmem:[%s11] sm:$0xff]
          %v2655 = vld [vmem:[%s11 + $0x8] sm:$0xff]
          %v2656 = vld [vmem:[%s11 + $0x10] sm:$0xff]
          %v2657 = vld [vmem:[%s11 + $0x18] sm:$0xff]
          %v2658 = vld [vmem:[%s11 + $0x20] sm:$0xff]
          %v2659 = vld [vmem:[%s11 + $0x28] sm:$0xff]
          %v2660 = vld [vmem:[%s11 + $0x30] sm:$0xff]
          %v2661 = vld [vmem:[%s11 + $0x38] sm:$0xff]
          %v2662 = vld [vmem:[%s11 + $0x40] sm:$0xff]
          %v2663 = vld [vmem:[%s11 + $0x48] sm:$0xff]
          %v2664 = vld [vmem:[%s11 + $0x50] sm:$0xff]
          %v2665 = vld [vmem:[%s11 + $0x58] sm:$0xff]
          %v2666 = vld [vmem:[%s11 + $0x60] sm:$0xff]
          %v2667 = vld [vmem:[%s11 + $0x68] sm:$0xff]
          %v2668 = vld [vmem:[%s11 + $0x70] sm:$0xff]
          %v2669 = vld [vmem:[%s11 + $0x78] sm:$0xff]
          %v2670 = vpack.c.bf16 %v2648, %v2648
          %v2671 = vld [vmem:[#allocation14] sm:$0xff]
          %v2672 = vld [vmem:[#allocation14 + $0x8] sm:$0xff]
          %v2673 = vld [vmem:[#allocation14 + $0x10] sm:$0xff]
          %v2674 = vld [vmem:[#allocation14 + $0x18] sm:$0xff]
          %v2675 = vld [vmem:[#allocation14 + $0x20] sm:$0xff]
          %v2676 = vld [vmem:[#allocation14 + $0x28] sm:$0xff]
          %v2677 = vld [vmem:[#allocation14 + $0x30] sm:$0xff]
          %v2678 = vld [vmem:[#allocation14 + $0x38] sm:$0xff]
          %v2679 = vld [vmem:[#allocation14 + $0x40] sm:$0xff]
          %v2680 = vld [vmem:[#allocation14 + $0x48] sm:$0xff]
          %v2681 = vld [vmem:[#allocation14 + $0x50] sm:$0xff]
          %v2682 = vld [vmem:[#allocation14 + $0x58] sm:$0xff]
          %v2683 = vld [vmem:[#allocation14 + $0x60] sm:$0xff]
          %v2684 = vld [vmem:[#allocation14 + $0x68] sm:$0xff]
          %v2685 = vld [vmem:[#allocation14 + $0x70] sm:$0xff]
          %v2686 = vld [vmem:[#allocation14 + $0x78] sm:$0xff]
          %v2703 = vunpack.c.l.b16 %v2671
          %v2704 = vunpack.c.h.b16 %v2671
          %v2705 = vunpack.c.l.b16 %v2672
          %v2706 = vunpack.c.h.b16 %v2672
          %v2707 = vunpack.c.l.b16 %v2673
          %v2708 = vunpack.c.h.b16 %v2673
          %v2709 = vunpack.c.l.b16 %v2674
          %v2710 = vunpack.c.h.b16 %v2674
          %v2711 = vunpack.c.l.b16 %v2675
          %v2712 = vunpack.c.h.b16 %v2675
          %v2713 = vunpack.c.l.b16 %v2676
          %v2714 = vunpack.c.h.b16 %v2676
          %v2715 = vunpack.c.l.b16 %v2677
          %v2716 = vunpack.c.h.b16 %v2677
          %v2717 = vunpack.c.l.b16 %v2678
          %v2718 = vunpack.c.h.b16 %v2678
          %v2719 = vunpack.c.l.b16 %v2679
          %v2720 = vunpack.c.h.b16 %v2679
          %v2721 = vunpack.c.l.b16 %v2680
          %v2722 = vunpack.c.h.b16 %v2680
          %v2723 = vunpack.c.l.b16 %v2681
          %v2724 = vunpack.c.h.b16 %v2681
          %v2725 = vunpack.c.l.b16 %v2682
          %v2726 = vunpack.c.h.b16 %v2682
          %v2727 = vunpack.c.l.b16 %v2683
          %v2728 = vunpack.c.h.b16 %v2683
          %v2729 = vunpack.c.l.b16 %v2684
          %v2730 = vunpack.c.h.b16 %v2684
          %v2731 = vunpack.c.l.b16 %v2685
          %v2732 = vunpack.c.h.b16 %v2685
          %v2733 = vunpack.c.l.b16 %v2686
          %v2734 = vunpack.c.h.b16 %v2686
          %v2735 = vpack.c.b16 %v2707, %v2703
          %v2736 = vpack.c.b16 %v2708, %v2704
          %v2737 = vpack.c.b16 %v2709, %v2705
          %v2738 = vpack.c.b16 %v2710, %v2706
          %v2739 = vpack.c.b16 %v2715, %v2711
          %v2740 = vpack.c.b16 %v2716, %v2712
          %v2741 = vpack.c.b16 %v2717, %v2713
          %v2742 = vpack.c.b16 %v2718, %v2714
          %v2743 = vpack.c.b16 %v2723, %v2719
          %v2744 = vpack.c.b16 %v2724, %v2720
          %v2745 = vpack.c.b16 %v2725, %v2721
          %v2746 = vpack.c.b16 %v2726, %v2722
          %v2747 = vpack.c.b16 %v2731, %v2727
          %v2748 = vpack.c.b16 %v2732, %v2728
          %v2749 = vpack.c.b16 %v2733, %v2729
          %v2750 = vpack.c.b16 %v2734, %v2730
          %v2768 = vsel %vm987, %v2670, 0
          %2770 = vmatprep.subr.bf16.mxu0 %v2736
          %2771 = vmatpush1.bf16.msra.mxu0 %v2735
          %2772 = vmatprep.subr.bf16.mxu0 %v2740
          %2773 = vmatpush1.bf16.msra.mxu0 %v2739
          %2774 = vmatprep.subr.bf16.mxu0 %v2744
          %2775 = vmatpush1.bf16.msra.mxu0 %v2743
          %2776 = vmatprep.subr.bf16.mxu0 %v2748
          %2777 = vmatpush1.bf16.msra.mxu0 %v2747
          %2778 = vmatprep.subr.bf16.mxu0 0
          %2779 = vmatpush1.bf16.msra.mxu0 0
          %2780 = vmatprep.subr.bf16.mxu0 0
          %2781 = vmatpush1.bf16.msra.mxu0 0
          %2782 = vmatprep.subr.bf16.mxu0 0
          %2783 = vmatpush1.bf16.msra.mxu0 0
          %2784 = vmatprep.subr.bf16.mxu0 0
          %2785 = vmatpush1.bf16.msra.mxu0 0
          %2786 = vmatprep.subr.bf16.mxu0 0
          %2787 = vmatpush1.bf16.msra.mxu0 0
          %2788 = vmatprep.subr.bf16.mxu0 0
          %2789 = vmatpush1.bf16.msra.mxu0 0
          %2790 = vmatprep.subr.bf16.mxu0 0
          %2791 = vmatpush1.bf16.msra.mxu0 0
          %2792 = vmatprep.subr.bf16.mxu0 0
          %2793 = vmatpush1.bf16.msra.mxu0 0
          %2794 = vmatprep.subr.bf16.mxu0 0
          %2795 = vmatpush1.bf16.msra.mxu0 0
          %2796 = vmatprep.subr.bf16.mxu0 0
          %2797 = vmatpush1.bf16.msra.mxu0 0
          %2798 = vmatprep.subr.bf16.mxu0 0
          %2799 = vmatpush1.bf16.msra.mxu0 0
          %2800 = vmatprep.subr.bf16.mxu0 0
          %2801 = vmatpush1.bf16.msra.mxu0 0
          %2802 = vmatprep.mubr.bf16.mxu0 0
          %2803 = vmatmul.mubr.bf16.gmra.mrb[0].mxu0 %v2768
          %v2804 = vpop.f32.mrb[0].mxu0
          %v2805 = vadd.f32 0.0, %v2804
          %v2806 = vpop.f32.mrb[0].mxu0
          %v2807 = vadd.f32 0.0, %v2806
          %v2808 = vpop.f32.mrb[0].mxu0
          %v2809 = vpop.f32.mrb[0].mxu0
          %2810 = vdwg.mxu0
          %2811 = vmatprep.subr.bf16.mxu0 %v2738
          %2812 = vmatpush1.bf16.msra.mxu0 %v2737
          %2813 = vmatprep.subr.bf16.mxu0 %v2742
          %2814 = vmatpush1.bf16.msra.mxu0 %v2741
          %2815 = vmatprep.subr.bf16.mxu0 %v2746
          %2816 = vmatpush1.bf16.msra.mxu0 %v2745
          %2817 = vmatprep.subr.bf16.mxu0 %v2750
          %2818 = vmatpush1.bf16.msra.mxu0 %v2749
          %2819 = vmatprep.subr.bf16.mxu0 0
          %2820 = vmatpush1.bf16.msra.mxu0 0
          %2821 = vmatprep.subr.bf16.mxu0 0
          %2822 = vmatpush1.bf16.msra.mxu0 0
          %2823 = vmatprep.subr.bf16.mxu0 0
          %2824 = vmatpush1.bf16.msra.mxu0 0
          %2825 = vmatprep.subr.bf16.mxu0 0
          %2826 = vmatpush1.bf16.msra.mxu0 0
          %2827 = vmatprep.subr.bf16.mxu0 0
          %2828 = vmatpush1.bf16.msra.mxu0 0
          %2829 = vmatprep.subr.bf16.mxu0 0
          %2830 = vmatpush1.bf16.msra.mxu0 0
          %2831 = vmatprep.subr.bf16.mxu0 0
          %2832 = vmatpush1.bf16.msra.mxu0 0
          %2833 = vmatprep.subr.bf16.mxu0 0
          %2834 = vmatpush1.bf16.msra.mxu0 0
          %2835 = vmatprep.subr.bf16.mxu0 0
          %2836 = vmatpush1.bf16.msra.mxu0 0
          %2837 = vmatprep.subr.bf16.mxu0 0
          %2838 = vmatpush1.bf16.msra.mxu0 0
          %2839 = vmatprep.subr.bf16.mxu0 0
          %2840 = vmatpush1.bf16.msra.mxu0 0
          %2841 = vmatprep.subr.bf16.mxu0 0
          %2842 = vmatpush1.bf16.msra.mxu0 0
          %2843 = vmatprep.mubr.bf16.mxu0 0
          %2844 = vmatmul.mubr.bf16.gmra.mrb[0].mxu0 %v2768
          %v2845 = vpop.f32.mrb[0].mxu0
          %v2846 = vadd.f32 0.0, %v2845
          %v2847 = vpop.f32.mrb[0].mxu0
          %v2848 = vadd.f32 0.0, %v2847
          %v2849 = vpop.f32.mrb[0].mxu0
          %v2850 = vpop.f32.mrb[0].mxu0
          %2851 = vdwg.mxu0
          %v2868 = vunpack.c.l.b16 %v2654
          %v2869 = vunpack.c.h.b16 %v2654
          %v2870 = vunpack.c.l.b16 %v2655
          %v2871 = vunpack.c.h.b16 %v2655
          %v2872 = vunpack.c.l.b16 %v2656
          %v2873 = vunpack.c.h.b16 %v2656
          %v2874 = vunpack.c.l.b16 %v2657
          %v2875 = vunpack.c.h.b16 %v2657
          %v2876 = vunpack.c.l.b16 %v2658
          %v2877 = vunpack.c.h.b16 %v2658
          %v2878 = vunpack.c.l.b16 %v2659
          %v2879 = vunpack.c.h.b16 %v2659
          %v2880 = vunpack.c.l.b16 %v2660
          %v2881 = vunpack.c.h.b16 %v2660
          %v2882 = vunpack.c.l.b16 %v2661
          %v2883 = vunpack.c.h.b16 %v2661
          %v2884 = vunpack.c.l.b16 %v2662
          %v2885 = vunpack.c.h.b16 %v2662
          %v2886 = vunpack.c.l.b16 %v2663
          %v2887 = vunpack.c.h.b16 %v2663
          %v2888 = vunpack.c.l.b16 %v2664
          %v2889 = vunpack.c.h.b16 %v2664
          %v2890 = vunpack.c.l.b16 %v2665
          %v2891 = vunpack.c.h.b16 %v2665
          %v2892 = vunpack.c.l.b16 %v2666
          %v2893 = vunpack.c.h.b16 %v2666
          %v2894 = vunpack.c.l.b16 %v2667
          %v2895 = vunpack.c.h.b16 %v2667
          %v2896 = vunpack.c.l.b16 %v2668
          %v2897 = vunpack.c.h.b16 %v2668
          %v2898 = vunpack.c.l.b16 %v2669
          %v2899 = vunpack.c.h.b16 %v2669
          %v2900 = vpack.c.b16 %v2872, %v2868
          %v2901 = vpack.c.b16 %v2873, %v2869
          %v2902 = vpack.c.b16 %v2874, %v2870
          %v2903 = vpack.c.b16 %v2875, %v2871
          %v2904 = vpack.c.b16 %v2880, %v2876
          %v2905 = vpack.c.b16 %v2881, %v2877
          %v2906 = vpack.c.b16 %v2882, %v2878
          %v2907 = vpack.c.b16 %v2883, %v2879
          %v2908 = vpack.c.b16 %v2888, %v2884
          %v2909 = vpack.c.b16 %v2889, %v2885
          %v2910 = vpack.c.b16 %v2890, %v2886
          %v2911 = vpack.c.b16 %v2891, %v2887
          %v2912 = vpack.c.b16 %v2896, %v2892
          %v2913 = vpack.c.b16 %v2897, %v2893
          %v2914 = vpack.c.b16 %v2898, %v2894
          %v2915 = vpack.c.b16 %v2899, %v2895
          %v2933 = vsel %vm987, %v2653, 0
          %2935 = vmatprep.subr.bf16.mxu0 %v2901
          %2936 = vmatpush1.bf16.msra.mxu0 %v2900
          %2937 = vmatprep.subr.bf16.mxu0 %v2905
          %2938 = vmatpush1.bf16.msra.mxu0 %v2904
          %2939 = vmatprep.subr.bf16.mxu0 %v2909
          %2940 = vmatpush1.bf16.msra.mxu0 %v2908
          %2941 = vmatprep.subr.bf16.mxu0 %v2913
          %2942 = vmatpush1.bf16.msra.mxu0 %v2912
          %2943 = vmatprep.subr.bf16.mxu0 0
          %2944 = vmatpush1.bf16.msra.mxu0 0
          %2945 = vmatprep.subr.bf16.mxu0 0
          %2946 = vmatpush1.bf16.msra.mxu0 0
          %2947 = vmatprep.subr.bf16.mxu0 0
          %2948 = vmatpush1.bf16.msra.mxu0 0
          %2949 = vmatprep.subr.bf16.mxu0 0
          %2950 = vmatpush1.bf16.msra.mxu0 0
          %2951 = vmatprep.subr.bf16.mxu0 0
          %2952 = vmatpush1.bf16.msra.mxu0 0
          %2953 = vmatprep.subr.bf16.mxu0 0
          %2954 = vmatpush1.bf16.msra.mxu0 0
          %2955 = vmatprep.subr.bf16.mxu0 0
          %2956 = vmatpush1.bf16.msra.mxu0 0
          %2957 = vmatprep.subr.bf16.mxu0 0
          %2958 = vmatpush1.bf16.msra.mxu0 0
          %2959 = vmatprep.subr.bf16.mxu0 0
          %2960 = vmatpush1.bf16.msra.mxu0 0
          %2961 = vmatprep.subr.bf16.mxu0 0
          %2962 = vmatpush1.bf16.msra.mxu0 0
          %2963 = vmatprep.subr.bf16.mxu0 0
          %2964 = vmatpush1.bf16.msra.mxu0 0
          %2965 = vmatprep.subr.bf16.mxu0 0
          %2966 = vmatpush1.bf16.msra.mxu0 0
          %2967 = vmatprep.mubr.bf16.mxu0 0
          %2968 = vmatmul.mubr.bf16.gmra.mrb[0].mxu0 %v2933
          %v2969 = vpop.f32.mrb[0].mxu0
          %v2970 = vadd.f32 %v2805, %v2969
          %v2971 = vpop.f32.mrb[0].mxu0
          %v2972 = vadd.f32 %v2807, %v2971
          %v2973 = vpop.f32.mrb[0].mxu0
          %v2974 = vpop.f32.mrb[0].mxu0
          %2975 = vdwg.mxu0
          %2976 = vmatprep.subr.bf16.mxu0 %v2903
          %2977 = vmatpush1.bf16.msra.mxu0 %v2902
          %2978 = vmatprep.subr.bf16.mxu0 %v2907
          %2979 = vmatpush1.bf16.msra.mxu0 %v2906
          %2980 = vmatprep.subr.bf16.mxu0 %v2911
          %2981 = vmatpush1.bf16.msra.mxu0 %v2910
          %2982 = vmatprep.subr.bf16.mxu0 %v2915
          %2983 = vmatpush1.bf16.msra.mxu0 %v2914
          %2984 = vmatprep.subr.bf16.mxu0 0
          %2985 = vmatpush1.bf16.msra.mxu0 0
          %2986 = vmatprep.subr.bf16.mxu0 0
          %2987 = vmatpush1.bf16.msra.mxu0 0
          %2988 = vmatprep.subr.bf16.mxu0 0
          %2989 = vmatpush1.bf16.msra.mxu0 0
          %2990 = vmatprep.subr.bf16.mxu0 0
          %2991 = vmatpush1.bf16.msra.mxu0 0
          %2992 = vmatprep.subr.bf16.mxu0 0
          %2993 = vmatpush1.bf16.msra.mxu0 0
          %2994 = vmatprep.subr.bf16.mxu0 0
          %2995 = vmatpush1.bf16.msra.mxu0 0
          %2996 = vmatprep.subr.bf16.mxu0 0
          %2997 = vmatpush1.bf16.msra.mxu0 0
          %2998 = vmatprep.subr.bf16.mxu0 0
          %2999 = vmatpush1.bf16.msra.mxu0 0
          %3000 = vmatprep.subr.bf16.mxu0 0
          %3001 = vmatpush1.bf16.msra.mxu0 0
          %3002 = vmatprep.subr.bf16.mxu0 0
          %3003 = vmatpush1.bf16.msra.mxu0 0
          %3004 = vmatprep.subr.bf16.mxu0 0
          %3005 = vmatpush1.bf16.msra.mxu0 0
          %3006 = vmatprep.subr.bf16.mxu0 0
          %3007 = vmatpush1.bf16.msra.mxu0 0
          %3008 = vmatprep.mubr.bf16.mxu0 0
          %3009 = vmatmul.mubr.bf16.gmra.mrb[0].mxu0 %v2933
          %v3010 = vpop.f32.mrb[0].mxu0
          %v3011 = vadd.f32 %v2846, %v3010
          %v3012 = vpop.f32.mrb[0].mxu0
          %v3013 = vadd.f32 %v2848, %v3012
          %v3014 = vpop.f32.mrb[0].mxu0
          %v3015 = vpop.f32.mrb[0].mxu0
          %3016 = vdwg.mxu0
          %v3017 = vmax.f32 %v2970, %v3011
          %v3018 = vmax.f32 %v2972, %v3013
          %v3019 = vld [vmem:[%s13] sm:$0x3]
          %v3021 = vlaneseq
          %v3022 = vshrl.u32 %v3021, 7
          %v3023 = vsub.s32 0, %v3022
          %v3024 = vrot.slane %v3019, %v3023
          %v3025 = vlaneseq
          %v3026 = vshrl.u32 %v3025, 7
          %v3027 = vsub.s32 1, %v3026
          %v3028 = vrot.slane %v3019, %v3027
          %v3031 = vadd.f32 %v3017, %v3024
          %v3032 = vadd.f32 %v3018, %v3028
          %v3033 = vpack.c.bf16 %v3031, %v3031
          %v3034 = vpack.c.bf16 %v3032, %v3032
          %v3035 = vld [vmem:[%s14] sm:$0xf]
          %v3036 = vld [vmem:[%s14 + $0x4] sm:$0xf]
          %v3037 = vld [vmem:[%s14 + $0x8] sm:$0xf]
          %v3038 = vld [vmem:[%s14 + $0xc] sm:$0xf]
          %v3039 = vld [vmem:[%s14 + $0x10] sm:$0xf]
          %v3040 = vld [vmem:[%s14 + $0x14] sm:$0xf]
          %v3041 = vld [vmem:[%s14 + $0x18] sm:$0xf]
          %v3042 = vld [vmem:[%s14 + $0x1c] sm:$0xf]
          %v3043 = vld [vmem:[%s14 + $0x20] sm:$0xf]
          %v3044 = vld [vmem:[%s14 + $0x24] sm:$0xf]
          %v3045 = vld [vmem:[%s14 + $0x28] sm:$0xf]
          %v3046 = vld [vmem:[%s14 + $0x2c] sm:$0xf]
          %v3047 = vld [vmem:[%s14 + $0x30] sm:$0xf]
          %v3048 = vld [vmem:[%s14 + $0x34] sm:$0xf]
          %v3049 = vld [vmem:[%s14 + $0x38] sm:$0xf]
          %v3050 = vld [vmem:[%s14 + $0x3c] sm:$0xf]
          %v3051 = vld [vmem:[%s14 + $0x40] sm:$0xf]
          %v3052 = vld [vmem:[%s14 + $0x44] sm:$0xf]
          %v3053 = vld [vmem:[%s14 + $0x48] sm:$0xf]
          %v3054 = vld [vmem:[%s14 + $0x4c] sm:$0xf]
          %v3055 = vld [vmem:[%s14 + $0x50] sm:$0xf]
          %v3056 = vld [vmem:[%s14 + $0x54] sm:$0xf]
          %v3057 = vld [vmem:[%s14 + $0x58] sm:$0xf]
          %v3058 = vld [vmem:[%s14 + $0x5c] sm:$0xf]
          %v3059 = vld [vmem:[%s14 + $0x60] sm:$0xf]
          %v3060 = vld [vmem:[%s14 + $0x64] sm:$0xf]
          %v3061 = vld [vmem:[%s14 + $0x68] sm:$0xf]
          %v3062 = vld [vmem:[%s14 + $0x6c] sm:$0xf]
          %v3063 = vld [vmem:[%s14 + $0x70] sm:$0xf]
          %v3064 = vld [vmem:[%s14 + $0x74] sm:$0xf]
          %v3065 = vld [vmem:[%s14 + $0x78] sm:$0xf]
          %v3066 = vld [vmem:[%s14 + $0x7c] sm:$0xf]
          %v3067 = vld [vmem:[%s15] sm:$0x1]
          %v3069 = vlaneseq
          %v3070 = vshrl.u32 %v3069, 7
          %v3071 = vsub.s32 0, %v3070
          %v3072 = vrot.slane %v3067, %v3071
          %v3106 = vunpack.c.l.b16 %v3035
          %v3107 = vunpack.c.l.b16 %v3036
          %v3108 = vunpack.c.l.b16 %v3037
          %v3109 = vunpack.c.l.b16 %v3038
          %v3110 = vunpack.c.l.b16 %v3039
          %v3111 = vunpack.c.l.b16 %v3040
          %v3112 = vunpack.c.l.b16 %v3041
          %v3113 = vunpack.c.l.b16 %v3042
          %v3114 = vunpack.c.l.b16 %v3043
          %v3115 = vunpack.c.l.b16 %v3044
          %v3116 = vunpack.c.l.b16 %v3045
          %v3117 = vunpack.c.l.b16 %v3046
          %v3118 = vunpack.c.l.b16 %v3047
          %v3119 = vunpack.c.l.b16 %v3048
          %v3120 = vunpack.c.l.b16 %v3049
          %v3121 = vunpack.c.l.b16 %v3050
          %v3122 = vunpack.c.l.b16 %v3051
          %v3123 = vunpack.c.l.b16 %v3052
          %v3124 = vunpack.c.l.b16 %v3053
          %v3125 = vunpack.c.l.b16 %v3054
          %v3126 = vunpack.c.l.b16 %v3055
          %v3127 = vunpack.c.l.b16 %v3056
          %v3128 = vunpack.c.l.b16 %v3057
          %v3129 = vunpack.c.l.b16 %v3058
          %v3130 = vunpack.c.l.b16 %v3059
          %v3131 = vunpack.c.l.b16 %v3060
          %v3132 = vunpack.c.l.b16 %v3061
          %v3133 = vunpack.c.l.b16 %v3062
          %v3134 = vunpack.c.l.b16 %v3063
          %v3135 = vunpack.c.l.b16 %v3064
          %v3136 = vunpack.c.l.b16 %v3065
          %v3137 = vunpack.c.l.b16 %v3066
          %v3138 = vpack.c.b16 %v3107, %v3106
          %v3139 = vpack.c.b16 %v3109, %v3108
          %v3140 = vpack.c.b16 %v3111, %v3110
          %v3141 = vpack.c.b16 %v3113, %v3112
          %v3142 = vpack.c.b16 %v3115, %v3114
          %v3143 = vpack.c.b16 %v3117, %v3116
          %v3144 = vpack.c.b16 %v3119, %v3118
          %v3145 = vpack.c.b16 %v3121, %v3120
          %v3146 = vpack.c.b16 %v3123, %v3122
          %v3147 = vpack.c.b16 %v3125, %v3124
          %v3148 = vpack.c.b16 %v3127, %v3126
          %v3149 = vpack.c.b16 %v3129, %v3128
          %v3150 = vpack.c.b16 %v3131, %v3130
          %v3151 = vpack.c.b16 %v3133, %v3132
          %v3152 = vpack.c.b16 %v3135, %v3134
          %v3153 = vpack.c.b16 %v3137, %v3136
          %3170 = vmatprep.subr.bf16.mxu0 0
          %3171 = vmatpush1.bf16.msra.mxu0 %v3138
          %3172 = vmatprep.subr.bf16.mxu0 0
          %3173 = vmatpush1.bf16.msra.mxu0 %v3139
          %3174 = vmatprep.subr.bf16.mxu0 0
          %3175 = vmatpush1.bf16.msra.mxu0 %v3140
          %3176 = vmatprep.subr.bf16.mxu0 0
          %3177 = vmatpush1.bf16.msra.mxu0 %v3141
          %3178 = vmatprep.subr.bf16.mxu0 0
          %3179 = vmatpush1.bf16.msra.mxu0 %v3142
          %3180 = vmatprep.subr.bf16.mxu0 0
          %3181 = vmatpush1.bf16.msra.mxu0 %v3143
          %3182 = vmatprep.subr.bf16.mxu0 0
          %3183 = vmatpush1.bf16.msra.mxu0 %v3144
          %3184 = vmatprep.subr.bf16.mxu0 0
          %3185 = vmatpush1.bf16.msra.mxu0 %v3145
          %3186 = vmatprep.subr.bf16.mxu0 0
          %3187 = vmatpush1.bf16.msra.mxu0 %v3146
          %3188 = vmatprep.subr.bf16.mxu0 0
          %3189 = vmatpush1.bf16.msra.mxu0 %v3147
          %3190 = vmatprep.subr.bf16.mxu0 0
          %3191 = vmatpush1.bf16.msra.mxu0 %v3148
          %3192 = vmatprep.subr.bf16.mxu0 0
          %3193 = vmatpush1.bf16.msra.mxu0 %v3149
          %3194 = vmatprep.subr.bf16.mxu0 0
          %3195 = vmatpush1.bf16.msra.mxu0 %v3150
          %3196 = vmatprep.subr.bf16.mxu0 0
          %3197 = vmatpush1.bf16.msra.mxu0 %v3151
          %3198 = vmatprep.subr.bf16.mxu0 0
          %3199 = vmatpush1.bf16.msra.mxu0 %v3152
          %3200 = vmatprep.subr.bf16.mxu0 0
          %3201 = vmatpush1.bf16.msra.mxu0 %v3153
          %3202 = vmatprep.mubr.bf16.mxu0 %v3034
          %3203 = vmatmul.mubr.bf16.gmra.mrb[0].mxu0 %v3033
          %v3204 = vpop.f32.mrb[0].mxu0
          %v3205 = vadd.f32 %v3072, %v3204
          %v3206 = vpop.f32.mrb[0].mxu0
          %v3207 = vpop.f32.mrb[0].mxu0
          %v3208 = vpop.f32.mrb[0].mxu0
          %3209 = vdwg.mxu0
          %v3210 = vmax.f32 %v3205, 0.0
          %v3211 = vld [vmem:[%s16] sm:$0x1]
          %v3213 = vlaneseq
          %v3214 = vshrl.u32 %v3213, 7
          %v3215 = vsub.s32 0, %v3214
          %v3216 = vrot.slane %v3211, %v3215
          %v3218 = vmul.f32 %v3210, %v3216
          %v3219 = vsel %vm987, %v3218, 0.0
          %3220 = vadd.xlane.f32.xlu0 %v3219
          %v3221 = vpop.xlane.xlu0 %3220
          %v3222 = vld [vmem:[#allocation4] sm:$0x1]
          %v3224 = vlaneseq
          %v3225 = vshrl.u32 %v3224, 7
          %v3226 = vsub.s32 0, %v3225
          %v3227 = vrot.slane %v3222, %v3226
          %v3229 = vadd.f32 %v3221, %v3227
          %v3230 = vxor.u32 %v3229, 2147483648
          %v3231 = vmul.f32 %v3230, 1.442695
          %v3232 = vpow.pop %v3231
          %v3233 = vadd.f32 %v3232, 1.0
          %v3234 = vrcp.pop %v3233
          %v3235 = vmul.f32 1.0, %v3234
          %vm3236 = vcmask 7168
          %3237 = vst.msk [vmem:[%s19] sm:$0xff] %vm3236, %v3235
        $region124: #{tpu_custom_call.1} parent=91 // pred_fallthru
          _
        // Predicated region
        $region125: #{tpu_custom_call.1} parent=91 // pred_check
          %p3238 = pneg %p441
        $region126: #{tpu_custom_call.1} parent=91 // pred_check_branch
          %3240 = sbr.rel (%p3238) target = $region128
        $region127: #{tpu_custom_call.1} parent=91 // pred_region
          %s3242 = ssub.s32 128, 128
          %3243 = vsyncadd [#allocation7], %s3242
          %s3245 = sshll.u32 [#allocation16], 4
          %s3246 = int_to_ptr.vmem [resolvable:$true] %s3245
          %3248 = dma.vmem_to_hbm [thread:$0]  %s3246, 128, %s18, [#allocation7]
        $region128: #{tpu_custom_call.1} parent=91 // pred_fallthru
          _
        // Predicated region
        $region129: #{tpu_custom_call.1} parent=91 // pred_check
          %p3249 = pneg %p462
        $region130: #{tpu_custom_call.1} parent=91 // pred_check_branch
          %3251 = sbr.rel (%p3249) target = $region132
        $region131: #{tpu_custom_call.1} parent=91 // pred_region
          _
        $region132: #{tpu_custom_call.1} parent=91 // pred_fallthru
          _
        // Predicated region
        $region133: #{tpu_custom_call.1} parent=91 // pred_check
          %p3252 = pneg %p441
        $region134: #{tpu_custom_call.1} parent=91 // pred_check_branch
          %3254 = sbr.rel (%p3252) target = $region136
        $region135: #{tpu_custom_call.1} parent=91 // pred_region
          %3255 = dma.done [#allocation7], 128
        $region136: #{tpu_custom_call.1} parent=91 // pred_fallthru
          _
        // Predicated region
        $region137: #{tpu_custom_call.1} parent=91 // pred_check
          %p3256 = pneg %p462
        $region138: #{tpu_custom_call.1} parent=91 // pred_check_branch
          %3258 = sbr.rel (%p3256) target = $region140
        $region139: #{tpu_custom_call.1} parent=91 // pred_region
          _
        $region140: #{tpu_custom_call.1} parent=91 // pred_fallthru
          _
      $region92: #{tpu_custom_call.1} parent=5 // pred_fallthru
        _
      %p3259 = scmp.le.s32.totalorder 2, %s35
      // Predicated region
      $region141: #{tpu_custom_call.1} parent=5 // pred_check
        %p3260 = pneg %p3259
      $region142: #{tpu_custom_call.1} parent=5 // pred_check_branch
        %3262 = sbr.rel (%p3260) target = $region144
      $region143: #{tpu_custom_call.1} parent=5 // pred_region
        %s3263 = ssub.s32 %s35, 2
      $region144: #{tpu_custom_call.1} parent=5 // pred_fallthru
        _
    $region6: #{tpu_custom_call.1} parent=1 // loop_footer
      %s39 = sadd.s32 1, %s35
    $region7: #{tpu_custom_call.1} parent=1 // loop_footer_branch
      %34 = sbr.rel target = $region3
    $region8: #{tpu_custom_call.1} parent=1 // loop_exit
      _
    %3264 = vsyncpa [#allocation6], 1
    %s3265 = scalar_lea.sflag [#allocation6], 1
    %3266 = vsyncpa %s3265, 1
    %3267 = vsyncpa [#allocation9], 1
    %3268 = vsyncpa [#allocation12], 1
    %3269 = vsyncpa [#allocation15], 1
    %3270 = vsyncpa [#allocation7], 1
    %s3271 = scalar_lea.sflag [#allocation7], 1
    %3272 = vsyncpa %s3271, 1

</llo_original>
